<compile_context>
chip_gen: v7x
topology: tpu7x:2x2x1
jax: 0.10.0
libtpu: 0.0.40
codegen_flags: <defaults>
</compile_context>

<pallas_src>
import functools
import math

import numpy as np
import jax
import jax.numpy as jnp
from jax.experimental import pallas as pl
from jax.experimental.pallas import tpu as pltpu


CFG = dict(
    vocab=100, hidden=32, layers=2, heads=2, inter=64, max_pos=32,
    n_classes=5,
    conv_cin=2, conv_cout=16, dep_h=16, dep_w=16, dep_hidden=128,
)


def _nbytes(shape, dtype):
    n = 1
    for d in shape:
        n *= int(d)
    return n * np.dtype(dtype).itemsize


def _vmem_limit(blocks, scratch_bytes=0):
    """Scoped-VMEM budget: double-buffered pipelined blocks + scratch + headroom."""
    buffered = 2 * sum(_nbytes(s, d) for s, d in blocks)
    return int(min(128 << 20, buffered + scratch_bytes + (8 << 20)))


# ----------------------------------------------------------------------------
# Kernel 1: fused BERT encoder (embedding LN + L layers + pooler)
# ----------------------------------------------------------------------------

def _encoder_kernel(emb_ref, mask_ref, embg_ref, embb_ref,
                    wqkv_ref, bqkv_ref, wo_ref, bo_ref,
                    ln1g_ref, ln1b_ref, wi_ref, bi_ref, wf_ref, bf_ref,
                    ln2g_ref, ln2b_ref, pw_ref, pb_ref,
                    pooled_ref, h_ref, emb_sem,
                    *, bt, S, NH, DH, eps):
    b = pl.program_id(0)          # batch block ("parallel": v7x megacore split)
    l = pl.program_id(1)          # layer (sequential; hidden state stays in VMEM)
    H = NH * DH
    R = bt * S
    bf16 = jnp.bfloat16

    def ln(x, g, bia):
        mu = jnp.mean(x, axis=-1, keepdims=True)
        xc = x - mu
        var = jnp.mean(xc * xc, axis=-1, keepdims=True)
        return xc * jax.lax.rsqrt(var + eps) * g + bia

    # layer 0: DMA this batch block's embeddings from HBM straight into the
    # resident hidden-state scratch (emb is NOT pinned in VMEM across layers),
    # then apply the embedding LayerNorm in place.
    @pl.when(l == 0)
    def _():
        cp = pltpu.make_async_copy(
            emb_ref.at[pl.ds(b * R, R), :], h_ref, emb_sem)
        cp.start()
        cp.wait()
        h_ref[...] = ln(h_ref[...], embg_ref[...], embb_ref[...])

    h = h_ref[...]                                   # (R, H) f32 residual stream
    mask = mask_ref[...]                             # (bt, 1, S) additive mask

    # Fused QKV projection: one bf16 MXU matmul (K=H, N=3H).  The 1/sqrt(DH)
    # attention scale is already folded into the Q columns of wqkv.
    qkv = (jnp.dot(h.astype(bf16), wqkv_ref[0],
                   preferred_element_type=jnp.float32) + bqkv_ref[0])

    # Per-head scores/context, statically unrolled (NH is small).  Mosaic does
    # not reliably lower multi-batch-dim dot_general / 4-D transposes, so heads
    # stay unrolled, but merge-heads is a single lane concat followed by ONE
    # K=H output projection (instead of NH K=DH matmuls).
    ctx_heads = []
    for hd in range(NH):
        q = qkv[:, hd * DH:(hd + 1) * DH].reshape(bt, S, DH).astype(bf16)
        k = qkv[:, H + hd * DH:H + (hd + 1) * DH].reshape(bt, S, DH).astype(bf16)
        v = qkv[:, 2 * H + hd * DH:2 * H + (hd + 1) * DH].reshape(bt, S, DH).astype(bf16)
        s = jnp.einsum("bqd,bkd->bqk", q, k,
                       preferred_element_type=jnp.float32)
        s = s + mask                                 # broadcast over query rows
        s = s - jnp.max(s, axis=-1, keepdims=True)
        p = jnp.exp(s)
        # approx reciprocal runs on the EUP slot; rows are normalized to ~bf16
        # accuracy (acceptable for inference).
        p = p * pl.reciprocal(jnp.sum(p, axis=-1, keepdims=True), approx=True)
        ctx = jnp.einsum("bqk,bkd->bqd", p.astype(bf16), v,
                         preferred_element_type=jnp.float32)
        ctx_heads.append(ctx.reshape(R, DH))
    ctx_all = jnp.concatenate(ctx_heads, axis=-1).astype(bf16)   # (R, H)
    attn_out = (jnp.dot(ctx_all, wo_ref[0],
                        preferred_element_type=jnp.float32) + bo_ref[0])

    h1 = ln(attn_out + h, ln1g_ref[0], ln1b_ref[0])

    # TODO(synk): at BERT-base sizes on v7x, tile wi/wf over the intermediate
    # dim with an extra inner grid axis so only weight tiles are double-buffered.
    inter = (jnp.dot(h1.astype(bf16), wi_ref[0],
                     preferred_element_type=jnp.float32) + bi_ref[0])
    # TODO(synk): HF BERT uses erf-based GELU; tanh approximation used here.
    inter = 0.5 * inter * (1.0 + jnp.tanh(
        0.7978845608028654 * (inter + 0.044715 * inter * inter * inter)))
    ffn = (jnp.dot(inter.astype(bf16), wf_ref[0],
                   preferred_element_type=jnp.float32) + bf_ref[0])
    h2 = ln(ffn + h1, ln2g_ref[0], ln2b_ref[0])
    h_ref[...] = h2                                  # stays resident in VMEM

    # last layer: BERT pooler (tanh linear on the CLS rows) -> only output.
    @pl.when(l == pl.num_programs(1) - 1)
    def _():
        cls = h2.reshape(bt, S, H)[:, 0, :]          # (bt, H)
        pooled_ref[...] = jnp.tanh(
            jnp.dot(cls, pw_ref[...], preferred_element_type=jnp.float32)
            + pb_ref[...])


def bert_encoder(params, emb, ext_mask, B, S, batch_block=None):
    c = CFG
    H, NH, L, I = c["hidden"], c["heads"], c["layers"], c["inter"]
    DH = H // NH
    # One batch block by default (v5e/v6e have 1 TC); on v7x pass
    # batch_block=B//2 so the leading "parallel" axis shards rows across the
    # two TensorCores.
    bt = B if batch_block is None else batch_block
    assert B % bt == 0 and (bt * S) % 8 == 0
    kernel = functools.partial(_encoder_kernel, bt=bt, S=S, NH=NH, DH=DH,
                               eps=1e-12)

    def full2(shape):
        return pl.BlockSpec(shape, lambda b, l: (0, 0))

    def per_layer(shape):
        return pl.BlockSpec((1,) + shape, lambda b, l: (l, 0, 0))

    wdt = jnp.bfloat16
    vmem_limit = _vmem_limit(
        [((bt, 1, S), jnp.float32), ((1, H), jnp.float32), ((1, H), jnp.float32),
         ((H, 3 * H), wdt), ((1, 3 * H), jnp.float32),
         ((H, H), wdt), ((1, H), jnp.float32),
         ((1, H), jnp.float32), ((1, H), jnp.float32),
         ((H, I), wdt), ((1, I), jnp.float32),
         ((I, H), wdt), ((1, H), jnp.float32),
         ((1, H), jnp.float32), ((1, H), jnp.float32),
         ((H, H), jnp.float32), ((1, H), jnp.float32),
         ((bt, H), jnp.float32)],
        scratch_bytes=_nbytes((bt * S, H), jnp.float32))

    return pl.pallas_call(
        kernel,
        out_shape=jax.ShapeDtypeStruct((B, H), jnp.float32),
        grid=(B // bt, L),
        in_specs=[
            pl.BlockSpec(memory_space=pl.ANY),                 # embeddings stay in HBM
            pl.BlockSpec((bt, 1, S), lambda b, l: (b, 0, 0)),  # additive mask
            full2((1, H)), full2((1, H)),                      # embedding LN
            per_layer((H, 3 * H)), per_layer((1, 3 * H)),      # fused QKV (bf16 W)
            per_layer((H, H)), per_layer((1, H)),              # attn output proj
            per_layer((1, H)), per_layer((1, H)),              # LN1
            per_layer((H, I)), per_layer((1, I)),              # FFN intermediate
            per_layer((I, H)), per_layer((1, H)),              # FFN output
            per_layer((1, H)), per_layer((1, H)),              # LN2
            full2((H, H)), full2((1, H)),                      # pooler
        ],
        out_specs=pl.BlockSpec((bt, H), lambda b, l: (b, 0)),
        scratch_shapes=[pltpu.VMEM((bt * S, H), jnp.float32),
                        pltpu.SemaphoreType.DMA],
        compiler_params=pltpu.CompilerParams(
            dimension_semantics=("parallel", "arbitrary"),
            vmem_limit_bytes=vmem_limit),
    )(emb, ext_mask,
      params["emb_ln_g"].reshape(1, H), params["emb_ln_b"].reshape(1, H),
      params["wqkv"], params["bqkv"], params["wo"], params["bo"],
      params["ln1_g"], params["ln1_b"], params["wi"], params["bi"],
      params["wf"], params["bf"], params["ln2_g"], params["ln2_b"],
      params["pool_w"], params["pool_b"].reshape(1, H))


# ----------------------------------------------------------------------------
# Kernel 2: 3x3 conv (as matmul) + bias + ReLU + 2x2 maxpool, fused
# ----------------------------------------------------------------------------

def _conv_pool_kernel(p_ref, w_ref, b_ref, o_ref):
    g, m, kk = p_ref.shape
    cout = w_ref.shape[1]
    # ONE MXU push for all 4 pool positions (4*M rows), then a VPU max-reduce.
    c = (jnp.dot(p_ref[...].reshape(g * m, kk), w_ref[...],
                 preferred_element_type=jnp.float32) + b_ref[...])
    c = jnp.maximum(c, 0.0)
    c = c.reshape(g, m, cout)
    best = c[0]
    for p in range(1, g):                                    # g == 4, static
        best = jnp.maximum(best, c[p])
    o_ref[...] = best


def conv_relu_pool(patch_groups, w_mat, bias):
    G, M, K = patch_groups.shape
    Cout = w_mat.shape[1]
    vmem_limit = _vmem_limit(
        [((G, M, K), jnp.float32), ((K, Cout), jnp.float32),
         ((1, Cout), jnp.float32), ((M, Cout), jnp.float32)])
    return pl.pallas_call(
        _conv_pool_kernel,
        out_shape=jax.ShapeDtypeStruct((M, Cout), jnp.float32),
        grid=(1,),
        in_specs=[
            pl.BlockSpec((G, M, K), lambda i: (0, 0, 0)),
            pl.BlockSpec((K, Cout), lambda i: (0, 0)),
            pl.BlockSpec((1, Cout), lambda i: (0, 0)),
        ],
        out_specs=pl.BlockSpec((M, Cout), lambda i: (0, 0)),
        compiler_params=pltpu.CompilerParams(
            dimension_semantics=("arbitrary",),
            vmem_limit_bytes=vmem_limit),
    )(patch_groups, w_mat, bias.reshape(1, Cout))


# ----------------------------------------------------------------------------
# Kernel 3: K-tiled fc_dep + ReLU + classifier + softmax, fused
# ----------------------------------------------------------------------------

def _head_kernel(dep_ref, fcw_ref, fcb_ref, pool_ref, cwb_ref, cwd_ref, cb_ref,
                 o_ref, acc_ref):
    k = pl.program_id(0)

    @pl.when(k == 0)
    def _():
        acc_ref[...] = jnp.zeros_like(acc_ref)

    # K-tiled fc_dep matmul; the f32 accumulator stays resident in VMEM.
    acc_ref[...] += jnp.dot(dep_ref[...], fcw_ref[...],
                            preferred_element_type=jnp.float32)

    @pl.when(k == pl.num_programs(0) - 1)
    def _():
        dep = jnp.maximum(acc_ref[...] + fcb_ref[...], 0.0)
        logits = (jnp.dot(pool_ref[...], cwb_ref[...],
                          preferred_element_type=jnp.float32)
                  + jnp.dot(dep, cwd_ref[...],
                            preferred_element_type=jnp.float32)
                  + cb_ref[...])
        m = jnp.max(logits, axis=-1, keepdims=True)
        e = jnp.exp(logits - m)
        o_ref[...] = e / jnp.sum(e, axis=-1, keepdims=True)   # exact normalize


def _pick_k_tile(F, target=8192):
    kt = min(F, target)
    while F % kt:
        kt //= 2
    if kt == F and F > 128:       # keep >=2 K steps so the accumulator path runs
        kt = F // 2
    return kt


def dep_head(dep_flat, fcw, fcb, pooled, cls_w, cls_b):
    B, F = dep_flat.shape
    DHID = fcw.shape[1]
    H = pooled.shape[1]
    N = cls_w.shape[1]
    kt = _pick_k_tile(F)
    cwb = cls_w[:H]      # classifier weight rows for the BERT pooled features
    cwd = cls_w[H:]      # classifier weight rows for the dep features
    vmem_limit = _vmem_limit(
        [((B, kt), jnp.float32), ((kt, DHID), jnp.float32),
         ((1, DHID), jnp.float32), ((B, H), jnp.float32),
         ((H, N), jnp.float32), ((DHID, N), jnp.float32),
         ((1, N), jnp.float32), ((B, N), jnp.float32)],
        scratch_bytes=_nbytes((B, DHID), jnp.float32))
    return pl.pallas_call(
        _head_kernel,
        out_shape=jax.ShapeDtypeStruct((B, N), jnp.float32),
        grid=(F // kt,),
        in_specs=[
            pl.BlockSpec((B, kt), lambda k: (0, k)),
            pl.BlockSpec((kt, DHID), lambda k: (k, 0)),
            pl.BlockSpec((1, DHID), lambda k: (0, 0)),
            pl.BlockSpec((B, H), lambda k: (0, 0)),
            pl.BlockSpec((H, N), lambda k: (0, 0)),
            pl.BlockSpec((DHID, N), lambda k: (0, 0)),
            pl.BlockSpec((1, N), lambda k: (0, 0)),
        ],
        out_specs=pl.BlockSpec((B, N), lambda k: (0, 0)),
        scratch_shapes=[pltpu.VMEM((B, DHID), jnp.float32)],
        compiler_params=pltpu.CompilerParams(
            dimension_semantics=("arbitrary",),
            vmem_limit_bytes=vmem_limit),
    )(dep_flat, fcw, fcb.reshape(1, DHID), pooled, cwb, cwd,
      cls_b.reshape(1, N))


# ----------------------------------------------------------------------------
# Parameters (deterministic synthetic init) & forward pass
# ----------------------------------------------------------------------------

def init_params(key):
    c = CFG
    H, NH, I, L = c["hidden"], c["heads"], c["inter"], c["layers"]
    DH = H // NH
    keys = iter(jax.random.split(key, 32))

    def w(shape, std=0.02):
        return (std * jax.random.normal(next(keys), shape)).astype(jnp.float32)

    def zeros(shape):
        return jnp.zeros(shape, jnp.float32)

    def ones(shape):
        return jnp.ones(shape, jnp.float32)

    # 1/sqrt(DH) attention scale folded into the Q columns of the fused QKV
    # weight (QKV bias is zero, so there is nothing to fold there).
    wqkv = w((L, H, 3 * H))
    wqkv = wqkv.at[:, :, :H].multiply(1.0 / math.sqrt(DH))

    Hp, Wp = c["dep_h"] // 2, c["dep_w"] // 2
    bf16 = jnp.bfloat16
    return {
        "word_emb": w((c["vocab"], H)),
        "pos_emb": w((c["max_pos"], H)),
        "type_emb": w((2, H)),
        "emb_ln_g": ones((H,)), "emb_ln_b": zeros((H,)),
        # per-layer weights stacked on a leading layer axis (= inner grid axis);
        # matmul weights are stored bf16 (MXU-native, half the DMA & VMEM).
        "wqkv": wqkv.astype(bf16), "bqkv": zeros((L, 1, 3 * H)),
        "wo": w((L, H, H)).astype(bf16), "bo": zeros((L, 1, H)),
        "ln1_g": ones((L, 1, H)), "ln1_b": zeros((L, 1, H)),
        "wi": w((L, H, I)).astype(bf16), "bi": zeros((L, 1, I)),
        "wf": w((L, I, H)).astype(bf16), "bf": zeros((L, 1, H)),
        "ln2_g": ones((L, 1, H)), "ln2_b": zeros((L, 1, H)),
        "pool_w": w((H, H)), "pool_b": zeros((H,)),
        # conv weight stored PyTorch-style (Cout, Cin, 3, 3)
        "conv_w": w((c["conv_cout"], c["conv_cin"], 3, 3)),
        "conv_b": zeros((c["conv_cout"],)),
        # fc_dep weight rows in PyTorch NCHW (C, H, W) flatten order
        "fc_dep_w": w((c["conv_cout"] * Hp * Wp, c["dep_hidden"])),
        "fc_dep_b": zeros((c["dep_hidden"],)),
        "cls_w": w((H + c["dep_hidden"], c["n_classes"])),
        "cls_b": zeros((c["n_classes"],)),
    }


def depbert_forward(params, input_ids, attention_mask, dep_features):
    c = CFG
    B, S = input_ids.shape
    H = c["hidden"]
    Hd, Wd, Cin, Cout = c["dep_h"], c["dep_w"], c["conv_cin"], c["conv_cout"]
    Hp, Wp = Hd // 2, Wd // 2

    # ---- BERT embeddings (gather is glue), then the fused encoder kernel ----
    emb = (params["word_emb"][input_ids]
           + params["pos_emb"][jnp.arange(S)][None, :, :]
           + params["type_emb"][0][None, None, :])          # token_type_ids = 0
    ext_mask = ((1.0 - attention_mask.astype(jnp.float32)) * -10000.0)[:, None, :]
    pooled_output = bert_encoder(params, emb.reshape(B * S, H), ext_mask, B, S)

    # ---- dependency CNN path (conv+bias+ReLU+maxpool fused in one kernel) ----
    # TODO(synk): at production dep-map sizes (2x128x128), move the im2col/pool
    # grouping into the kernel (9 shifted matmul accumulations over an
    # HBM-resident input) instead of materializing the 9x patches array here.
    x = jnp.transpose(dep_features, (0, 2, 3, 1))            # (B, Hd, Wd, Cin)
    xp = jnp.pad(x, ((0, 0), (1, 1), (1, 1), (0, 0)))
    patches = jnp.concatenate(
        [xp[:, dy:dy + Hd, dx:dx + Wd, :] for dy in range(3) for dx in range(3)],
        axis=-1)                                             # (B, Hd, Wd, 9*Cin)
    groups = jnp.stack(
        [patches[:, py::2, px::2, :].reshape(B * Hp * Wp, 9 * Cin)
         for py in range(2) for px in range(2)], axis=0)     # (4, B*Hp*Wp, 9*Cin)
    w_mat = params["conv_w"].transpose(2, 3, 1, 0).reshape(9 * Cin, Cout)
    pooled_feat = conv_relu_pool(groups, w_mat, params["conv_b"])

    # flatten in PyTorch NCHW (C, H, W) order to match `.view(B, -1)`
    dep_flat = jnp.transpose(pooled_feat.reshape(B, Hp, Wp, Cout),
                             (0, 3, 1, 2)).reshape(B, Cout * Hp * Wp)

    # ---- K-tiled fc_dep + ReLU + classifier + softmax kernel ----
    return dep_head(dep_flat, params["fc_dep_w"], params["fc_dep_b"],
                    pooled_output, params["cls_w"], params["cls_b"])


# ----------------------------------------------------------------------------

if __name__ == "__main__":
    key = jax.random.PRNGKey(0)
    k_par, k_ids, k_dep = jax.random.split(key, 3)

    params = init_params(k_par)

    B, S = 2, 8
    input_ids = jax.random.randint(k_ids, (B, S), 0, CFG["vocab"], dtype=jnp.int32)
    attention_mask = jnp.array([[1] * S, [1] * 5 + [0] * 3], dtype=jnp.int32)
    dep_features = jax.random.normal(
        k_dep, (B, CFG["conv_cin"], CFG["dep_h"], CFG["dep_w"]), dtype=jnp.float32)

    fwd = jax.jit(depbert_forward)
    probs = jax.block_until_ready(fwd(params, input_ids, attention_mask,
                                      dep_features))

    assert probs.shape == (B, CFG["n_classes"])
    assert bool(jnp.all(jnp.abs(jnp.sum(probs, axis=1) - 1.0) < 1e-4))
    print("KERNEL_OK")
</pallas_src>

<mosaic_0001>
module attributes {stable_mosaic.version = 11 : i64} {
  func.func @_conv_pool_kernel(%arg0: i32, %arg1: memref<4x128x18xf32, #tpu.memory_space<vmem>>, %arg2: memref<18x16xf32, #tpu.memory_space<vmem>>, %arg3: memref<1x16xf32, #tpu.memory_space<vmem>>, %arg4: memref<128x16xf32, #tpu.memory_space<vmem>>) attributes {dimension_semantics = [#tpu.dimension_semantics<arbitrary>], iteration_bounds = array<i64: 1>, scalar_prefetch = 0 : i64, scratch_operands = 0 : i64, tpu.core_type = #tpu.core_type<tc>, window_params = [{pipeline_mode = #tpu.pipeline_mode<synchronous>, transform_indices = @transform_0, window_bounds = array<i64: 4, 128, 18>}, {pipeline_mode = #tpu.pipeline_mode<synchronous>, transform_indices = @transform_1, window_bounds = array<i64: 18, 16>}, {pipeline_mode = #tpu.pipeline_mode<synchronous>, transform_indices = @transform_2, window_bounds = array<i64: 1, 16>}, {pipeline_mode = #tpu.pipeline_mode<synchronous>, transform_indices = @transform_3, window_bounds = array<i64: 128, 16>}]} {
    %c0 = arith.constant 0 : index
    %c0_0 = arith.constant 0 : index
    %c0_1 = arith.constant 0 : index
    %0 = vector.load %arg1[%c0, %c0_0, %c0_1] : memref<4x128x18xf32, #tpu.memory_space<vmem>>, vector<4x128x18xf32>
    %1 = vector.shape_cast %0 : vector<4x128x18xf32> to vector<512x18xf32>
    %c0_2 = arith.constant 0 : index
    %c0_3 = arith.constant 0 : index
    %2 = vector.load %arg2[%c0_2, %c0_3] : memref<18x16xf32, #tpu.memory_space<vmem>>, vector<18x16xf32>
    %cst = arith.constant dense<0.000000e+00> : vector<512x16xf32>
    %3 = tpu.matmul %1, %2, %cst {dimension_numbers = #tpu.dot_dimension_numbers<[1], [0], [0], [1], [0, 0, 1, 1], [], []>} : vector<512x18xf32>, vector<18x16xf32>, vector<512x16xf32> -> vector<512x16xf32>
    %c0_4 = arith.constant 0 : index
    %c0_5 = arith.constant 0 : index
    %4 = vector.load %arg3[%c0_4, %c0_5] : memref<1x16xf32, #tpu.memory_space<vmem>>, vector<1x16xf32>
    %5 = vector.broadcast %4 : vector<1x16xf32> to vector<512x16xf32>
    %6 = arith.addf %3, %5 : vector<512x16xf32>
    %cst_6 = arith.constant 0.000000e+00 : f32
    %7 = vector.broadcast %cst_6 : f32 to vector<512x16xf32>
    %8 = arith.maximumf %6, %7 : vector<512x16xf32>
    %9 = vector.shape_cast %8 : vector<512x16xf32> to vector<4x128x16xf32>
    %10 = vector.extract_strided_slice %9 {offsets = [0, 0, 0], sizes = [1, 128, 16], strides = [1, 1, 1]} : vector<4x128x16xf32> to vector<1x128x16xf32>
    %11 = vector.shape_cast %10 : vector<1x128x16xf32> to vector<128x16xf32>
    %12 = vector.extract_strided_slice %9 {offsets = [1, 0, 0], sizes = [1, 128, 16], strides = [1, 1, 1]} : vector<4x128x16xf32> to vector<1x128x16xf32>
    %13 = vector.shape_cast %12 : vector<1x128x16xf32> to vector<128x16xf32>
    %14 = arith.maximumf %11, %13 : vector<128x16xf32>
    %15 = vector.extract_strided_slice %9 {offsets = [2, 0, 0], sizes = [1, 128, 16], strides = [1, 1, 1]} : vector<4x128x16xf32> to vector<1x128x16xf32>
    %16 = vector.shape_cast %15 : vector<1x128x16xf32> to vector<128x16xf32>
    %17 = arith.maximumf %14, %16 : vector<128x16xf32>
    %18 = vector.extract_strided_slice %9 {offsets = [3, 0, 0], sizes = [1, 128, 16], strides = [1, 1, 1]} : vector<4x128x16xf32> to vector<1x128x16xf32>
    %19 = vector.shape_cast %18 : vector<1x128x16xf32> to vector<128x16xf32>
    %20 = arith.maximumf %17, %19 : vector<128x16xf32>
    %c0_7 = arith.constant 0 : index
    %c0_8 = arith.constant 0 : index
    %21 = vector.load %arg4[%c0_7, %c0_8] : memref<128x16xf32, #tpu.memory_space<vmem>>, vector<128x16xf32>
    tpu.vector_store %arg4[%c0_7, %c0_8], %20 {strides = array<i32>} : memref<128x16xf32, #tpu.memory_space<vmem>>, vector<128x16xf32>,
    return
  }
  func.func @transform_0(%arg0: i32) -> (i32, i32, i32) {
    %c0_i32 = arith.constant 0 : i32
    %c0_i32_0 = arith.constant 0 : i32
    %c0_i32_1 = arith.constant 0 : i32
    %c0_i32_2 = arith.constant 0 : i32
    return %c0_i32, %c0_i32_0, %c0_i32_1 : i32, i32, i32
  }
  func.func @transform_1(%arg0: i32) -> (i32, i32) {
    %c0_i32 = arith.constant 0 : i32
    %c0_i32_0 = arith.constant 0 : i32
    %c0_i32_1 = arith.constant 0 : i32
    return %c0_i32, %c0_i32_0 : i32, i32
  }
  func.func @transform_2(%arg0: i32) -> (i32, i32) {
    %c0_i32 = arith.constant 0 : i32
    %c0_i32_0 = arith.constant 0 : i32
    %c0_i32_1 = arith.constant 0 : i32
    return %c0_i32, %c0_i32_0 : i32, i32
  }
  func.func @transform_3(%arg0: i32) -> (i32, i32) {
    %c0_i32 = arith.constant 0 : i32
    %c0_i32_0 = arith.constant 0 : i32
    %c0_i32_1 = arith.constant 0 : i32
    return %c0_i32, %c0_i32_0 : i32, i32
  }
}

module attributes {stable_mosaic.version = 11 : i64} {
  func.func @_head_kernel(%arg0: i32, %arg1: memref<2x512xf32, #tpu.memory_space<vmem>>, %arg2: memref<512x128xf32, #tpu.memory_space<vmem>>, %arg3: memref<1x128xf32, #tpu.memory_space<vmem>>, %arg4: memref<2x32xf32, #tpu.memory_space<vmem>>, %arg5: memref<32x5xf32, #tpu.memory_space<vmem>>, %arg6: memref<128x5xf32, #tpu.memory_space<vmem>>, %arg7: memref<1x5xf32, #tpu.memory_space<vmem>>, %arg8: memref<2x5xf32, #tpu.memory_space<vmem>>, %arg9: memref<2x128xf32, #tpu.memory_space<vmem>>) attributes {dimension_semantics = [#tpu.dimension_semantics<arbitrary>], iteration_bounds = array<i64: 2>, scalar_prefetch = 0 : i64, scratch_operands = 1 : i64, tpu.core_type = #tpu.core_type<tc>, window_params = [{transform_indices = @transform_0, window_bounds = array<i64: 2, 512>}, {transform_indices = @transform_1, window_bounds = array<i64: 512, 128>}, {pipeline_mode = #tpu.pipeline_mode<synchronous>, transform_indices = @transform_2, window_bounds = array<i64: 1, 128>}, {pipeline_mode = #tpu.pipeline_mode<synchronous>, transform_indices = @transform_3, window_bounds = array<i64: 2, 32>}, {pipeline_mode = #tpu.pipeline_mode<synchronous>, transform_indices = @transform_4, window_bounds = array<i64: 32, 5>}, {pipeline_mode = #tpu.pipeline_mode<synchronous>, transform_indices = @transform_5, window_bounds = array<i64: 128, 5>}, {pipeline_mode = #tpu.pipeline_mode<synchronous>, transform_indices = @transform_6, window_bounds = array<i64: 1, 5>}, {pipeline_mode = #tpu.pipeline_mode<synchronous>, transform_indices = @transform_7, window_bounds = array<i64: 2, 5>}]} {
    %c0_i32 = arith.constant 0 : i32
    %0 = arith.cmpi eq, %arg0, %c0_i32 : i32
    %1 = arith.extui %0 : i1 to i32
    %c0_i32_0 = arith.constant 0 : i32
    %2 = arith.cmpi ne, %1, %c0_i32_0 : i32
    scf.if %2 {
      %cst_9 = arith.constant 0.000000e+00 : f32
      %12 = vector.broadcast %cst_9 : f32 to vector<2x128xf32>
      %c0_10 = arith.constant 0 : index
      %c0_11 = arith.constant 0 : index
      %13 = vector.load %arg9[%c0_10, %c0_11] : memref<2x128xf32, #tpu.memory_space<vmem>>, vector<2x128xf32>
      tpu.vector_store %arg9[%c0_10, %c0_11], %12 {strides = array<i32>} : memref<2x128xf32, #tpu.memory_space<vmem>>, vector<2x128xf32>,
    } else {
    }
    %c0 = arith.constant 0 : index
    %c0_1 = arith.constant 0 : index
    %3 = vector.load %arg9[%c0, %c0_1] : memref<2x128xf32, #tpu.memory_space<vmem>>, vector<2x128xf32>
    %c0_2 = arith.constant 0 : index
    %c0_3 = arith.constant 0 : index
    %4 = vector.load %arg1[%c0_2, %c0_3] : memref<2x512xf32, #tpu.memory_space<vmem>>, vector<2x512xf32>
    %c0_4 = arith.constant 0 : index
    %c0_5 = arith.constant 0 : index
    %5 = vector.load %arg2[%c0_4, %c0_5] : memref<512x128xf32, #tpu.memory_space<vmem>>, vector<512x128xf32>
    %cst = arith.constant dense<0.000000e+00> : vector<2x128xf32>
    %6 = tpu.matmul %4, %5, %cst {dimension_numbers = #tpu.dot_dimension_numbers<[1], [0], [0], [1], [0, 0, 1, 1], [], []>} : vector<2x512xf32>, vector<512x128xf32>, vector<2x128xf32> -> vector<2x128xf32>
    %7 = arith.addf %3, %6 : vector<2x128xf32>
    %c0_6 = arith.constant 0 : index
    %c0_7 = arith.constant 0 : index
    %8 = vector.load %arg9[%c0_6, %c0_7] : memref<2x128xf32, #tpu.memory_space<vmem>>, vector<2x128xf32>
    tpu.vector_store %arg9[%c0_6, %c0_7], %7 {strides = array<i32>} : memref<2x128xf32, #tpu.memory_space<vmem>>, vector<2x128xf32>,
    %c1_i32 = arith.constant 1 : i32
    %9 = arith.cmpi eq, %arg0, %c1_i32 : i32
    %10 = arith.extui %9 : i1 to i32
    %c0_i32_8 = arith.constant 0 : i32
    %11 = arith.cmpi ne, %10, %c0_i32_8 : i32
    scf.if %11 {
      %c0_9 = arith.constant 0 : index
      %c0_10 = arith.constant 0 : index
      %12 = vector.load %arg9[%c0_9, %c0_10] : memref<2x128xf32, #tpu.memory_space<vmem>>, vector<2x128xf32>
      %c0_11 = arith.constant 0 : index
      %c0_12 = arith.constant 0 : index
      %13 = vector.load %arg3[%c0_11, %c0_12] : memref<1x128xf32, #tpu.memory_space<vmem>>, vector<1x128xf32>
      %14 = vector.broadcast %13 : vector<1x128xf32> to vector<2x128xf32>
      %15 = arith.addf %12, %14 : vector<2x128xf32>
      %cst_13 = arith.constant 0.000000e+00 : f32
      %16 = vector.broadcast %cst_13 : f32 to vector<2x128xf32>
      %17 = arith.maximumf %15, %16 : vector<2x128xf32>
      %c0_14 = arith.constant 0 : index
      %c0_15 = arith.constant 0 : index
      %18 = vector.load %arg4[%c0_14, %c0_15] : memref<2x32xf32, #tpu.memory_space<vmem>>, vector<2x32xf32>
      %c0_16 = arith.constant 0 : index
      %c0_17 = arith.constant 0 : index
      %19 = vector.load %arg5[%c0_16, %c0_17] : memref<32x5xf32, #tpu.memory_space<vmem>>, vector<32x5xf32>
      %cst_18 = arith.constant dense<0.000000e+00> : vector<2x5xf32>
      %20 = tpu.matmul %18, %19, %cst_18 {dimension_numbers = #tpu.dot_dimension_numbers<[1], [0], [0], [1], [0, 0, 1, 1], [], []>} : vector<2x32xf32>, vector<32x5xf32>, vector<2x5xf32> -> vector<2x5xf32>
      %c0_19 = arith.constant 0 : index
      %c0_20 = arith.constant 0 : index
      %21 = vector.load %arg6[%c0_19, %c0_20] : memref<128x5xf32, #tpu.memory_space<vmem>>, vector<128x5xf32>
      %cst_21 = arith.constant dense<0.000000e+00> : vector<2x5xf32>
      %22 = tpu.matmul %17, %21, %cst_21 {dimension_numbers = #tpu.dot_dimension_numbers<[1], [0], [0], [1], [0, 0, 1, 1], [], []>} : vector<2x128xf32>, vector<128x5xf32>, vector<2x5xf32> -> vector<2x5xf32>
      %23 = arith.addf %20, %22 : vector<2x5xf32>
      %c0_22 = arith.constant 0 : index
      %c0_23 = arith.constant 0 : index
      %24 = vector.load %arg7[%c0_22, %c0_23] : memref<1x5xf32, #tpu.memory_space<vmem>>, vector<1x5xf32>
      %25 = vector.broadcast %24 : vector<1x5xf32> to vector<2x5xf32>
      %26 = arith.addf %23, %25 : vector<2x5xf32>
      %cst_24 = arith.constant dense<0xFF800000> : vector<2xf32>
      %27 = vector.multi_reduction <maximumf>, %26, %cst_24 [1] : vector<2x5xf32> to vector<2xf32>
      %28 = vector.shape_cast %27 : vector<2xf32> to vector<2x1xf32>
      %29 = vector.broadcast %28 : vector<2x1xf32> to vector<2x5xf32>
      %30 = arith.subf %26, %29 : vector<2x5xf32>
      %31 = math.exp %30 : vector<2x5xf32>
      %cst_25 = arith.constant dense<0.000000e+00> : vector<2xf32>
      %32 = vector.multi_reduction <add>, %31, %cst_25 [1] : vector<2x5xf32> to vector<2xf32>
      %33 = vector.shape_cast %32 : vector<2xf32> to vector<2x1xf32>
      %34 = vector.broadcast %33 : vector<2x1xf32> to vector<2x5xf32>
      %35 = arith.divf %31, %34 : vector<2x5xf32>
      %c0_26 = arith.constant 0 : index
      %c0_27 = arith.constant 0 : index
      %36 = vector.load %arg8[%c0_26, %c0_27] : memref<2x5xf32, #tpu.memory_space<vmem>>, vector<2x5xf32>
      tpu.vector_store %arg8[%c0_26, %c0_27], %35 {strides = array<i32>} : memref<2x5xf32, #tpu.memory_space<vmem>>, vector<2x5xf32>,
    } else {
    }
    return
  }
  func.func @transform_0(%arg0: i32) -> (i32, i32) {
    %c0_i32 = arith.constant 0 : i32
    %c0_i32_0 = arith.constant 0 : i32
    return %c0_i32, %arg0 : i32, i32
  }
  func.func @transform_1(%arg0: i32) -> (i32, i32) {
    %c0_i32 = arith.constant 0 : i32
    %c0_i32_0 = arith.constant 0 : i32
    return %arg0, %c0_i32 : i32, i32
  }
  func.func @transform_2(%arg0: i32) -> (i32, i32) {
    %c0_i32 = arith.constant 0 : i32
    %c0_i32_0 = arith.constant 0 : i32
    %c0_i32_1 = arith.constant 0 : i32
    return %c0_i32, %c0_i32_0 : i32, i32
  }
  func.func @transform_3(%arg0: i32) -> (i32, i32) {
    %c0_i32 = arith.constant 0 : i32
    %c0_i32_0 = arith.constant 0 : i32
    %c0_i32_1 = arith.constant 0 : i32
    return %c0_i32, %c0_i32_0 : i32, i32
  }
  func.func @transform_4(%arg0: i32) -> (i32, i32) {
    %c0_i32 = arith.constant 0 : i32
    %c0_i32_0 = arith.constant 0 : i32
    %c0_i32_1 = arith.constant 0 : i32
    return %c0_i32, %c0_i32_0 : i32, i32
  }
  func.func @transform_5(%arg0: i32) -> (i32, i32) {
    %c0_i32 = arith.constant 0 : i32
    %c0_i32_0 = arith.constant 0 : i32
    %c0_i32_1 = arith.constant 0 : i32
    return %c0_i32, %c0_i32_0 : i32, i32
  }
  func.func @transform_6(%arg0: i32) -> (i32, i32) {
    %c0_i32 = arith.constant 0 : i32
    %c0_i32_0 = arith.constant 0 : i32
    %c0_i32_1 = arith.constant 0 : i32
    return %c0_i32, %c0_i32_0 : i32, i32
  }
  func.func @transform_7(%arg0: i32) -> (i32, i32) {
    %c0_i32 = arith.constant 0 : i32
    %c0_i32_0 = arith.constant 0 : i32
    %c0_i32_1 = arith.constant 0 : i32
    return %c0_i32, %c0_i32_0 : i32, i32
  }
}

module attributes {stable_mosaic.version = 11 : i64} {
  func.func @_encoder_kernel(%arg0: i32, %arg1: i32, %arg2: memref<16x32xf32, #tpu.memory_space<any>>, %arg3: memref<2x1x8xf32, #tpu.memory_space<vmem>>, %arg4: memref<1x32xf32, #tpu.memory_space<vmem>>, %arg5: memref<1x32xf32, #tpu.memory_space<vmem>>, %arg6: memref<1x32x96xbf16, #tpu.memory_space<vmem>>, %arg7: memref<1x1x96xf32, #tpu.memory_space<vmem>>, %arg8: memref<1x32x32xbf16, #tpu.memory_space<vmem>>, %arg9: memref<1x1x32xf32, #tpu.memory_space<vmem>>, %arg10: memref<1x1x32xf32, #tpu.memory_space<vmem>>, %arg11: memref<1x1x32xf32, #tpu.memory_space<vmem>>, %arg12: memref<1x32x64xbf16, #tpu.memory_space<vmem>>, %arg13: memref<1x1x64xf32, #tpu.memory_space<vmem>>, %arg14: memref<1x64x32xbf16, #tpu.memory_space<vmem>>, %arg15: memref<1x1x32xf32, #tpu.memory_space<vmem>>, %arg16: memref<1x1x32xf32, #tpu.memory_space<vmem>>, %arg17: memref<1x1x32xf32, #tpu.memory_space<vmem>>, %arg18: memref<32x32xf32, #tpu.memory_space<vmem>>, %arg19: memref<1x32xf32, #tpu.memory_space<vmem>>, %arg20: memref<2x32xf32, #tpu.memory_space<vmem>>, %arg21: memref<16x32xf32, #tpu.memory_space<vmem>>, %arg22: memref<!tpu.dma_semaphore, #tpu.memory_space<semaphore_mem>>) attributes {dimension_semantics = [#tpu.dimension_semantics<parallel>, #tpu.dimension_semantics<arbitrary>], iteration_bounds = array<i64: 1, 2>, scalar_prefetch = 0 : i64, scratch_operands = 2 : i64, tpu.core_type = #tpu.core_type<tc>, window_params = [{}, {transform_indices = @transform_1, window_bounds = array<i64: 2, 1, 8>}, {pipeline_mode = #tpu.pipeline_mode<synchronous>, transform_indices = @transform_2, window_bounds = array<i64: 1, 32>}, {pipeline_mode = #tpu.pipeline_mode<synchronous>, transform_indices = @transform_3, window_bounds = array<i64: 1, 32>}, {transform_indices = @transform_4, window_bounds = array<i64: 1, 32, 96>}, {transform_indices = @transform_5, window_bounds = array<i64: 1, 1, 96>}, {transform_indices = @transform_6, window_bounds = array<i64: 1, 32, 32>}, {transform_indices = @transform_7, window_bounds = array<i64: 1, 1, 32>}, {transform_indices = @transform_8, window_bounds = array<i64: 1, 1, 32>}, {transform_indices = @transform_9, window_bounds = array<i64: 1, 1, 32>}, {transform_indices = @transform_10, window_bounds = array<i64: 1, 32, 64>}, {transform_indices = @transform_11, window_bounds = array<i64: 1, 1, 64>}, {transform_indices = @transform_12, window_bounds = array<i64: 1, 64, 32>}, {transform_indices = @transform_13, window_bounds = array<i64: 1, 1, 32>}, {transform_indices = @transform_14, window_bounds = array<i64: 1, 1, 32>}, {transform_indices = @transform_15, window_bounds = array<i64: 1, 1, 32>}, {pipeline_mode = #tpu.pipeline_mode<synchronous>, transform_indices = @transform_16, window_bounds = array<i64: 32, 32>}, {pipeline_mode = #tpu.pipeline_mode<synchronous>, transform_indices = @transform_17, window_bounds = array<i64: 1, 32>}, {transform_indices = @transform_18, window_bounds = array<i64: 2, 32>}]} {
    %c0_i32 = arith.constant 0 : i32
    %0 = arith.cmpi eq, %arg1, %c0_i32 : i32
    %1 = arith.extui %0 : i1 to i32
    %c0_i32_0 = arith.constant 0 : i32
    %2 = arith.cmpi ne, %1, %c0_i32_0 : i32
    scf.if %2 {
      %c16_i32 = arith.constant 16 : i32
      %155 = arith.muli %arg0, %c16_i32 : i32
      %c0_i32_69 = arith.constant 0 : i32
      %156 = tpu.memref_slice %arg2[%155, %c0_i32_69] : memref<16x32xf32, #tpu.memory_space<any>> -> memref<16x32xf32, #tpu.memory_space<any>>
      tpu.enqueue_dma source(%156 : memref<16x32xf32, #tpu.memory_space<any>>) target(%arg21 : memref<16x32xf32, #tpu.memory_space<vmem>>) target_semaphore(%arg22 : memref<!tpu.dma_semaphore, #tpu.memory_space<semaphore_mem>>)
      %c0_i32_70 = arith.constant 0 : i32
      %157 = tpu.memref_slice %arg2[%155, %c0_i32_70] : memref<16x32xf32, #tpu.memory_space<any>> -> memref<16x32xf32, #tpu.memory_space<any>>
      tpu.wait_dma2 semaphore(%arg22 : memref<!tpu.dma_semaphore, #tpu.memory_space<semaphore_mem>>) src(%157 : memref<16x32xf32, #tpu.memory_space<any>>) dst(%arg21 : memref<16x32xf32, #tpu.memory_space<vmem>>)
      %c0_71 = arith.constant 0 : index
      %c0_72 = arith.constant 0 : index
      %158 = vector.load %arg21[%c0_71, %c0_72] : memref<16x32xf32, #tpu.memory_space<vmem>>, vector<16x32xf32>
      %c0_73 = arith.constant 0 : index
      %c0_74 = arith.constant 0 : index
      %159 = vector.load %arg4[%c0_73, %c0_74] : memref<1x32xf32, #tpu.memory_space<vmem>>, vector<1x32xf32>
      %c0_75 = arith.constant 0 : index
      %c0_76 = arith.constant 0 : index
      %160 = vector.load %arg5[%c0_75, %c0_76] : memref<1x32xf32, #tpu.memory_space<vmem>>, vector<1x32xf32>
      %cst_77 = arith.constant dense<0.000000e+00> : vector<16xf32>
      %161 = vector.multi_reduction <add>, %158, %cst_77 [1] : vector<16x32xf32> to vector<16xf32>
      %162 = vector.shape_cast %161 : vector<16xf32> to vector<16x1xf32>
      %cst_78 = arith.constant 3.200000e+01 : f32
      %163 = vector.broadcast %cst_78 : f32 to vector<16x1xf32>
      %164 = arith.divf %162, %163 : vector<16x1xf32>
      %165 = vector.broadcast %164 : vector<16x1xf32> to vector<16x32xf32>
      %166 = arith.subf %158, %165 : vector<16x32xf32>
      %167 = arith.mulf %166, %166 : vector<16x32xf32>
      %cst_79 = arith.constant dense<0.000000e+00> : vector<16xf32>
      %168 = vector.multi_reduction <add>, %167, %cst_79 [1] : vector<16x32xf32> to vector<16xf32>
      %169 = vector.shape_cast %168 : vector<16xf32> to vector<16x1xf32>
      %cst_80 = arith.constant 3.200000e+01 : f32
      %170 = vector.broadcast %cst_80 : f32 to vector<16x1xf32>
      %171 = arith.divf %169, %170 : vector<16x1xf32>
      %cst_81 = arith.constant 9.99999996E-13 : f32
      %172 = vector.broadcast %cst_81 : f32 to vector<16x1xf32>
      %173 = arith.addf %171, %172 : vector<16x1xf32>
      %174 = math.rsqrt %173 : vector<16x1xf32>
      %175 = vector.broadcast %174 : vector<16x1xf32> to vector<16x32xf32>
      %176 = arith.mulf %166, %175 : vector<16x32xf32>
      %177 = vector.broadcast %159 : vector<1x32xf32> to vector<16x32xf32>
      %178 = arith.mulf %176, %177 : vector<16x32xf32>
      %179 = vector.broadcast %160 : vector<1x32xf32> to vector<16x32xf32>
      %180 = arith.addf %178, %179 : vector<16x32xf32>
      %c0_82 = arith.constant 0 : index
      %c0_83 = arith.constant 0 : index
      %181 = vector.load %arg21[%c0_82, %c0_83] : memref<16x32xf32, #tpu.memory_space<vmem>>, vector<16x32xf32>
      tpu.vector_store %arg21[%c0_82, %c0_83], %180 {strides = array<i32>} : memref<16x32xf32, #tpu.memory_space<vmem>>, vector<16x32xf32>,
    } else {
    }
    %c0 = arith.constant 0 : index
    %c0_1 = arith.constant 0 : index
    %3 = vector.load %arg21[%c0, %c0_1] : memref<16x32xf32, #tpu.memory_space<vmem>>, vector<16x32xf32>
    %c0_2 = arith.constant 0 : index
    %c0_3 = arith.constant 0 : index
    %c0_4 = arith.constant 0 : index
    %4 = vector.load %arg3[%c0_2, %c0_3, %c0_4] : memref<2x1x8xf32, #tpu.memory_space<vmem>>, vector<2x1x8xf32>
    %5 = arith.truncf %3 : vector<16x32xf32> to vector<16x32xbf16>
    %c0_5 = arith.constant 0 : index
    %c0_6 = arith.constant 0 : index
    %c0_7 = arith.constant 0 : index
    %6 = vector.load %arg6[%c0_5, %c0_6, %c0_7] : memref<1x32x96xbf16, #tpu.memory_space<vmem>>, vector<1x32x96xbf16>
    %7 = vector.shape_cast %6 : vector<1x32x96xbf16> to vector<32x96xbf16>
    %cst = arith.constant dense<0.000000e+00> : vector<16x96xf32>
    %8 = tpu.matmul %5, %7, %cst {dimension_numbers = #tpu.dot_dimension_numbers<[1], [0], [0], [1], [0, 0, 1, 1], [], []>} : vector<16x32xbf16>, vector<32x96xbf16>, vector<16x96xf32> -> vector<16x96xf32>
    %c0_8 = arith.constant 0 : index
    %c0_9 = arith.constant 0 : index
    %c0_10 = arith.constant 0 : index
    %9 = vector.load %arg7[%c0_8, %c0_9, %c0_10] : memref<1x1x96xf32, #tpu.memory_space<vmem>>, vector<1x1x96xf32>
    %10 = vector.shape_cast %9 : vector<1x1x96xf32> to vector<1x96xf32>
    %11 = vector.broadcast %10 : vector<1x96xf32> to vector<16x96xf32>
    %12 = arith.addf %8, %11 : vector<16x96xf32>
    %13 = vector.extract_strided_slice %12 {offsets = [0, 0], sizes = [16, 16], strides = [1, 1]} : vector<16x96xf32> to vector<16x16xf32>
    %14 = vector.shape_cast %13 : vector<16x16xf32> to vector<2x8x16xf32>
    %15 = arith.truncf %14 : vector<2x8x16xf32> to vector<2x8x16xbf16>
    %16 = vector.extract_strided_slice %12 {offsets = [0, 32], sizes = [16, 16], strides = [1, 1]} : vector<16x96xf32> to vector<16x16xf32>
    %17 = vector.shape_cast %16 : vector<16x16xf32> to vector<2x8x16xf32>
    %18 = arith.truncf %17 : vector<2x8x16xf32> to vector<2x8x16xbf16>
    %19 = vector.extract_strided_slice %12 {offsets = [0, 64], sizes = [16, 16], strides = [1, 1]} : vector<16x96xf32> to vector<16x16xf32>
    %20 = vector.shape_cast %19 : vector<16x16xf32> to vector<2x8x16xf32>
    %21 = arith.truncf %20 : vector<2x8x16xf32> to vector<2x8x16xbf16>
    "tpu.trace_start"() <{level = 10 : i32, message = "bqd,bkd->bqk"}> : () -> ()
    %cst_11 = arith.constant dense<0.000000e+00> : vector<2x8x8xf32>
    %22 = tpu.matmul %15, %18, %cst_11 {dimension_numbers = #tpu.dot_dimension_numbers<[2], [2], [1], [1], [0, 0, 0, 1, 1, 1], [0], [0]>} : vector<2x8x16xbf16>, vector<2x8x16xbf16>, vector<2x8x8xf32> -> vector<2x8x8xf32>
    "tpu.trace_stop"() : () -> ()
    %23 = vector.broadcast %4 : vector<2x1x8xf32> to vector<2x8x8xf32>
    %24 = arith.addf %22, %23 : vector<2x8x8xf32>
    %cst_12 = arith.constant dense<0xFF800000> : vector<2x8xf32>
    %25 = vector.multi_reduction <maximumf>, %24, %cst_12 [2] : vector<2x8x8xf32> to vector<2x8xf32>
    %26 = vector.shape_cast %25 : vector<2x8xf32> to vector<2x8x1xf32>
    %27 = vector.broadcast %26 : vector<2x8x1xf32> to vector<2x8x8xf32>
    %28 = arith.subf %24, %27 : vector<2x8x8xf32>
    %29 = math.exp %28 : vector<2x8x8xf32>
    %cst_13 = arith.constant dense<0.000000e+00> : vector<2x8xf32>
    %30 = vector.multi_reduction <add>, %29, %cst_13 [2] : vector<2x8x8xf32> to vector<2x8xf32>
    %31 = vector.shape_cast %30 : vector<2x8xf32> to vector<2x8x1xf32>
    %32 = tpu.reciprocal %31 {approx = true} : vector<2x8x1xf32> -> vector<2x8x1xf32>
    %33 = vector.broadcast %32 : vector<2x8x1xf32> to vector<2x8x8xf32>
    %34 = arith.mulf %29, %33 : vector<2x8x8xf32>
    %35 = arith.truncf %34 : vector<2x8x8xf32> to vector<2x8x8xbf16>
    "tpu.trace_start"() <{level = 10 : i32, message = "bqk,bkd->bqd"}> : () -> ()
    %cst_14 = arith.constant dense<0.000000e+00> : vector<2x8x16xf32>
    %36 = tpu.matmul %35, %21, %cst_14 {dimension_numbers = #tpu.dot_dimension_numbers<[2], [1], [1], [2], [0, 0, 0, 1, 1, 2], [0], [0]>} : vector<2x8x8xbf16>, vector<2x8x16xbf16>, vector<2x8x16xf32> -> vector<2x8x16xf32>
    "tpu.trace_stop"() : () -> ()
    %37 = vector.shape_cast %36 : vector<2x8x16xf32> to vector<16x16xf32>
    %38 = vector.extract_strided_slice %12 {offsets = [0, 16], sizes = [16, 16], strides = [1, 1]} : vector<16x96xf32> to vector<16x16xf32>
    %39 = vector.shape_cast %38 : vector<16x16xf32> to vector<2x8x16xf32>
    %40 = arith.truncf %39 : vector<2x8x16xf32> to vector<2x8x16xbf16>
    %41 = vector.extract_strided_slice %12 {offsets = [0, 48], sizes = [16, 16], strides = [1, 1]} : vector<16x96xf32> to vector<16x16xf32>
    %42 = vector.shape_cast %41 : vector<16x16xf32> to vector<2x8x16xf32>
    %43 = arith.truncf %42 : vector<2x8x16xf32> to vector<2x8x16xbf16>
    %44 = vector.extract_strided_slice %12 {offsets = [0, 80], sizes = [16, 16], strides = [1, 1]} : vector<16x96xf32> to vector<16x16xf32>
    %45 = vector.shape_cast %44 : vector<16x16xf32> to vector<2x8x16xf32>
    %46 = arith.truncf %45 : vector<2x8x16xf32> to vector<2x8x16xbf16>
    "tpu.trace_start"() <{level = 10 : i32, message = "bqd,bkd->bqk"}> : () -> ()
    %cst_15 = arith.constant dense<0.000000e+00> : vector<2x8x8xf32>
    %47 = tpu.matmul %40, %43, %cst_15 {dimension_numbers = #tpu.dot_dimension_numbers<[2], [2], [1], [1], [0, 0, 0, 1, 1, 1], [0], [0]>} : vector<2x8x16xbf16>, vector<2x8x16xbf16>, vector<2x8x8xf32> -> vector<2x8x8xf32>
    "tpu.trace_stop"() : () -> ()
    %48 = vector.broadcast %4 : vector<2x1x8xf32> to vector<2x8x8xf32>
    %49 = arith.addf %47, %48 : vector<2x8x8xf32>
    %cst_16 = arith.constant dense<0xFF800000> : vector<2x8xf32>
    %50 = vector.multi_reduction <maximumf>, %49, %cst_16 [2] : vector<2x8x8xf32> to vector<2x8xf32>
    %51 = vector.shape_cast %50 : vector<2x8xf32> to vector<2x8x1xf32>
    %52 = vector.broadcast %51 : vector<2x8x1xf32> to vector<2x8x8xf32>
    %53 = arith.subf %49, %52 : vector<2x8x8xf32>
    %54 = math.exp %53 : vector<2x8x8xf32>
    %cst_17 = arith.constant dense<0.000000e+00> : vector<2x8xf32>
    %55 = vector.multi_reduction <add>, %54, %cst_17 [2] : vector<2x8x8xf32> to vector<2x8xf32>
    %56 = vector.shape_cast %55 : vector<2x8xf32> to vector<2x8x1xf32>
    %57 = tpu.reciprocal %56 {approx = true} : vector<2x8x1xf32> -> vector<2x8x1xf32>
    %58 = vector.broadcast %57 : vector<2x8x1xf32> to vector<2x8x8xf32>
    %59 = arith.mulf %54, %58 : vector<2x8x8xf32>
    %60 = arith.truncf %59 : vector<2x8x8xf32> to vector<2x8x8xbf16>
    "tpu.trace_start"() <{level = 10 : i32, message = "bqk,bkd->bqd"}> : () -> ()
    %cst_18 = arith.constant dense<0.000000e+00> : vector<2x8x16xf32>
    %61 = tpu.matmul %60, %46, %cst_18 {dimension_numbers = #tpu.dot_dimension_numbers<[2], [1], [1], [2], [0, 0, 0, 1, 1, 2], [0], [0]>} : vector<2x8x8xbf16>, vector<2x8x16xbf16>, vector<2x8x16xf32> -> vector<2x8x16xf32>
    "tpu.trace_stop"() : () -> ()
    %62 = vector.shape_cast %61 : vector<2x8x16xf32> to vector<16x16xf32>
    %63 = tpu.concatenate %37, %62 in 1 : vector<16x16xf32>, vector<16x16xf32> -> vector<16x32xf32>
    %64 = arith.truncf %63 : vector<16x32xf32> to vector<16x32xbf16>
    %c0_19 = arith.constant 0 : index
    %c0_20 = arith.constant 0 : index
    %c0_21 = arith.constant 0 : index
    %65 = vector.load %arg8[%c0_19, %c0_20, %c0_21] : memref<1x32x32xbf16, #tpu.memory_space<vmem>>, vector<1x32x32xbf16>
    %66 = vector.shape_cast %65 : vector<1x32x32xbf16> to vector<32x32xbf16>
    %cst_22 = arith.constant dense<0.000000e+00> : vector<16x32xf32>
    %67 = tpu.matmul %64, %66, %cst_22 {dimension_numbers = #tpu.dot_dimension_numbers<[1], [0], [0], [1], [0, 0, 1, 1], [], []>} : vector<16x32xbf16>, vector<32x32xbf16>, vector<16x32xf32> -> vector<16x32xf32>
    %c0_23 = arith.constant 0 : index
    %c0_24 = arith.constant 0 : index
    %c0_25 = arith.constant 0 : index
    %68 = vector.load %arg9[%c0_23, %c0_24, %c0_25] : memref<1x1x32xf32, #tpu.memory_space<vmem>>, vector<1x1x32xf32>
    %69 = vector.shape_cast %68 : vector<1x1x32xf32> to vector<1x32xf32>
    %70 = vector.broadcast %69 : vector<1x32xf32> to vector<16x32xf32>
    %71 = arith.addf %67, %70 : vector<16x32xf32>
    %72 = arith.addf %71, %3 : vector<16x32xf32>
    %c0_26 = arith.constant 0 : index
    %c0_27 = arith.constant 0 : index
    %c0_28 = arith.constant 0 : index
    %73 = vector.load %arg10[%c0_26, %c0_27, %c0_28] : memref<1x1x32xf32, #tpu.memory_space<vmem>>, vector<1x1x32xf32>
    %74 = vector.shape_cast %73 : vector<1x1x32xf32> to vector<1x32xf32>
    %c0_29 = arith.constant 0 : index
    %c0_30 = arith.constant 0 : index
    %c0_31 = arith.constant 0 : index
    %75 = vector.load %arg11[%c0_29, %c0_30, %c0_31] : memref<1x1x32xf32, #tpu.memory_space<vmem>>, vector<1x1x32xf32>
    %76 = vector.shape_cast %75 : vector<1x1x32xf32> to vector<1x32xf32>
    %cst_32 = arith.constant dense<0.000000e+00> : vector<16xf32>
    %77 = vector.multi_reduction <add>, %72, %cst_32 [1] : vector<16x32xf32> to vector<16xf32>
    %78 = vector.shape_cast %77 : vector<16xf32> to vector<16x1xf32>
    %cst_33 = arith.constant 3.200000e+01 : f32
    %79 = vector.broadcast %cst_33 : f32 to vector<16x1xf32>
    %80 = arith.divf %78, %79 : vector<16x1xf32>
    %81 = vector.broadcast %80 : vector<16x1xf32> to vector<16x32xf32>
    %82 = arith.subf %72, %81 : vector<16x32xf32>
    %83 = arith.mulf %82, %82 : vector<16x32xf32>
    %cst_34 = arith.constant dense<0.000000e+00> : vector<16xf32>
    %84 = vector.multi_reduction <add>, %83, %cst_34 [1] : vector<16x32xf32> to vector<16xf32>
    %85 = vector.shape_cast %84 : vector<16xf32> to vector<16x1xf32>
    %cst_35 = arith.constant 3.200000e+01 : f32
    %86 = vector.broadcast %cst_35 : f32 to vector<16x1xf32>
    %87 = arith.divf %85, %86 : vector<16x1xf32>
    %cst_36 = arith.constant 9.99999996E-13 : f32
    %88 = vector.broadcast %cst_36 : f32 to vector<16x1xf32>
    %89 = arith.addf %87, %88 : vector<16x1xf32>
    %90 = math.rsqrt %89 : vector<16x1xf32>
    %91 = vector.broadcast %90 : vector<16x1xf32> to vector<16x32xf32>
    %92 = arith.mulf %82, %91 : vector<16x32xf32>
    %93 = vector.broadcast %74 : vector<1x32xf32> to vector<16x32xf32>
    %94 = arith.mulf %92, %93 : vector<16x32xf32>
    %95 = vector.broadcast %76 : vector<1x32xf32> to vector<16x32xf32>
    %96 = arith.addf %94, %95 : vector<16x32xf32>
    %97 = arith.truncf %96 : vector<16x32xf32> to vector<16x32xbf16>
    %c0_37 = arith.constant 0 : index
    %c0_38 = arith.constant 0 : index
    %c0_39 = arith.constant 0 : index
    %98 = vector.load %arg12[%c0_37, %c0_38, %c0_39] : memref<1x32x64xbf16, #tpu.memory_space<vmem>>, vector<1x32x64xbf16>
    %99 = vector.shape_cast %98 : vector<1x32x64xbf16> to vector<32x64xbf16>
    %cst_40 = arith.constant dense<0.000000e+00> : vector<16x64xf32>
    %100 = tpu.matmul %97, %99, %cst_40 {dimension_numbers = #tpu.dot_dimension_numbers<[1], [0], [0], [1], [0, 0, 1, 1], [], []>} : vector<16x32xbf16>, vector<32x64xbf16>, vector<16x64xf32> -> vector<16x64xf32>
    %c0_41 = arith.constant 0 : index
    %c0_42 = arith.constant 0 : index
    %c0_43 = arith.constant 0 : index
    %101 = vector.load %arg13[%c0_41, %c0_42, %c0_43] : memref<1x1x64xf32, #tpu.memory_space<vmem>>, vector<1x1x64xf32>
    %102 = vector.shape_cast %101 : vector<1x1x64xf32> to vector<1x64xf32>
    %103 = vector.broadcast %102 : vector<1x64xf32> to vector<16x64xf32>
    %104 = arith.addf %100, %103 : vector<16x64xf32>
    %cst_44 = arith.constant 5.000000e-01 : f32
    %105 = vector.broadcast %cst_44 : f32 to vector<16x64xf32>
    %106 = arith.mulf %105, %104 : vector<16x64xf32>
    %cst_45 = arith.constant 4.471500e-02 : f32
    %107 = vector.broadcast %cst_45 : f32 to vector<16x64xf32>
    %108 = arith.mulf %107, %104 : vector<16x64xf32>
    %109 = arith.mulf %108, %104 : vector<16x64xf32>
    %110 = arith.mulf %109, %104 : vector<16x64xf32>
    %111 = arith.addf %104, %110 : vector<16x64xf32>
    %cst_46 = arith.constant 0.797884583 : f32
    %112 = vector.broadcast %cst_46 : f32 to vector<16x64xf32>
    %113 = arith.mulf %112, %111 : vector<16x64xf32>
    %114 = math.tanh %113 : vector<16x64xf32>
    %cst_47 = arith.constant 1.000000e+00 : f32
    %115 = vector.broadcast %cst_47 : f32 to vector<16x64xf32>
    %116 = arith.addf %115, %114 : vector<16x64xf32>
    %117 = arith.mulf %106, %116 : vector<16x64xf32>
    %118 = arith.truncf %117 : vector<16x64xf32> to vector<16x64xbf16>
    %c0_48 = arith.constant 0 : index
    %c0_49 = arith.constant 0 : index
    %c0_50 = arith.constant 0 : index
    %119 = vector.load %arg14[%c0_48, %c0_49, %c0_50] : memref<1x64x32xbf16, #tpu.memory_space<vmem>>, vector<1x64x32xbf16>
    %120 = vector.shape_cast %119 : vector<1x64x32xbf16> to vector<64x32xbf16>
    %cst_51 = arith.constant dense<0.000000e+00> : vector<16x32xf32>
    %121 = tpu.matmul %118, %120, %cst_51 {dimension_numbers = #tpu.dot_dimension_numbers<[1], [0], [0], [1], [0, 0, 1, 1], [], []>} : vector<16x64xbf16>, vector<64x32xbf16>, vector<16x32xf32> -> vector<16x32xf32>
    %c0_52 = arith.constant 0 : index
    %c0_53 = arith.constant 0 : index
    %c0_54 = arith.constant 0 : index
    %122 = vector.load %arg15[%c0_52, %c0_53, %c0_54] : memref<1x1x32xf32, #tpu.memory_space<vmem>>, vector<1x1x32xf32>
    %123 = vector.shape_cast %122 : vector<1x1x32xf32> to vector<1x32xf32>
    %124 = vector.broadcast %123 : vector<1x32xf32> to vector<16x32xf32>
    %125 = arith.addf %121, %124 : vector<16x32xf32>
    %126 = arith.addf %125, %96 : vector<16x32xf32>
    %c0_55 = arith.constant 0 : index
    %c0_56 = arith.constant 0 : index
    %c0_57 = arith.constant 0 : index
    %127 = vector.load %arg16[%c0_55, %c0_56, %c0_57] : memref<1x1x32xf32, #tpu.memory_space<vmem>>, vector<1x1x32xf32>
    %128 = vector.shape_cast %127 : vector<1x1x32xf32> to vector<1x32xf32>
    %c0_58 = arith.constant 0 : index
    %c0_59 = arith.constant 0 : index
    %c0_60 = arith.constant 0 : index
    %129 = vector.load %arg17[%c0_58, %c0_59, %c0_60] : memref<1x1x32xf32, #tpu.memory_space<vmem>>, vector<1x1x32xf32>
    %130 = vector.shape_cast %129 : vector<1x1x32xf32> to vector<1x32xf32>
    %cst_61 = arith.constant dense<0.000000e+00> : vector<16xf32>
    %131 = vector.multi_reduction <add>, %126, %cst_61 [1] : vector<16x32xf32> to vector<16xf32>
    %132 = vector.shape_cast %131 : vector<16xf32> to vector<16x1xf32>
    %cst_62 = arith.constant 3.200000e+01 : f32
    %133 = vector.broadcast %cst_62 : f32 to vector<16x1xf32>
    %134 = arith.divf %132, %133 : vector<16x1xf32>
    %135 = vector.broadcast %134 : vector<16x1xf32> to vector<16x32xf32>
    %136 = arith.subf %126, %135 : vector<16x32xf32>
    %137 = arith.mulf %136, %136 : vector<16x32xf32>
    %cst_63 = arith.constant dense<0.000000e+00> : vector<16xf32>
    %138 = vector.multi_reduction <add>, %137, %cst_63 [1] : vector<16x32xf32> to vector<16xf32>
    %139 = vector.shape_cast %138 : vector<16xf32> to vector<16x1xf32>
    %cst_64 = arith.constant 3.200000e+01 : f32
    %140 = vector.broadcast %cst_64 : f32 to vector<16x1xf32>
    %141 = arith.divf %139, %140 : vector<16x1xf32>
    %cst_65 = arith.constant 9.99999996E-13 : f32
    %142 = vector.broadcast %cst_65 : f32 to vector<16x1xf32>
    %143 = arith.addf %141, %142 : vector<16x1xf32>
    %144 = math.rsqrt %143 : vector<16x1xf32>
    %145 = vector.broadcast %144 : vector<16x1xf32> to vector<16x32xf32>
    %146 = arith.mulf %136, %145 : vector<16x32xf32>
    %147 = vector.broadcast %128 : vector<1x32xf32> to vector<16x32xf32>
    %148 = arith.mulf %146, %147 : vector<16x32xf32>
    %149 = vector.broadcast %130 : vector<1x32xf32> to vector<16x32xf32>
    %150 = arith.addf %148, %149 : vector<16x32xf32>
    %c0_66 = arith.constant 0 : index
    %c0_67 = arith.constant 0 : index
    %151 = vector.load %arg21[%c0_66, %c0_67] : memref<16x32xf32, #tpu.memory_space<vmem>>, vector<16x32xf32>
    tpu.vector_store %arg21[%c0_66, %c0_67], %150 {strides = array<i32>} : memref<16x32xf32, #tpu.memory_space<vmem>>, vector<16x32xf32>,
    %c1_i32 = arith.constant 1 : i32
    %152 = arith.cmpi eq, %arg1, %c1_i32 : i32
    %153 = arith.extui %152 : i1 to i32
    %c0_i32_68 = arith.constant 0 : i32
    %154 = arith.cmpi ne, %153, %c0_i32_68 : i32
    scf.if %154 {
      %155 = vector.shape_cast %150 : vector<16x32xf32> to vector<2x8x32xf32>
      %156 = vector.extract_strided_slice %155 {offsets = [0, 0, 0], sizes = [2, 1, 32], strides = [1, 1, 1]} : vector<2x8x32xf32> to vector<2x1x32xf32>
      %157 = vector.shape_cast %156 : vector<2x1x32xf32> to vector<2x32xf32>
      %c0_69 = arith.constant 0 : index
      %c0_70 = arith.constant 0 : index
      %158 = vector.load %arg18[%c0_69, %c0_70] : memref<32x32xf32, #tpu.memory_space<vmem>>, vector<32x32xf32>
      %cst_71 = arith.constant dense<0.000000e+00> : vector<2x32xf32>
      %159 = tpu.matmul %157, %158, %cst_71 {dimension_numbers = #tpu.dot_dimension_numbers<[1], [0], [0], [1], [0, 0, 1, 1], [], []>} : vector<2x32xf32>, vector<32x32xf32>, vector<2x32xf32> -> vector<2x32xf32>
      %c0_72 = arith.constant 0 : index
      %c0_73 = arith.constant 0 : index
      %160 = vector.load %arg19[%c0_72, %c0_73] : memref<1x32xf32, #tpu.memory_space<vmem>>, vector<1x32xf32>
      %161 = vector.broadcast %160 : vector<1x32xf32> to vector<2x32xf32>
      %162 = arith.addf %159, %161 : vector<2x32xf32>
      %163 = math.tanh %162 : vector<2x32xf32>
      %c0_74 = arith.constant 0 : index
      %c0_75 = arith.constant 0 : index
      %164 = vector.load %arg20[%c0_74, %c0_75] : memref<2x32xf32, #tpu.memory_space<vmem>>, vector<2x32xf32>
      tpu.vector_store %arg20[%c0_74, %c0_75], %163 {strides = array<i32>} : memref<2x32xf32, #tpu.memory_space<vmem>>, vector<2x32xf32>,
    } else {
    }
    return
  }
  func.func @transform_1(%arg0: i32, %arg1: i32) -> (i32, i32, i32) {
    %c0_i32 = arith.constant 0 : i32
    %c0_i32_0 = arith.constant 0 : i32
    %c0_i32_1 = arith.constant 0 : i32
    return %arg0, %c0_i32, %c0_i32_0 : i32, i32, i32
  }
  func.func @transform_2(%arg0: i32, %arg1: i32) -> (i32, i32) {
    %c0_i32 = arith.constant 0 : i32
    %c0_i32_0 = arith.constant 0 : i32
    %c0_i32_1 = arith.constant 0 : i32
    return %c0_i32, %c0_i32_0 : i32, i32
  }
  func.func @transform_3(%arg0: i32, %arg1: i32) -> (i32, i32) {
    %c0_i32 = arith.constant 0 : i32
    %c0_i32_0 = arith.constant 0 : i32
    %c0_i32_1 = arith.constant 0 : i32
    return %c0_i32, %c0_i32_0 : i32, i32
  }
  func.func @transform_4(%arg0: i32, %arg1: i32) -> (i32, i32, i32) {
    %c0_i32 = arith.constant 0 : i32
    %c0_i32_0 = arith.constant 0 : i32
    %c0_i32_1 = arith.constant 0 : i32
    return %arg1, %c0_i32, %c0_i32_0 : i32, i32, i32
  }
  func.func @transform_5(%arg0: i32, %arg1: i32) -> (i32, i32, i32) {
    %c0_i32 = arith.constant 0 : i32
    %c0_i32_0 = arith.constant 0 : i32
    %c0_i32_1 = arith.constant 0 : i32
    return %arg1, %c0_i32, %c0_i32_0 : i32, i32, i32
  }
  func.func @transform_6(%arg0: i32, %arg1: i32) -> (i32, i32, i32) {
    %c0_i32 = arith.constant 0 : i32
    %c0_i32_0 = arith.constant 0 : i32
    %c0_i32_1 = arith.constant 0 : i32
    return %arg1, %c0_i32, %c0_i32_0 : i32, i32, i32
  }
  func.func @transform_7(%arg0: i32, %arg1: i32) -> (i32, i32, i32) {
    %c0_i32 = arith.constant 0 : i32
    %c0_i32_0 = arith.constant 0 : i32
    %c0_i32_1 = arith.constant 0 : i32
    return %arg1, %c0_i32, %c0_i32_0 : i32, i32, i32
  }
  func.func @transform_8(%arg0: i32, %arg1: i32) -> (i32, i32, i32) {
    %c0_i32 = arith.constant 0 : i32
    %c0_i32_0 = arith.constant 0 : i32
    %c0_i32_1 = arith.constant 0 : i32
    return %arg1, %c0_i32, %c0_i32_0 : i32, i32, i32
  }
  func.func @transform_9(%arg0: i32, %arg1: i32) -> (i32, i32, i32) {
    %c0_i32 = arith.constant 0 : i32
    %c0_i32_0 = arith.constant 0 : i32
    %c0_i32_1 = arith.constant 0 : i32
    return %arg1, %c0_i32, %c0_i32_0 : i32, i32, i32
  }
  func.func @transform_10(%arg0: i32, %arg1: i32) -> (i32, i32, i32) {
    %c0_i32 = arith.constant 0 : i32
    %c0_i32_0 = arith.constant 0 : i32
    %c0_i32_1 = arith.constant 0 : i32
    return %arg1, %c0_i32, %c0_i32_0 : i32, i32, i32
  }
  func.func @transform_11(%arg0: i32, %arg1: i32) -> (i32, i32, i32) {
    %c0_i32 = arith.constant 0 : i32
    %c0_i32_0 = arith.constant 0 : i32
    %c0_i32_1 = arith.constant 0 : i32
    return %arg1, %c0_i32, %c0_i32_0 : i32, i32, i32
  }
  func.func @transform_12(%arg0: i32, %arg1: i32) -> (i32, i32, i32) {
    %c0_i32 = arith.constant 0 : i32
    %c0_i32_0 = arith.constant 0 : i32
    %c0_i32_1 = arith.constant 0 : i32
    return %arg1, %c0_i32, %c0_i32_0 : i32, i32, i32
  }
  func.func @transform_13(%arg0: i32, %arg1: i32) -> (i32, i32, i32) {
    %c0_i32 = arith.constant 0 : i32
    %c0_i32_0 = arith.constant 0 : i32
    %c0_i32_1 = arith.constant 0 : i32
    return %arg1, %c0_i32, %c0_i32_0 : i32, i32, i32
  }
  func.func @transform_14(%arg0: i32, %arg1: i32) -> (i32, i32, i32) {
    %c0_i32 = arith.constant 0 : i32
    %c0_i32_0 = arith.constant 0 : i32
    %c0_i32_1 = arith.constant 0 : i32
    return %arg1, %c0_i32, %c0_i32_0 : i32, i32, i32
  }
  func.func @transform_15(%arg0: i32, %arg1: i32) -> (i32, i32, i32) {
    %c0_i32 = arith.constant 0 : i32
    %c0_i32_0 = arith.constant 0 : i32
    %c0_i32_1 = arith.constant 0 : i32
    return %arg1, %c0_i32, %c0_i32_0 : i32, i32, i32
  }
  func.func @transform_16(%arg0: i32, %arg1: i32) -> (i32, i32) {
    %c0_i32 = arith.constant 0 : i32
    %c0_i32_0 = arith.constant 0 : i32
    %c0_i32_1 = arith.constant 0 : i32
    return %c0_i32, %c0_i32_0 : i32, i32
  }
  func.func @transform_17(%arg0: i32, %arg1: i32) -> (i32, i32) {
    %c0_i32 = arith.constant 0 : i32
    %c0_i32_0 = arith.constant 0 : i32
    %c0_i32_1 = arith.constant 0 : i32
    return %c0_i32, %c0_i32_0 : i32, i32
  }
  func.func @transform_18(%arg0: i32, %arg1: i32) -> (i32, i32) {
    %c0_i32 = arith.constant 0 : i32
    %c0_i32_0 = arith.constant 0 : i32
    return %arg0, %c0_i32 : i32, i32
  }
}

</mosaic_0001>

<llo_original>
// kernel: depbert_forward.5
$region0: #{depbert_forward.5}
  #allocation0 [shape = 'u32[]', space=smem, size = 0x4, offset = 0x4, fixed_abs, tag = 'smem constant byte address 0x4 - core index']
  #allocation1 [shape = 'u32[144,128]{1,0:T(1,128)}', space=vmem, size = 0x12000, scoped, tag = 'internal scratch']
  #allocation2 [shape = 'f32[2,128]{1,0:T(2,128)}', space=vmem, size = 0x400, scoped, tag = 'scratch operand']
  %s0 = inlined_call_operand.vmem [shape: f32[2,1024], index: 0, kind: input, shape index: {}]
  %s1 = inlined_call_operand.vmem [shape: f32[1024,128], index: 1, kind: input, shape index: {}]
  %s2 = inlined_call_operand.vmem [shape: f32[1,128], index: 2, kind: input, shape index: {}]
  %s3 = inlined_call_operand.vmem [shape: f32[2,32], index: 3, kind: input, shape index: {}]
  %s4 = inlined_call_operand.vmem [shape: f32[32,5], index: 4, kind: input, shape index: {}]
  %s5 = inlined_call_operand.vmem [shape: f32[128,5], index: 5, kind: input, shape index: {}]
  %s6 = inlined_call_operand.vmem [shape: f32[1,5], index: 6, kind: input, shape index: {}]
  %s7 = inlined_call_operand.hbm [shape: f32[2,5], index: 7, kind: output, shape index: {}]
  %s8 = sld [smem:[#allocation0]]
  $region69: #{depbert_forward.5} parent=0
    _
  %s10 = ssub.s32 1, %s8
  %s11 = scalar_select 0, %s10, %s8
  $region1: #{depbert_forward.5} parent=0
    #allocation3 [shape = 'u8[1024]{0}', space=vmem, size = 0x400, scoped, tag = 'output window, operand 0, single buffered']
    #allocation4 [shape = 's32[2]{0}', space=sflag, size = 0x8, scoped, tag = 'scoped memory for depbert_forward.5']
    %12 = vsyncpa [#allocation4], 0
    loop: start=0, step=1, limit=4
    $region2: #{depbert_forward.5} parent=1 // loop_pre_header
      _
    $region3: #{depbert_forward.5} parent=1 // loop_header
      %s14 = sphi 0, %s18
      %p15 = scmp.ge.s32.totalorder %s14, 4
      %s24 = sphi 0, %s26
      %s27 = sphi 0, %s24
      %s28 = sphi 0, %s27
      %s44 = sphi 0, %s28
      %s50 = sphi 0, %s52
      %s53 = sphi 0, %s50
      %s54 = sphi 0, %s53
      %s70 = sphi 0, %s54
      %s74 = sphi 0, %s74
      %s76 = sphi 0, %s74
      %s77 = sphi 0, %s76
      %s91 = sphi 0, %s77
      %s95 = sphi 0, %s95
      %s97 = sphi 0, %s95
      %s98 = sphi 0, %s97
      %s112 = sphi 0, %s98
      %s116 = sphi 0, %s116
      %s118 = sphi 0, %s116
      %s119 = sphi 0, %s118
      %s133 = sphi 0, %s119
      %s137 = sphi 0, %s137
      %s139 = sphi 0, %s137
      %s140 = sphi 0, %s139
      %s154 = sphi 0, %s140
      %s158 = sphi 0, %s158
      %s160 = sphi 0, %s158
      %s161 = sphi 0, %s160
      %s175 = sphi 0, %s161
      %s179 = sphi 0, %s179
      %s181 = sphi 0, %s179
      %s182 = sphi 0, %s181
      %s196 = sphi 0, %s182
    $region4: #{depbert_forward.5} parent=1 // loop_header_branch
      %17 = sbr.rel (%p15) target = $region8
    $region5: #{depbert_forward.5} parent=1 // loop_body
      %s19 = ssub.s32 %s14, 1
      %s20 = ssub.s32 %s14, 2
      %s21 = sadd.s32 %s14, 1
      %s22 = ssub.s32 %s14, %s21
      %p23 = scmp.eq.s32.totalorder %s22, 0
      %s25 = sadd.s32 %s24, 1
      %s26 = scalar_select %p23, %s24, %s25
      %p29 = pneg %p23
      %p30 = scmp.eq.s32.totalorder %s14, 1
      %p31 = por %p29, %p30
      %p32 = scmp.ne.s32.totalorder %s24, %s27
      %p33 = scmp.eq.s32.totalorder %s14, 0
      %p34 = por %p32, %p33
      %p35 = scmp.ne.s32.totalorder %s24, %s27
      %p36 = scmp.eq.s32.totalorder %s19, 1
      %p37 = por %p35, %p36
      %p38 = scmp.ne.s32.totalorder %s27, %s28
      %p39 = scmp.eq.s32.totalorder %s19, 0
      %p40 = por %p38, %p39
      %p41 = scmp.ne.s32.totalorder %s27, %s28
      %p42 = scmp.eq.s32.totalorder %s20, 1
      %p43 = por %p41, %p42
      %p45 = scmp.ne.s32.totalorder %s28, %s44
      %p46 = scmp.eq.s32.totalorder %s20, 0
      %p47 = por %p45, %p46
      %s48 = ssub.s32 %s14, %s21
      %p49 = scmp.eq.s32.totalorder %s48, 0
      %s51 = sadd.s32 %s50, 1
      %s52 = scalar_select %p49, %s50, %s51
      %p55 = pneg %p49
      %p56 = scmp.eq.s32.totalorder %s14, 1
      %p57 = por %p55, %p56
      %p58 = scmp.ne.s32.totalorder %s50, %s53
      %p59 = scmp.eq.s32.totalorder %s14, 0
      %p60 = por %p58, %p59
      %p61 = scmp.ne.s32.totalorder %s50, %s53
      %p62 = scmp.eq.s32.totalorder %s19, 1
      %p63 = por %p61, %p62
      %p64 = scmp.ne.s32.totalorder %s53, %s54
      %p65 = scmp.eq.s32.totalorder %s19, 0
      %p66 = por %p64, %p65
      %p67 = scmp.ne.s32.totalorder %s53, %s54
      %p68 = scmp.eq.s32.totalorder %s20, 1
      %p69 = por %p67, %p68
      %p71 = scmp.ne.s32.totalorder %s54, %s70
      %p72 = scmp.eq.s32.totalorder %s20, 0
      %p73 = por %p71, %p72
      %s75 = sadd.s32 %s74, 1
      %p78 = scmp.eq.s32.totalorder %s14, 1
      %p79 = scmp.ne.s32.totalorder %s74, %s76
      %p80 = scmp.eq.s32.totalorder %s14, 0
      %p81 = por %p79, %p80
      %p82 = scmp.ne.s32.totalorder %s74, %s76
      %p83 = scmp.eq.s32.totalorder %s19, 1
      %p84 = por %p82, %p83
      %p85 = scmp.ne.s32.totalorder %s76, %s77
      %p86 = scmp.eq.s32.totalorder %s19, 0
      %p87 = por %p85, %p86
      %p88 = scmp.ne.s32.totalorder %s76, %s77
      %p89 = scmp.eq.s32.totalorder %s20, 1
      %p90 = por %p88, %p89
      %p92 = scmp.ne.s32.totalorder %s77, %s91
      %p93 = scmp.eq.s32.totalorder %s20, 0
      %p94 = por %p92, %p93
      %s96 = sadd.s32 %s95, 1
      %p99 = scmp.eq.s32.totalorder %s14, 1
      %p100 = scmp.ne.s32.totalorder %s95, %s97
      %p101 = scmp.eq.s32.totalorder %s14, 0
      %p102 = por %p100, %p101
      %p103 = scmp.ne.s32.totalorder %s95, %s97
      %p104 = scmp.eq.s32.totalorder %s19, 1
      %p105 = por %p103, %p104
      %p106 = scmp.ne.s32.totalorder %s97, %s98
      %p107 = scmp.eq.s32.totalorder %s19, 0
      %p108 = por %p106, %p107
      %p109 = scmp.ne.s32.totalorder %s97, %s98
      %p110 = scmp.eq.s32.totalorder %s20, 1
      %p111 = por %p109, %p110
      %p113 = scmp.ne.s32.totalorder %s98, %s112
      %p114 = scmp.eq.s32.totalorder %s20, 0
      %p115 = por %p113, %p114
      %s117 = sadd.s32 %s116, 1
      %p120 = scmp.eq.s32.totalorder %s14, 1
      %p121 = scmp.ne.s32.totalorder %s116, %s118
      %p122 = scmp.eq.s32.totalorder %s14, 0
      %p123 = por %p121, %p122
      %p124 = scmp.ne.s32.totalorder %s116, %s118
      %p125 = scmp.eq.s32.totalorder %s19, 1
      %p126 = por %p124, %p125
      %p127 = scmp.ne.s32.totalorder %s118, %s119
      %p128 = scmp.eq.s32.totalorder %s19, 0
      %p129 = por %p127, %p128
      %p130 = scmp.ne.s32.totalorder %s118, %s119
      %p131 = scmp.eq.s32.totalorder %s20, 1
      %p132 = por %p130, %p131
      %p134 = scmp.ne.s32.totalorder %s119, %s133
      %p135 = scmp.eq.s32.totalorder %s20, 0
      %p136 = por %p134, %p135
      %s138 = sadd.s32 %s137, 1
      %p141 = scmp.eq.s32.totalorder %s14, 1
      %p142 = scmp.ne.s32.totalorder %s137, %s139
      %p143 = scmp.eq.s32.totalorder %s14, 0
      %p144 = por %p142, %p143
      %p145 = scmp.ne.s32.totalorder %s137, %s139
      %p146 = scmp.eq.s32.totalorder %s19, 1
      %p147 = por %p145, %p146
      %p148 = scmp.ne.s32.totalorder %s139, %s140
      %p149 = scmp.eq.s32.totalorder %s19, 0
      %p150 = por %p148, %p149
      %p151 = scmp.ne.s32.totalorder %s139, %s140
      %p152 = scmp.eq.s32.totalorder %s20, 1
      %p153 = por %p151, %p152
      %p155 = scmp.ne.s32.totalorder %s140, %s154
      %p156 = scmp.eq.s32.totalorder %s20, 0
      %p157 = por %p155, %p156
      %s159 = sadd.s32 %s158, 1
      %p162 = scmp.eq.s32.totalorder %s14, 1
      %p163 = scmp.ne.s32.totalorder %s158, %s160
      %p164 = scmp.eq.s32.totalorder %s14, 0
      %p165 = por %p163, %p164
      %p166 = scmp.ne.s32.totalorder %s158, %s160
      %p167 = scmp.eq.s32.totalorder %s19, 1
      %p168 = por %p166, %p167
      %p169 = scmp.ne.s32.totalorder %s160, %s161
      %p170 = scmp.eq.s32.totalorder %s19, 0
      %p171 = por %p169, %p170
      %p172 = scmp.ne.s32.totalorder %s160, %s161
      %p173 = scmp.eq.s32.totalorder %s20, 1
      %p174 = por %p172, %p173
      %p176 = scmp.ne.s32.totalorder %s161, %s175
      %p177 = scmp.eq.s32.totalorder %s20, 0
      %p178 = por %p176, %p177
      %s180 = sadd.s32 %s179, 1
      %p183 = scmp.eq.s32.totalorder %s14, 1
      %p184 = scmp.ne.s32.totalorder %s179, %s181
      %p185 = scmp.eq.s32.totalorder %s14, 0
      %p186 = por %p184, %p185
      %p187 = scmp.ne.s32.totalorder %s179, %s181
      %p188 = scmp.eq.s32.totalorder %s19, 1
      %p189 = por %p187, %p188
      %p190 = scmp.ne.s32.totalorder %s181, %s182
      %p191 = scmp.eq.s32.totalorder %s19, 0
      %p192 = por %p190, %p191
      %p193 = scmp.ne.s32.totalorder %s181, %s182
      %p194 = scmp.eq.s32.totalorder %s20, 1
      %p195 = por %p193, %p194
      %p197 = scmp.ne.s32.totalorder %s182, %s196
      %p198 = scmp.eq.s32.totalorder %s20, 0
      %p199 = por %p197, %p198
      %p200 = scmp.le.s32.totalorder 1, %s14
      %p201 = scmp.lt.s32.totalorder %s14, 3
      %p202 = pnand %p200, %p201
      %p203 = pneg %p202
      // Predicated region
      $region9: #{depbert_forward.5} parent=5 // pred_check
        _
      $region10: #{depbert_forward.5} parent=5 // pred_check_branch
        %205 = sbr.rel (%p202) target = $region12
      $region11: #{depbert_forward.5} parent=5 // pred_region
        %s206 = ssub.s32 %s14, 1
        // Predicated region
        $region13: #{depbert_forward.5} parent=11 // pred_check
          %p207 = pneg %p87
        $region14: #{depbert_forward.5} parent=11 // pred_check_branch
          %209 = sbr.rel (%p207) target = $region16
        $region15: #{depbert_forward.5} parent=11 // pred_region
          _
        $region16: #{depbert_forward.5} parent=11 // pred_fallthru
          _
        // Predicated region
        $region17: #{depbert_forward.5} parent=11 // pred_check
          %p210 = pneg %p108
        $region18: #{depbert_forward.5} parent=11 // pred_check_branch
          %212 = sbr.rel (%p210) target = $region20
        $region19: #{depbert_forward.5} parent=11 // pred_region
          _
        $region20: #{depbert_forward.5} parent=11 // pred_fallthru
          _
        // Predicated region
        $region21: #{depbert_forward.5} parent=11 // pred_check
          %p213 = pneg %p129
        $region22: #{depbert_forward.5} parent=11 // pred_check_branch
          %215 = sbr.rel (%p213) target = $region24
        $region23: #{depbert_forward.5} parent=11 // pred_region
          _
        $region24: #{depbert_forward.5} parent=11 // pred_fallthru
          _
        // Predicated region
        $region25: #{depbert_forward.5} parent=11 // pred_check
          %p216 = pneg %p150
        $region26: #{depbert_forward.5} parent=11 // pred_check_branch
          %218 = sbr.rel (%p216) target = $region28
        $region27: #{depbert_forward.5} parent=11 // pred_region
          _
        $region28: #{depbert_forward.5} parent=11 // pred_fallthru
          _
        // Predicated region
        $region29: #{depbert_forward.5} parent=11 // pred_check
          %p219 = pneg %p171
        $region30: #{depbert_forward.5} parent=11 // pred_check_branch
          %221 = sbr.rel (%p219) target = $region32
        $region31: #{depbert_forward.5} parent=11 // pred_region
          _
        $region32: #{depbert_forward.5} parent=11 // pred_fallthru
          _
      $region12: #{depbert_forward.5} parent=5 // pred_fallthru
        _
      %p222 = scmp.lt.s32.totalorder %s14, 2
      // Predicated region
      $region33: #{depbert_forward.5} parent=5 // pred_check
        %p223 = pneg %p222
      $region34: #{depbert_forward.5} parent=5 // pred_check_branch
        %225 = sbr.rel (%p223) target = $region36
      $region35: #{depbert_forward.5} parent=5 // pred_region
        // Predicated region
        $region37: #{depbert_forward.5} parent=35 // pred_check
          %p226 = pneg %p34
        $region38: #{depbert_forward.5} parent=35 // pred_check_branch
          %228 = sbr.rel (%p226) target = $region40
        $region39: #{depbert_forward.5} parent=35 // pred_region
          %s229 = smul.u32 4, %s14
          %p230 = scmp.lt.s32.totalorder %s229, 7
          %s231 = scalar_select %p230, %s229, 7
          %s232 = smul.addr %s231, 2
          %s233 = scalar_lea.vmem %s0, %s232
          %s234 = smul.u32 4, %s14
        $region40: #{depbert_forward.5} parent=35 // pred_fallthru
          _
        // Predicated region
        $region41: #{depbert_forward.5} parent=35 // pred_check
          %p235 = pneg %p60
        $region42: #{depbert_forward.5} parent=35 // pred_check_branch
          %237 = sbr.rel (%p235) target = $region44
        $region43: #{depbert_forward.5} parent=35 // pred_region
          %s238 = smul.u32 64, %s14
          %p239 = scmp.lt.s32.totalorder %s238, 127
          %s240 = scalar_select %p239, %s238, 127
          %s241 = smul.addr %s240, 8
          %s242 = scalar_lea.vmem %s1, %s241
          %s243 = smul.u32 64, %s14
        $region44: #{depbert_forward.5} parent=35 // pred_fallthru
          _
      $region36: #{depbert_forward.5} parent=5 // pred_fallthru
        _
      %p244 = scmp.le.s32.totalorder 1, %s14
      %p245 = scmp.lt.s32.totalorder %s14, 3
      %p246 = pnand %p244, %p245
      %p247 = pneg %p246
      // Predicated region
      $region45: #{depbert_forward.5} parent=5 // pred_check
        _
      $region46: #{depbert_forward.5} parent=5 // pred_check_branch
        %249 = sbr.rel (%p246) target = $region48
      $region47: #{depbert_forward.5} parent=5 // pred_region
        %s250 = ssub.s32 %s14, 1
        %s251 = smul.u32 4, %s19
        %p252 = scmp.lt.s32.totalorder %s251, 7
        %s253 = scalar_select %p252, %s251, 7
        %s254 = smul.addr %s253, 2
        %s255 = scalar_lea.vmem %s0, %s254
        %p256 = pneg %p40
        %p257 = pneg %p37
        %s258 = smul.u32 64, %s19
        %p259 = scmp.lt.s32.totalorder %s258, 127
        %s260 = scalar_select %p259, %s258, 127
        %s261 = smul.addr %s260, 8
        %s262 = scalar_lea.vmem %s1, %s261
        %p263 = pneg %p66
        %p264 = pneg %p63
        %p265 = pneg %p87
        %p266 = pneg %p84
        %p267 = pneg %p108
        %p268 = pneg %p105
        %p269 = pneg %p129
        %p270 = pneg %p126
        %p271 = pneg %p150
        %p272 = pneg %p147
        %p273 = pneg %p171
        %p274 = pneg %p168
        %p275 = pneg %p192
        %p276 = pneg %p189
        %s277 = smul.u32 4, %s19
        %p278 = scmp.lt.s32.totalorder %s277, 7
        %s279 = scalar_select %p278, %s277, 7
        %s280 = smul.addr %s279, 2
        %s281 = scalar_lea.vmem %s0, %s280
        %s282 = smul.u32 4, %s19
        %s283 = smul.u32 64, %s19
        %p284 = scmp.lt.s32.totalorder %s283, 127
        %s285 = scalar_select %p284, %s283, 127
        %s286 = smul.addr %s285, 8
        %s287 = scalar_lea.vmem %s1, %s286
        %s288 = smul.u32 64, %s19
        %p289 = scmp.eq.s32.totalorder %s19, 0
        // Predicated region
        $region49: #{depbert_forward.5} parent=47 // pred_check
          %p290 = pneg %p289
        $region50: #{depbert_forward.5} parent=47 // pred_check_branch
          %292 = sbr.rel (%p290) target = $region52
        $region51: #{depbert_forward.5} parent=47 // pred_region
          %293 = vst [vmem:[#allocation2] sm:$0x3] 0.0
        $region52: #{depbert_forward.5} parent=47 // pred_fallthru
          _
        %v294 = vld [vmem:[#allocation2] sm:$0x3]
        %v295 = vld [vmem:[%s281] sm:$0xff]
        %v296 = vld [vmem:[%s287] sm:$0xff]
        %v297 = vld [vmem:[%s287 + $0x8] sm:$0xff]
        %v298 = vld [vmem:[%s287 + $0x10] sm:$0xff]
        %v299 = vld [vmem:[%s287 + $0x18] sm:$0xff]
        %v300 = vld [vmem:[%s287 + $0x20] sm:$0xff]
        %v301 = vld [vmem:[%s287 + $0x28] sm:$0xff]
        %v302 = vld [vmem:[%s287 + $0x30] sm:$0xff]
        %v303 = vld [vmem:[%s287 + $0x38] sm:$0xff]
        %v304 = vld [vmem:[%s287 + $0x40] sm:$0xff]
        %v305 = vld [vmem:[%s287 + $0x48] sm:$0xff]
        %v306 = vld [vmem:[%s287 + $0x50] sm:$0xff]
        %v307 = vld [vmem:[%s287 + $0x58] sm:$0xff]
        %v308 = vld [vmem:[%s287 + $0x60] sm:$0xff]
        %v309 = vld [vmem:[%s287 + $0x68] sm:$0xff]
        %v310 = vld [vmem:[%s287 + $0x70] sm:$0xff]
        %v311 = vld [vmem:[%s287 + $0x78] sm:$0xff]
        %v312 = vld [vmem:[%s287 + $0x80] sm:$0xff]
        %v313 = vld [vmem:[%s287 + $0x88] sm:$0xff]
        %v314 = vld [vmem:[%s287 + $0x90] sm:$0xff]
        %v315 = vld [vmem:[%s287 + $0x98] sm:$0xff]
        %v316 = vld [vmem:[%s287 + $0xa0] sm:$0xff]
        %v317 = vld [vmem:[%s287 + $0xa8] sm:$0xff]
        %v318 = vld [vmem:[%s287 + $0xb0] sm:$0xff]
        %v319 = vld [vmem:[%s287 + $0xb8] sm:$0xff]
        %v320 = vld [vmem:[%s287 + $0xc0] sm:$0xff]
        %v321 = vld [vmem:[%s287 + $0xc8] sm:$0xff]
        %v322 = vld [vmem:[%s287 + $0xd0] sm:$0xff]
        %v323 = vld [vmem:[%s287 + $0xd8] sm:$0xff]
        %v324 = vld [vmem:[%s287 + $0xe0] sm:$0xff]
        %v325 = vld [vmem:[%s287 + $0xe8] sm:$0xff]
        %v326 = vld [vmem:[%s287 + $0xf0] sm:$0xff]
        %v327 = vld [vmem:[%s287 + $0xf8] sm:$0xff]
        %v328 = vld [vmem:[%s287 + $0x100] sm:$0xff]
        %v329 = vld [vmem:[%s287 + $0x108] sm:$0xff]
        %v330 = vld [vmem:[%s287 + $0x110] sm:$0xff]
        %v331 = vld [vmem:[%s287 + $0x118] sm:$0xff]
        %v332 = vld [vmem:[%s287 + $0x120] sm:$0xff]
        %v333 = vld [vmem:[%s287 + $0x128] sm:$0xff]
        %v334 = vld [vmem:[%s287 + $0x130] sm:$0xff]
        %v335 = vld [vmem:[%s287 + $0x138] sm:$0xff]
        %v336 = vld [vmem:[%s287 + $0x140] sm:$0xff]
        %v337 = vld [vmem:[%s287 + $0x148] sm:$0xff]
        %v338 = vld [vmem:[%s287 + $0x150] sm:$0xff]
        %v339 = vld [vmem:[%s287 + $0x158] sm:$0xff]
        %v340 = vld [vmem:[%s287 + $0x160] sm:$0xff]
        %v341 = vld [vmem:[%s287 + $0x168] sm:$0xff]
        %v342 = vld [vmem:[%s287 + $0x170] sm:$0xff]
        %v343 = vld [vmem:[%s287 + $0x178] sm:$0xff]
        %v344 = vld [vmem:[%s287 + $0x180] sm:$0xff]
        %v345 = vld [vmem:[%s287 + $0x188] sm:$0xff]
        %v346 = vld [vmem:[%s287 + $0x190] sm:$0xff]
        %v347 = vld [vmem:[%s287 + $0x198] sm:$0xff]
        %v348 = vld [vmem:[%s287 + $0x1a0] sm:$0xff]
        %v349 = vld [vmem:[%s287 + $0x1a8] sm:$0xff]
        %v350 = vld [vmem:[%s287 + $0x1b0] sm:$0xff]
        %v351 = vld [vmem:[%s287 + $0x1b8] sm:$0xff]
        %v352 = vld [vmem:[%s287 + $0x1c0] sm:$0xff]
        %v353 = vld [vmem:[%s287 + $0x1c8] sm:$0xff]
        %v354 = vld [vmem:[%s287 + $0x1d0] sm:$0xff]
        %v355 = vld [vmem:[%s287 + $0x1d8] sm:$0xff]
        %v356 = vld [vmem:[%s287 + $0x1e0] sm:$0xff]
        %v357 = vld [vmem:[%s287 + $0x1e8] sm:$0xff]
        %v358 = vld [vmem:[%s287 + $0x1f0] sm:$0xff]
        %v359 = vld [vmem:[%s287 + $0x1f8] sm:$0xff]
        %v361 = vcombine.high %v295, %v295
        %v363 = vunpack.c.l.s4 1983009808
        %v364 = vunpack.c.0.s8 %v363
        %v365 = vlaneseq
        %v366 = vshrl.u32 %v365, 7
        %v367 = vsub.s32 %v364, %v366
        %v368 = vrot.slane %v295, %v367
        %v370 = vunpack.c.l.s4 1983009808
        %v371 = vunpack.c.0.s8 %v370
        %v372 = vlaneseq
        %v373 = vshrl.u32 %v372, 7
        %v374 = vsub.s32 %v371, %v373
        %v375 = vrot.slane %v361, %v374
        %v376 = vcombine.high %v368, %v368
        %v377 = vcombine.high %v375, %v375
        %382 = vmatprep.subr.mxu0 0.0
        %383 = vmatpush1.msra.mxu0 %v296
        %384 = vmatprep.subr.mxu0 0.0
        %385 = vmatpush1.msra.mxu0 %v297
        %386 = vmatprep.subr.mxu0 0.0
        %387 = vmatpush1.msra.mxu0 %v298
        %388 = vmatprep.subr.mxu0 0.0
        %389 = vmatpush1.msra.mxu0 %v299
        %390 = vmatprep.subr.mxu0 0.0
        %391 = vmatpush1.msra.mxu0 %v300
        %392 = vmatprep.subr.mxu0 0.0
        %393 = vmatpush1.msra.mxu0 %v301
        %394 = vmatprep.subr.mxu0 0.0
        %395 = vmatpush1.msra.mxu0 %v302
        %396 = vmatprep.subr.mxu0 0.0
        %397 = vmatpush1.msra.mxu0 %v303
        %398 = vmatprep.subr.mxu0 0.0
        %399 = vmatpush1.msra.mxu0 %v304
        %400 = vmatprep.subr.mxu0 0.0
        %401 = vmatpush1.msra.mxu0 %v305
        %402 = vmatprep.subr.mxu0 0.0
        %403 = vmatpush1.msra.mxu0 %v306
        %404 = vmatprep.subr.mxu0 0.0
        %405 = vmatpush1.msra.mxu0 %v307
        %406 = vmatprep.subr.mxu0 0.0
        %407 = vmatpush1.msra.mxu0 %v308
        %408 = vmatprep.subr.mxu0 0.0
        %409 = vmatpush1.msra.mxu0 %v309
        %410 = vmatprep.subr.mxu0 0.0
        %411 = vmatpush1.msra.mxu0 %v310
        %412 = vmatprep.subr.mxu0 0.0
        %413 = vmatpush1.msra.mxu0 %v311
        %414 = vmatprep.subr.mxu0 0.0
        %415 = vmatpush1.msra.mxu0 %v312
        %416 = vmatprep.subr.mxu0 0.0
        %417 = vmatpush1.msra.mxu0 %v313
        %418 = vmatprep.subr.mxu0 0.0
        %419 = vmatpush1.msra.mxu0 %v314
        %420 = vmatprep.subr.mxu0 0.0
        %421 = vmatpush1.msra.mxu0 %v315
        %422 = vmatprep.subr.mxu0 0.0
        %423 = vmatpush1.msra.mxu0 %v316
        %424 = vmatprep.subr.mxu0 0.0
        %425 = vmatpush1.msra.mxu0 %v317
        %426 = vmatprep.subr.mxu0 0.0
        %427 = vmatpush1.msra.mxu0 %v318
        %428 = vmatprep.subr.mxu0 0.0
        %429 = vmatpush1.msra.mxu0 %v319
        %430 = vmatprep.subr.mxu0 0.0
        %431 = vmatpush1.msra.mxu0 %v320
        %432 = vmatprep.subr.mxu0 0.0
        %433 = vmatpush1.msra.mxu0 %v321
        %434 = vmatprep.subr.mxu0 0.0
        %435 = vmatpush1.msra.mxu0 %v322
        %436 = vmatprep.subr.mxu0 0.0
        %437 = vmatpush1.msra.mxu0 %v323
        %438 = vmatprep.subr.mxu0 0.0
        %439 = vmatpush1.msra.mxu0 %v324
        %440 = vmatprep.subr.mxu0 0.0
        %441 = vmatpush1.msra.mxu0 %v325
        %442 = vmatprep.subr.mxu0 0.0
        %443 = vmatpush1.msra.mxu0 %v326
        %444 = vmatprep.subr.mxu0 0.0
        %445 = vmatpush1.msra.mxu0 %v327
        %446 = vmatprep.mubr.f32.mxu0 %v376
        %447 = vmatmul.mubr.f32.gmra.mrb[0].mxu0 %v368
        %v448 = vpop.f32.mrb[0].mxu0
        %v449 = vadd.f32 0.0, %v448
        %v450 = vpop.f32.mrb[0].mxu0
        %451 = vdwg.mxu0
        %452 = vmatprep.subr.mxu0 0.0
        %453 = vmatpush1.msra.mxu0 %v328
        %454 = vmatprep.subr.mxu0 0.0
        %455 = vmatpush1.msra.mxu0 %v329
        %456 = vmatprep.subr.mxu0 0.0
        %457 = vmatpush1.msra.mxu0 %v330
        %458 = vmatprep.subr.mxu0 0.0
        %459 = vmatpush1.msra.mxu0 %v331
        %460 = vmatprep.subr.mxu0 0.0
        %461 = vmatpush1.msra.mxu0 %v332
        %462 = vmatprep.subr.mxu0 0.0
        %463 = vmatpush1.msra.mxu0 %v333
        %464 = vmatprep.subr.mxu0 0.0
        %465 = vmatpush1.msra.mxu0 %v334
        %466 = vmatprep.subr.mxu0 0.0
        %467 = vmatpush1.msra.mxu0 %v335
        %468 = vmatprep.subr.mxu0 0.0
        %469 = vmatpush1.msra.mxu0 %v336
        %470 = vmatprep.subr.mxu0 0.0
        %471 = vmatpush1.msra.mxu0 %v337
        %472 = vmatprep.subr.mxu0 0.0
        %473 = vmatpush1.msra.mxu0 %v338
        %474 = vmatprep.subr.mxu0 0.0
        %475 = vmatpush1.msra.mxu0 %v339
        %476 = vmatprep.subr.mxu0 0.0
        %477 = vmatpush1.msra.mxu0 %v340
        %478 = vmatprep.subr.mxu0 0.0
        %479 = vmatpush1.msra.mxu0 %v341
        %480 = vmatprep.subr.mxu0 0.0
        %481 = vmatpush1.msra.mxu0 %v342
        %482 = vmatprep.subr.mxu0 0.0
        %483 = vmatpush1.msra.mxu0 %v343
        %484 = vmatprep.subr.mxu0 0.0
        %485 = vmatpush1.msra.mxu0 %v344
        %486 = vmatprep.subr.mxu0 0.0
        %487 = vmatpush1.msra.mxu0 %v345
        %488 = vmatprep.subr.mxu0 0.0
        %489 = vmatpush1.msra.mxu0 %v346
        %490 = vmatprep.subr.mxu0 0.0
        %491 = vmatpush1.msra.mxu0 %v347
        %492 = vmatprep.subr.mxu0 0.0
        %493 = vmatpush1.msra.mxu0 %v348
        %494 = vmatprep.subr.mxu0 0.0
        %495 = vmatpush1.msra.mxu0 %v349
        %496 = vmatprep.subr.mxu0 0.0
        %497 = vmatpush1.msra.mxu0 %v350
        %498 = vmatprep.subr.mxu0 0.0
        %499 = vmatpush1.msra.mxu0 %v351
        %500 = vmatprep.subr.mxu0 0.0
        %501 = vmatpush1.msra.mxu0 %v352
        %502 = vmatprep.subr.mxu0 0.0
        %503 = vmatpush1.msra.mxu0 %v353
        %504 = vmatprep.subr.mxu0 0.0
        %505 = vmatpush1.msra.mxu0 %v354
        %506 = vmatprep.subr.mxu0 0.0
        %507 = vmatpush1.msra.mxu0 %v355
        %508 = vmatprep.subr.mxu0 0.0
        %509 = vmatpush1.msra.mxu0 %v356
        %510 = vmatprep.subr.mxu0 0.0
        %511 = vmatpush1.msra.mxu0 %v357
        %512 = vmatprep.subr.mxu0 0.0
        %513 = vmatpush1.msra.mxu0 %v358
        %514 = vmatprep.subr.mxu0 0.0
        %515 = vmatpush1.msra.mxu0 %v359
        %516 = vmatprep.mubr.f32.mxu0 %v377
        %517 = vmatmul.mubr.f32.gmra.mrb[0].mxu0 %v375
        %v518 = vpop.f32.mrb[0].mxu0
        %v519 = vadd.f32 %v449, %v518
        %v520 = vpop.f32.mrb[0].mxu0
        %521 = vdwg.mxu0
        %v522 = vadd.f32 %v294, %v519
        %523 = vst [vmem:[#allocation2] sm:$0x3] %v522
        %p524 = scmp.eq.s32.totalorder %s19, 1
        // Predicated region
        $region53: #{depbert_forward.5} parent=47 // pred_check
          %p525 = pneg %p524
        $region54: #{depbert_forward.5} parent=47 // pred_check_branch
          %527 = sbr.rel (%p525) target = $region56
        $region55: #{depbert_forward.5} parent=47 // pred_region
          %v528 = vld [vmem:[#allocation2] sm:$0x3]
          %v529 = vld [vmem:[%s2] sm:$0x1]
          %v531 = vlaneseq
          %v532 = vshrl.u32 %v531, 7
          %v533 = vsub.s32 0, %v532
          %v534 = vrot.slane %v529, %v533
          %v536 = vadd.f32 %v528, %v534
          %v537 = vmax.f32 %v536, 0.0
          %v538 = vld [vmem:[%s3] sm:$0x3]
          %v539 = vld [vmem:[%s4] sm:$0xff]
          %v540 = vld [vmem:[%s4 + $0x8] sm:$0xff]
          %v541 = vld [vmem:[%s4 + $0x10] sm:$0xff]
          %v542 = vld [vmem:[%s4 + $0x18] sm:$0xff]
          %v543 = vld [vmem:[%s5] sm:$0xff]
          %v544 = vld [vmem:[%s5 + $0x8] sm:$0xff]
          %v545 = vld [vmem:[%s5 + $0x10] sm:$0xff]
          %v546 = vld [vmem:[%s5 + $0x18] sm:$0xff]
          %v547 = vld [vmem:[%s5 + $0x20] sm:$0xff]
          %v548 = vld [vmem:[%s5 + $0x28] sm:$0xff]
          %v549 = vld [vmem:[%s5 + $0x30] sm:$0xff]
          %v550 = vld [vmem:[%s5 + $0x38] sm:$0xff]
          %v551 = vld [vmem:[%s5 + $0x40] sm:$0xff]
          %v552 = vld [vmem:[%s5 + $0x48] sm:$0xff]
          %v553 = vld [vmem:[%s5 + $0x50] sm:$0xff]
          %v554 = vld [vmem:[%s5 + $0x58] sm:$0xff]
          %v555 = vld [vmem:[%s5 + $0x60] sm:$0xff]
          %v556 = vld [vmem:[%s5 + $0x68] sm:$0xff]
          %v557 = vld [vmem:[%s5 + $0x70] sm:$0xff]
          %v558 = vld [vmem:[%s5 + $0x78] sm:$0xff]
          %559 = vmatprep.subr.mxu0 0.0
          %560 = vmatpush1.msra.mxu0 %v543
          %561 = vmatprep.subr.mxu0 0.0
          %562 = vmatpush1.msra.mxu0 %v544
          %563 = vmatprep.subr.mxu0 0.0
          %564 = vmatpush1.msra.mxu0 %v545
          %565 = vmatprep.subr.mxu0 0.0
          %566 = vmatpush1.msra.mxu0 %v546
          %567 = vmatprep.subr.mxu0 0.0
          %568 = vmatpush1.msra.mxu0 %v547
          %569 = vmatprep.subr.mxu0 0.0
          %570 = vmatpush1.msra.mxu0 %v548
          %571 = vmatprep.subr.mxu0 0.0
          %572 = vmatpush1.msra.mxu0 %v549
          %573 = vmatprep.subr.mxu0 0.0
          %574 = vmatpush1.msra.mxu0 %v550
          %575 = vmatprep.subr.mxu0 0.0
          %576 = vmatpush1.msra.mxu0 %v551
          %577 = vmatprep.subr.mxu0 0.0
          %578 = vmatpush1.msra.mxu0 %v552
          %579 = vmatprep.subr.mxu0 0.0
          %580 = vmatpush1.msra.mxu0 %v553
          %581 = vmatprep.subr.mxu0 0.0
          %582 = vmatpush1.msra.mxu0 %v554
          %583 = vmatprep.subr.mxu0 0.0
          %584 = vmatpush1.msra.mxu0 %v555
          %585 = vmatprep.subr.mxu0 0.0
          %586 = vmatpush1.msra.mxu0 %v556
          %587 = vmatprep.subr.mxu0 0.0
          %588 = vmatpush1.msra.mxu0 %v557
          %589 = vmatprep.subr.mxu0 0.0
          %590 = vmatpush1.msra.mxu0 %v558
          %591 = vmatprep.subr.mxu0 0.0
          %592 = vmatpush1.msra.mxu0 0.0
          %593 = vmatprep.subr.mxu0 0.0
          %594 = vmatpush1.msra.mxu0 0.0
          %595 = vmatprep.subr.mxu0 0.0
          %596 = vmatpush1.msra.mxu0 0.0
          %597 = vmatprep.subr.mxu0 0.0
          %598 = vmatpush1.msra.mxu0 0.0
          %599 = vmatprep.subr.mxu0 0.0
          %600 = vmatpush1.msra.mxu0 0.0
          %601 = vmatprep.subr.mxu0 0.0
          %602 = vmatpush1.msra.mxu0 0.0
          %603 = vmatprep.subr.mxu0 0.0
          %604 = vmatpush1.msra.mxu0 0.0
          %605 = vmatprep.subr.mxu0 0.0
          %606 = vmatpush1.msra.mxu0 0.0
          %607 = vmatprep.subr.mxu0 0.0
          %608 = vmatpush1.msra.mxu0 0.0
          %609 = vmatprep.subr.mxu0 0.0
          %610 = vmatpush1.msra.mxu0 0.0
          %611 = vmatprep.subr.mxu0 0.0
          %612 = vmatpush1.msra.mxu0 0.0
          %613 = vmatprep.subr.mxu0 0.0
          %614 = vmatpush1.msra.mxu0 0.0
          %615 = vmatprep.subr.mxu0 0.0
          %616 = vmatpush1.msra.mxu0 0.0
          %617 = vmatprep.subr.mxu0 0.0
          %618 = vmatpush1.msra.mxu0 0.0
          %619 = vmatprep.subr.mxu0 0.0
          %620 = vmatpush1.msra.mxu0 0.0
          %621 = vmatprep.subr.mxu0 0.0
          %622 = vmatpush1.msra.mxu0 0.0
          %623 = vmatprep.mubr.f32.mxu0 0.0
          %624 = vmatmul.mubr.f32.gmra.mrb[0].mxu0 %v537
          %v625 = vpop.f32.mrb[0].mxu0
          %v626 = vadd.f32 0.0, %v625
          %v627 = vpop.f32.mrb[0].mxu0
          %628 = vdwg.mxu0
          %vm629 = vcmask 261120
          %v631 = vsel %vm629, %v538, 0
          %633 = vmatprep.subr.mxu0 0.0
          %634 = vmatpush1.msra.mxu0 %v539
          %635 = vmatprep.subr.mxu0 0.0
          %636 = vmatpush1.msra.mxu0 %v540
          %637 = vmatprep.subr.mxu0 0.0
          %638 = vmatpush1.msra.mxu0 %v541
          %639 = vmatprep.subr.mxu0 0.0
          %640 = vmatpush1.msra.mxu0 %v542
          %641 = vmatprep.subr.mxu0 0.0
          %642 = vmatpush1.msra.mxu0 0.0
          %643 = vmatprep.subr.mxu0 0.0
          %644 = vmatpush1.msra.mxu0 0.0
          %645 = vmatprep.subr.mxu0 0.0
          %646 = vmatpush1.msra.mxu0 0.0
          %647 = vmatprep.subr.mxu0 0.0
          %648 = vmatpush1.msra.mxu0 0.0
          %649 = vmatprep.subr.mxu0 0.0
          %650 = vmatpush1.msra.mxu0 0.0
          %651 = vmatprep.subr.mxu0 0.0
          %652 = vmatpush1.msra.mxu0 0.0
          %653 = vmatprep.subr.mxu0 0.0
          %654 = vmatpush1.msra.mxu0 0.0
          %655 = vmatprep.subr.mxu0 0.0
          %656 = vmatpush1.msra.mxu0 0.0
          %657 = vmatprep.subr.mxu0 0.0
          %658 = vmatpush1.msra.mxu0 0.0
          %659 = vmatprep.subr.mxu0 0.0
          %660 = vmatpush1.msra.mxu0 0.0
          %661 = vmatprep.subr.mxu0 0.0
          %662 = vmatpush1.msra.mxu0 0.0
          %663 = vmatprep.subr.mxu0 0.0
          %664 = vmatpush1.msra.mxu0 0.0
          %665 = vmatprep.subr.mxu0 0.0
          %666 = vmatpush1.msra.mxu0 0.0
          %667 = vmatprep.subr.mxu0 0.0
          %668 = vmatpush1.msra.mxu0 0.0
          %669 = vmatprep.subr.mxu0 0.0
          %670 = vmatpush1.msra.mxu0 0.0
          %671 = vmatprep.subr.mxu0 0.0
          %672 = vmatpush1.msra.mxu0 0.0
          %673 = vmatprep.subr.mxu0 0.0
          %674 = vmatpush1.msra.mxu0 0.0
          %675 = vmatprep.subr.mxu0 0.0
          %676 = vmatpush1.msra.mxu0 0.0
          %677 = vmatprep.subr.mxu0 0.0
          %678 = vmatpush1.msra.mxu0 0.0
          %679 = vmatprep.subr.mxu0 0.0
          %680 = vmatpush1.msra.mxu0 0.0
          %681 = vmatprep.subr.mxu0 0.0
          %682 = vmatpush1.msra.mxu0 0.0
          %683 = vmatprep.subr.mxu0 0.0
          %684 = vmatpush1.msra.mxu0 0.0
          %685 = vmatprep.subr.mxu0 0.0
          %686 = vmatpush1.msra.mxu0 0.0
          %687 = vmatprep.subr.mxu0 0.0
          %688 = vmatpush1.msra.mxu0 0.0
          %689 = vmatprep.subr.mxu0 0.0
          %690 = vmatpush1.msra.mxu0 0.0
          %691 = vmatprep.subr.mxu0 0.0
          %692 = vmatpush1.msra.mxu0 0.0
          %693 = vmatprep.subr.mxu0 0.0
          %694 = vmatpush1.msra.mxu0 0.0
          %695 = vmatprep.subr.mxu0 0.0
          %696 = vmatpush1.msra.mxu0 0.0
          %697 = vmatprep.mubr.f32.mxu0 0.0
          %698 = vmatmul.mubr.f32.gmra.mrb[0].mxu0 %v631
          %v699 = vpop.f32.mrb[0].mxu0
          %v700 = vadd.f32 %v626, %v699
          %v701 = vpop.f32.mrb[0].mxu0
          %702 = vdwg.mxu0
          %v703 = vld [vmem:[%s6] sm:$0x1]
          %v705 = vlaneseq
          %v706 = vshrl.u32 %v705, 7
          %v707 = vsub.s32 0, %v706
          %v708 = vrot.slane %v703, %v707
          %v710 = vadd.f32 %v700, %v708
          %vm711 = vcmask 33792
          %v712 = vsel %vm711, %v710, -inf
          %713 = vmax.xlane.f32.xlu0 %v712
          %v714 = vpop.xlane.xlu0 %713
          %v715 = vsub.f32 %v710, %v714
          %v716 = vmul.f32 %v715, 1.442695
          %v717 = vpow.pop %v716
          %v718 = vsel %vm711, %v717, 0.0
          %719 = vadd.xlane.f32.xlu0 %v718
          %v720 = vpop.xlane.xlu0 %719
          %v721 = vrcp.pop %v720
          %v722 = vmul.f32 %v717, %v721
          %723 = vst.msk [vmem:[#allocation3] sm:$0x3] %vm711, %v722
        $region56: #{depbert_forward.5} parent=47 // pred_fallthru
          _
        // Predicated region
        $region57: #{depbert_forward.5} parent=47 // pred_check
          %p724 = pneg %p189
        $region58: #{depbert_forward.5} parent=47 // pred_check_branch
          %726 = sbr.rel (%p724) target = $region60
        $region59: #{depbert_forward.5} parent=47 // pred_region
          %s728 = ssub.s32 32, 32
          %729 = vsyncadd [#allocation4], %s728
          %s731 = sshll.u32 [#allocation3], 4
          %s732 = int_to_ptr.vmem [resolvable:$true] %s731
          %734 = dma.vmem_to_hbm [thread:$0]  %s732, 32, %s7, [#allocation4]
        $region60: #{depbert_forward.5} parent=47 // pred_fallthru
          _
        // Predicated region
        $region61: #{depbert_forward.5} parent=47 // pred_check
          %p735 = pneg %p189
        $region62: #{depbert_forward.5} parent=47 // pred_check_branch
          %737 = sbr.rel (%p735) target = $region64
        $region63: #{depbert_forward.5} parent=47 // pred_region
          %738 = dma.done [#allocation4], 32
        $region64: #{depbert_forward.5} parent=47 // pred_fallthru
          _
      $region48: #{depbert_forward.5} parent=5 // pred_fallthru
        _
      %p739 = scmp.le.s32.totalorder 2, %s14
      // Predicated region
      $region65: #{depbert_forward.5} parent=5 // pred_check
        %p740 = pneg %p739
      $region66: #{depbert_forward.5} parent=5 // pred_check_branch
        %742 = sbr.rel (%p740) target = $region68
      $region67: #{depbert_forward.5} parent=5 // pred_region
        %s743 = ssub.s32 %s14, 2
      $region68: #{depbert_forward.5} parent=5 // pred_fallthru
        _
    $region6: #{depbert_forward.5} parent=1 // loop_footer
      %s18 = sadd.s32 1, %s14
    $region7: #{depbert_forward.5} parent=1 // loop_footer_branch
      %13 = sbr.rel target = $region3
    $region8: #{depbert_forward.5} parent=1 // loop_exit
      _
    %744 = vsyncpa [#allocation4], 1
    %s745 = scalar_lea.sflag [#allocation4], 1
    %746 = vsyncpa %s745, 1

// kernel: depbert_forward.4
$region0: #{depbert_forward.4}
  #allocation0 [shape = 'u32[]', space=smem, size = 0x4, offset = 0x4, fixed_abs, tag = 'smem constant byte address 0x4 - core index']
  #allocation1 [shape = 'u32[144,128]{1,0:T(1,128)}', space=vmem, size = 0x12000, scoped, tag = 'internal scratch']
  %s0 = inlined_call_operand.vmem [shape: f32[4,128,18], index: 0, kind: input, shape index: {}]
  %s1 = inlined_call_operand.vmem [shape: f32[18,16], index: 1, kind: input, shape index: {}]
  %s2 = inlined_call_operand.vmem [shape: f32[1,16], index: 2, kind: input, shape index: {}]
  %s3 = inlined_call_operand.vmem [shape: f32[128,16], index: 3, kind: output, shape index: {}]
  %s4 = sld [smem:[#allocation0]]
  $region22: #{depbert_forward.4} parent=0
    _
  %s6 = ssub.s32 1, %s4
  %s7 = scalar_select 0, %s6, %s4
  // Predicated region
  $region2: #{depbert_forward.4} parent=0 // pred_check
    _
  $region3: #{depbert_forward.4} parent=0 // pred_check_branch
    %9 = sbr.rel (0) target = $region5
  $region4: #{depbert_forward.4} parent=0 // pred_region
    _
  $region5: #{depbert_forward.4} parent=0 // pred_fallthru
    _
  // Predicated region
  $region6: #{depbert_forward.4} parent=0 // pred_check
    _
  $region7: #{depbert_forward.4} parent=0 // pred_check_branch
    %11 = sbr.rel (0) target = $region9
  $region8: #{depbert_forward.4} parent=0 // pred_region
    _
  $region9: #{depbert_forward.4} parent=0 // pred_fallthru
    _
  // Predicated region
  $region10: #{depbert_forward.4} parent=0 // pred_check
    _
  $region11: #{depbert_forward.4} parent=0 // pred_check_branch
    %13 = sbr.rel (0) target = $region13
  $region12: #{depbert_forward.4} parent=0 // pred_region
    _
  $region13: #{depbert_forward.4} parent=0 // pred_fallthru
    _
  %v14 = vld [vmem:[%s0] sm:$0xff]
  %v15 = vld [vmem:[%s0 + $0x8] sm:$0xff]
  %v16 = vld [vmem:[%s0 + $0x10] sm:$0xff]
  %v17 = vld [vmem:[%s0 + $0x18] sm:$0xff]
  %v18 = vld [vmem:[%s0 + $0x20] sm:$0xff]
  %v19 = vld [vmem:[%s0 + $0x28] sm:$0xff]
  %v20 = vld [vmem:[%s0 + $0x30] sm:$0xff]
  %v21 = vld [vmem:[%s0 + $0x38] sm:$0xff]
  %v22 = vld [vmem:[%s0 + $0x40] sm:$0xff]
  %v23 = vld [vmem:[%s0 + $0x48] sm:$0xff]
  %v24 = vld [vmem:[%s0 + $0x50] sm:$0xff]
  %v25 = vld [vmem:[%s0 + $0x58] sm:$0xff]
  %v26 = vld [vmem:[%s0 + $0x60] sm:$0xff]
  %v27 = vld [vmem:[%s0 + $0x68] sm:$0xff]
  %v28 = vld [vmem:[%s0 + $0x70] sm:$0xff]
  %v29 = vld [vmem:[%s0 + $0x78] sm:$0xff]
  %v30 = vld [vmem:[%s0 + $0x80] sm:$0xff]
  %v31 = vld [vmem:[%s0 + $0x88] sm:$0xff]
  %v32 = vld [vmem:[%s0 + $0x90] sm:$0xff]
  %v33 = vld [vmem:[%s0 + $0x98] sm:$0xff]
  %v34 = vld [vmem:[%s0 + $0xa0] sm:$0xff]
  %v35 = vld [vmem:[%s0 + $0xa8] sm:$0xff]
  %v36 = vld [vmem:[%s0 + $0xb0] sm:$0xff]
  %v37 = vld [vmem:[%s0 + $0xb8] sm:$0xff]
  %v38 = vld [vmem:[%s0 + $0xc0] sm:$0xff]
  %v39 = vld [vmem:[%s0 + $0xc8] sm:$0xff]
  %v40 = vld [vmem:[%s0 + $0xd0] sm:$0xff]
  %v41 = vld [vmem:[%s0 + $0xd8] sm:$0xff]
  %v42 = vld [vmem:[%s0 + $0xe0] sm:$0xff]
  %v43 = vld [vmem:[%s0 + $0xe8] sm:$0xff]
  %v44 = vld [vmem:[%s0 + $0xf0] sm:$0xff]
  %v45 = vld [vmem:[%s0 + $0xf8] sm:$0xff]
  %v46 = vld [vmem:[%s0 + $0x100] sm:$0xff]
  %v47 = vld [vmem:[%s0 + $0x108] sm:$0xff]
  %v48 = vld [vmem:[%s0 + $0x110] sm:$0xff]
  %v49 = vld [vmem:[%s0 + $0x118] sm:$0xff]
  %v50 = vld [vmem:[%s0 + $0x120] sm:$0xff]
  %v51 = vld [vmem:[%s0 + $0x128] sm:$0xff]
  %v52 = vld [vmem:[%s0 + $0x130] sm:$0xff]
  %v53 = vld [vmem:[%s0 + $0x138] sm:$0xff]
  %v54 = vld [vmem:[%s0 + $0x140] sm:$0xff]
  %v55 = vld [vmem:[%s0 + $0x148] sm:$0xff]
  %v56 = vld [vmem:[%s0 + $0x150] sm:$0xff]
  %v57 = vld [vmem:[%s0 + $0x158] sm:$0xff]
  %v58 = vld [vmem:[%s0 + $0x160] sm:$0xff]
  %v59 = vld [vmem:[%s0 + $0x168] sm:$0xff]
  %v60 = vld [vmem:[%s0 + $0x170] sm:$0xff]
  %v61 = vld [vmem:[%s0 + $0x178] sm:$0xff]
  %v62 = vld [vmem:[%s0 + $0x180] sm:$0xff]
  %v63 = vld [vmem:[%s0 + $0x188] sm:$0xff]
  %v64 = vld [vmem:[%s0 + $0x190] sm:$0xff]
  %v65 = vld [vmem:[%s0 + $0x198] sm:$0xff]
  %v66 = vld [vmem:[%s0 + $0x1a0] sm:$0xff]
  %v67 = vld [vmem:[%s0 + $0x1a8] sm:$0xff]
  %v68 = vld [vmem:[%s0 + $0x1b0] sm:$0xff]
  %v69 = vld [vmem:[%s0 + $0x1b8] sm:$0xff]
  %v70 = vld [vmem:[%s0 + $0x1c0] sm:$0xff]
  %v71 = vld [vmem:[%s0 + $0x1c8] sm:$0xff]
  %v72 = vld [vmem:[%s0 + $0x1d0] sm:$0xff]
  %v73 = vld [vmem:[%s0 + $0x1d8] sm:$0xff]
  %v74 = vld [vmem:[%s0 + $0x1e0] sm:$0xff]
  %v75 = vld [vmem:[%s0 + $0x1e8] sm:$0xff]
  %v76 = vld [vmem:[%s0 + $0x1f0] sm:$0xff]
  %v77 = vld [vmem:[%s0 + $0x1f8] sm:$0xff]
  %v78 = vld [vmem:[%s1] sm:$0xff]
  %v79 = vld [vmem:[%s1 + $0x8] sm:$0xff]
  %v80 = vld [vmem:[%s1 + $0x10] sm:$0x3]
  %v81 = vld [vmem:[%s2] sm:$0x1]
  %v83 = vlaneseq
  %v84 = vshrl.u32 %v83, 7
  %v85 = vsub.s32 0, %v84
  %v86 = vrot.slane %v81, %v85
  %vm88 = vcmask 146432
  %v90 = vsel %vm88, %v14, 0
  %v93 = vsel %vm88, %v15, 0
  %v96 = vsel %vm88, %v16, 0
  %v99 = vsel %vm88, %v17, 0
  %v102 = vsel %vm88, %v18, 0
  %v105 = vsel %vm88, %v19, 0
  %v108 = vsel %vm88, %v20, 0
  %v111 = vsel %vm88, %v21, 0
  %v114 = vsel %vm88, %v22, 0
  %v117 = vsel %vm88, %v23, 0
  %v120 = vsel %vm88, %v24, 0
  %v123 = vsel %vm88, %v25, 0
  %v126 = vsel %vm88, %v26, 0
  %v129 = vsel %vm88, %v27, 0
  %v132 = vsel %vm88, %v28, 0
  %v135 = vsel %vm88, %v29, 0
  %v138 = vsel %vm88, %v30, 0
  %v141 = vsel %vm88, %v31, 0
  %v144 = vsel %vm88, %v32, 0
  %v147 = vsel %vm88, %v33, 0
  %v150 = vsel %vm88, %v34, 0
  %v153 = vsel %vm88, %v35, 0
  %v156 = vsel %vm88, %v36, 0
  %v159 = vsel %vm88, %v37, 0
  %v162 = vsel %vm88, %v38, 0
  %v165 = vsel %vm88, %v39, 0
  %v168 = vsel %vm88, %v40, 0
  %v171 = vsel %vm88, %v41, 0
  %v174 = vsel %vm88, %v42, 0
  %v177 = vsel %vm88, %v43, 0
  %v180 = vsel %vm88, %v44, 0
  %v183 = vsel %vm88, %v45, 0
  %v186 = vsel %vm88, %v46, 0
  %v189 = vsel %vm88, %v47, 0
  %v192 = vsel %vm88, %v48, 0
  %v195 = vsel %vm88, %v49, 0
  %v198 = vsel %vm88, %v50, 0
  %v201 = vsel %vm88, %v51, 0
  %v204 = vsel %vm88, %v52, 0
  %v207 = vsel %vm88, %v53, 0
  %v210 = vsel %vm88, %v54, 0
  %v213 = vsel %vm88, %v55, 0
  %v216 = vsel %vm88, %v56, 0
  %v219 = vsel %vm88, %v57, 0
  %v222 = vsel %vm88, %v58, 0
  %v225 = vsel %vm88, %v59, 0
  %v228 = vsel %vm88, %v60, 0
  %v231 = vsel %vm88, %v61, 0
  %v234 = vsel %vm88, %v62, 0
  %v237 = vsel %vm88, %v63, 0
  %v240 = vsel %vm88, %v64, 0
  %v243 = vsel %vm88, %v65, 0
  %v246 = vsel %vm88, %v66, 0
  %v249 = vsel %vm88, %v67, 0
  %v252 = vsel %vm88, %v68, 0
  %v255 = vsel %vm88, %v69, 0
  %v258 = vsel %vm88, %v70, 0
  %v261 = vsel %vm88, %v71, 0
  %v264 = vsel %vm88, %v72, 0
  %v267 = vsel %vm88, %v73, 0
  %v270 = vsel %vm88, %v74, 0
  %v273 = vsel %vm88, %v75, 0
  %v276 = vsel %vm88, %v76, 0
  %v279 = vsel %vm88, %v77, 0
  %vm281 = vcmask 1041408
  %v283 = vsel %vm281, %v80, 0
  %285 = vmatprep.subr.mxu0 0.0
  %286 = vmatpush1.msra.mxu0 %v78
  %287 = vmatprep.subr.mxu0 0.0
  %288 = vmatpush1.msra.mxu0 %v79
  %289 = vmatprep.subr.mxu0 0.0
  %290 = vmatpush1.msra.mxu0 %v283
  %291 = vmatprep.subr.mxu0 0.0
  %292 = vmatpush1.msra.mxu0 0.0
  %293 = vmatprep.subr.mxu0 0.0
  %294 = vmatpush1.msra.mxu0 0.0
  %295 = vmatprep.subr.mxu0 0.0
  %296 = vmatpush1.msra.mxu0 0.0
  %297 = vmatprep.subr.mxu0 0.0
  %298 = vmatpush1.msra.mxu0 0.0
  %299 = vmatprep.subr.mxu0 0.0
  %300 = vmatpush1.msra.mxu0 0.0
  %301 = vmatprep.subr.mxu0 0.0
  %302 = vmatpush1.msra.mxu0 0.0
  %303 = vmatprep.subr.mxu0 0.0
  %304 = vmatpush1.msra.mxu0 0.0
  %305 = vmatprep.subr.mxu0 0.0
  %306 = vmatpush1.msra.mxu0 0.0
  %307 = vmatprep.subr.mxu0 0.0
  %308 = vmatpush1.msra.mxu0 0.0
  %309 = vmatprep.subr.mxu0 0.0
  %310 = vmatpush1.msra.mxu0 0.0
  %311 = vmatprep.subr.mxu0 0.0
  %312 = vmatpush1.msra.mxu0 0.0
  %313 = vmatprep.subr.mxu0 0.0
  %314 = vmatpush1.msra.mxu0 0.0
  %315 = vmatprep.subr.mxu0 0.0
  %316 = vmatpush1.msra.mxu0 0.0
  %317 = vmatprep.subr.mxu0 0.0
  %318 = vmatpush1.msra.mxu0 0.0
  %319 = vmatprep.subr.mxu0 0.0
  %320 = vmatpush1.msra.mxu0 0.0
  %321 = vmatprep.subr.mxu0 0.0
  %322 = vmatpush1.msra.mxu0 0.0
  %323 = vmatprep.subr.mxu0 0.0
  %324 = vmatpush1.msra.mxu0 0.0
  %325 = vmatprep.subr.mxu0 0.0
  %326 = vmatpush1.msra.mxu0 0.0
  %327 = vmatprep.subr.mxu0 0.0
  %328 = vmatpush1.msra.mxu0 0.0
  %329 = vmatprep.subr.mxu0 0.0
  %330 = vmatpush1.msra.mxu0 0.0
  %331 = vmatprep.subr.mxu0 0.0
  %332 = vmatpush1.msra.mxu0 0.0
  %333 = vmatprep.subr.mxu0 0.0
  %334 = vmatpush1.msra.mxu0 0.0
  %335 = vmatprep.subr.mxu0 0.0
  %336 = vmatpush1.msra.mxu0 0.0
  %337 = vmatprep.subr.mxu0 0.0
  %338 = vmatpush1.msra.mxu0 0.0
  %339 = vmatprep.subr.mxu0 0.0
  %340 = vmatpush1.msra.mxu0 0.0
  %341 = vmatprep.subr.mxu0 0.0
  %342 = vmatpush1.msra.mxu0 0.0
  %343 = vmatprep.subr.mxu0 0.0
  %344 = vmatpush1.msra.mxu0 0.0
  %345 = vmatprep.subr.mxu0 0.0
  %346 = vmatpush1.msra.mxu0 0.0
  %347 = vmatprep.subr.mxu0 0.0
  %348 = vmatpush1.msra.mxu0 0.0
  %349 = vmatprep.mubr.f32.mxu0 0.0
  %350 = vmatmul.mubr.f32.gmra.mrb[0].mxu0 %v90
  %v351 = vpop.f32.mrb[0].mxu0
  %v352 = vadd.f32 %v86, %v351
  %v353 = vpop.f32.mrb[0].mxu0
  %354 = vmatprep.mubr.f32.mxu0 0.0
  %355 = vmatmul.mubr.f32.gmra.mrb[0].mxu0 %v93
  %v356 = vpop.f32.mrb[0].mxu0
  %v357 = vadd.f32 %v86, %v356
  %v358 = vpop.f32.mrb[0].mxu0
  %359 = vmatprep.mubr.f32.mxu0 0.0
  %360 = vmatmul.mubr.f32.gmra.mrb[0].mxu0 %v96
  %v361 = vpop.f32.mrb[0].mxu0
  %v362 = vadd.f32 %v86, %v361
  %v363 = vpop.f32.mrb[0].mxu0
  %364 = vmatprep.mubr.f32.mxu0 0.0
  %365 = vmatmul.mubr.f32.gmra.mrb[0].mxu0 %v99
  %v366 = vpop.f32.mrb[0].mxu0
  %v367 = vadd.f32 %v86, %v366
  %v368 = vpop.f32.mrb[0].mxu0
  %369 = vmatprep.mubr.f32.mxu0 0.0
  %370 = vmatmul.mubr.f32.gmra.mrb[0].mxu0 %v102
  %v371 = vpop.f32.mrb[0].mxu0
  %v372 = vadd.f32 %v86, %v371
  %v373 = vpop.f32.mrb[0].mxu0
  %374 = vmatprep.mubr.f32.mxu0 0.0
  %375 = vmatmul.mubr.f32.gmra.mrb[0].mxu0 %v105
  %v376 = vpop.f32.mrb[0].mxu0
  %v377 = vadd.f32 %v86, %v376
  %v378 = vpop.f32.mrb[0].mxu0
  %379 = vmatprep.mubr.f32.mxu0 0.0
  %380 = vmatmul.mubr.f32.gmra.mrb[0].mxu0 %v108
  %v381 = vpop.f32.mrb[0].mxu0
  %v382 = vadd.f32 %v86, %v381
  %v383 = vpop.f32.mrb[0].mxu0
  %384 = vmatprep.mubr.f32.mxu0 0.0
  %385 = vmatmul.mubr.f32.gmra.mrb[0].mxu0 %v111
  %v386 = vpop.f32.mrb[0].mxu0
  %v387 = vadd.f32 %v86, %v386
  %v388 = vpop.f32.mrb[0].mxu0
  %389 = vmatprep.mubr.f32.mxu0 0.0
  %390 = vmatmul.mubr.f32.gmra.mrb[0].mxu0 %v114
  %v391 = vpop.f32.mrb[0].mxu0
  %v392 = vadd.f32 %v86, %v391
  %v393 = vpop.f32.mrb[0].mxu0
  %394 = vmatprep.mubr.f32.mxu0 0.0
  %395 = vmatmul.mubr.f32.gmra.mrb[0].mxu0 %v117
  %v396 = vpop.f32.mrb[0].mxu0
  %v397 = vadd.f32 %v86, %v396
  %v398 = vpop.f32.mrb[0].mxu0
  %399 = vmatprep.mubr.f32.mxu0 0.0
  %400 = vmatmul.mubr.f32.gmra.mrb[0].mxu0 %v120
  %v401 = vpop.f32.mrb[0].mxu0
  %v402 = vadd.f32 %v86, %v401
  %v403 = vpop.f32.mrb[0].mxu0
  %404 = vmatprep.mubr.f32.mxu0 0.0
  %405 = vmatmul.mubr.f32.gmra.mrb[0].mxu0 %v123
  %v406 = vpop.f32.mrb[0].mxu0
  %v407 = vadd.f32 %v86, %v406
  %v408 = vpop.f32.mrb[0].mxu0
  %409 = vmatprep.mubr.f32.mxu0 0.0
  %410 = vmatmul.mubr.f32.gmra.mrb[0].mxu0 %v126
  %v411 = vpop.f32.mrb[0].mxu0
  %v412 = vadd.f32 %v86, %v411
  %v413 = vpop.f32.mrb[0].mxu0
  %414 = vmatprep.mubr.f32.mxu0 0.0
  %415 = vmatmul.mubr.f32.gmra.mrb[0].mxu0 %v129
  %v416 = vpop.f32.mrb[0].mxu0
  %v417 = vadd.f32 %v86, %v416
  %v418 = vpop.f32.mrb[0].mxu0
  %419 = vmatprep.mubr.f32.mxu0 0.0
  %420 = vmatmul.mubr.f32.gmra.mrb[0].mxu0 %v132
  %v421 = vpop.f32.mrb[0].mxu0
  %v422 = vadd.f32 %v86, %v421
  %v423 = vpop.f32.mrb[0].mxu0
  %424 = vmatprep.mubr.f32.mxu0 0.0
  %425 = vmatmul.mubr.f32.gmra.mrb[0].mxu0 %v135
  %v426 = vpop.f32.mrb[0].mxu0
  %v427 = vadd.f32 %v86, %v426
  %v428 = vpop.f32.mrb[0].mxu0
  %429 = vmatprep.mubr.f32.mxu0 0.0
  %430 = vmatmul.mubr.f32.gmra.mrb[0].mxu0 %v138
  %v431 = vpop.f32.mrb[0].mxu0
  %v432 = vadd.f32 %v86, %v431
  %v433 = vpop.f32.mrb[0].mxu0
  %434 = vmatprep.mubr.f32.mxu0 0.0
  %435 = vmatmul.mubr.f32.gmra.mrb[0].mxu0 %v141
  %v436 = vpop.f32.mrb[0].mxu0
  %v437 = vadd.f32 %v86, %v436
  %v438 = vpop.f32.mrb[0].mxu0
  %439 = vmatprep.mubr.f32.mxu0 0.0
  %440 = vmatmul.mubr.f32.gmra.mrb[0].mxu0 %v144
  %v441 = vpop.f32.mrb[0].mxu0
  %v442 = vadd.f32 %v86, %v441
  %v443 = vpop.f32.mrb[0].mxu0
  %444 = vmatprep.mubr.f32.mxu0 0.0
  %445 = vmatmul.mubr.f32.gmra.mrb[0].mxu0 %v147
  %v446 = vpop.f32.mrb[0].mxu0
  %v447 = vadd.f32 %v86, %v446
  %v448 = vpop.f32.mrb[0].mxu0
  %449 = vmatprep.mubr.f32.mxu0 0.0
  %450 = vmatmul.mubr.f32.gmra.mrb[0].mxu0 %v150
  %v451 = vpop.f32.mrb[0].mxu0
  %v452 = vadd.f32 %v86, %v451
  %v453 = vpop.f32.mrb[0].mxu0
  %454 = vmatprep.mubr.f32.mxu0 0.0
  %455 = vmatmul.mubr.f32.gmra.mrb[0].mxu0 %v153
  %v456 = vpop.f32.mrb[0].mxu0
  %v457 = vadd.f32 %v86, %v456
  %v458 = vpop.f32.mrb[0].mxu0
  %459 = vmatprep.mubr.f32.mxu0 0.0
  %460 = vmatmul.mubr.f32.gmra.mrb[0].mxu0 %v156
  %v461 = vpop.f32.mrb[0].mxu0
  %v462 = vadd.f32 %v86, %v461
  %v463 = vpop.f32.mrb[0].mxu0
  %464 = vmatprep.mubr.f32.mxu0 0.0
  %465 = vmatmul.mubr.f32.gmra.mrb[0].mxu0 %v159
  %v466 = vpop.f32.mrb[0].mxu0
  %v467 = vadd.f32 %v86, %v466
  %v468 = vpop.f32.mrb[0].mxu0
  %469 = vmatprep.mubr.f32.mxu0 0.0
  %470 = vmatmul.mubr.f32.gmra.mrb[0].mxu0 %v162
  %v471 = vpop.f32.mrb[0].mxu0
  %v472 = vadd.f32 %v86, %v471
  %v473 = vpop.f32.mrb[0].mxu0
  %474 = vmatprep.mubr.f32.mxu0 0.0
  %475 = vmatmul.mubr.f32.gmra.mrb[0].mxu0 %v165
  %v476 = vpop.f32.mrb[0].mxu0
  %v477 = vadd.f32 %v86, %v476
  %v478 = vpop.f32.mrb[0].mxu0
  %479 = vmatprep.mubr.f32.mxu0 0.0
  %480 = vmatmul.mubr.f32.gmra.mrb[0].mxu0 %v168
  %v481 = vpop.f32.mrb[0].mxu0
  %v482 = vadd.f32 %v86, %v481
  %v483 = vpop.f32.mrb[0].mxu0
  %484 = vmatprep.mubr.f32.mxu0 0.0
  %485 = vmatmul.mubr.f32.gmra.mrb[0].mxu0 %v171
  %v486 = vpop.f32.mrb[0].mxu0
  %v487 = vadd.f32 %v86, %v486
  %v488 = vpop.f32.mrb[0].mxu0
  %489 = vmatprep.mubr.f32.mxu0 0.0
  %490 = vmatmul.mubr.f32.gmra.mrb[0].mxu0 %v174
  %v491 = vpop.f32.mrb[0].mxu0
  %v492 = vadd.f32 %v86, %v491
  %v493 = vpop.f32.mrb[0].mxu0
  %494 = vmatprep.mubr.f32.mxu0 0.0
  %495 = vmatmul.mubr.f32.gmra.mrb[0].mxu0 %v177
  %v496 = vpop.f32.mrb[0].mxu0
  %v497 = vadd.f32 %v86, %v496
  %v498 = vpop.f32.mrb[0].mxu0
  %499 = vmatprep.mubr.f32.mxu0 0.0
  %500 = vmatmul.mubr.f32.gmra.mrb[0].mxu0 %v180
  %v501 = vpop.f32.mrb[0].mxu0
  %v502 = vadd.f32 %v86, %v501
  %v503 = vpop.f32.mrb[0].mxu0
  %504 = vmatprep.mubr.f32.mxu0 0.0
  %505 = vmatmul.mubr.f32.gmra.mrb[0].mxu0 %v183
  %v506 = vpop.f32.mrb[0].mxu0
  %v507 = vadd.f32 %v86, %v506
  %v508 = vpop.f32.mrb[0].mxu0
  %509 = vmatprep.mubr.f32.mxu0 0.0
  %510 = vmatmul.mubr.f32.gmra.mrb[0].mxu0 %v186
  %v511 = vpop.f32.mrb[0].mxu0
  %v512 = vadd.f32 %v86, %v511
  %v513 = vpop.f32.mrb[0].mxu0
  %514 = vmatprep.mubr.f32.mxu0 0.0
  %515 = vmatmul.mubr.f32.gmra.mrb[0].mxu0 %v189
  %v516 = vpop.f32.mrb[0].mxu0
  %v517 = vadd.f32 %v86, %v516
  %v518 = vpop.f32.mrb[0].mxu0
  %519 = vmatprep.mubr.f32.mxu0 0.0
  %520 = vmatmul.mubr.f32.gmra.mrb[0].mxu0 %v192
  %v521 = vpop.f32.mrb[0].mxu0
  %v522 = vadd.f32 %v86, %v521
  %v523 = vpop.f32.mrb[0].mxu0
  %524 = vmatprep.mubr.f32.mxu0 0.0
  %525 = vmatmul.mubr.f32.gmra.mrb[0].mxu0 %v195
  %v526 = vpop.f32.mrb[0].mxu0
  %v527 = vadd.f32 %v86, %v526
  %v528 = vpop.f32.mrb[0].mxu0
  %529 = vmatprep.mubr.f32.mxu0 0.0
  %530 = vmatmul.mubr.f32.gmra.mrb[0].mxu0 %v198
  %v531 = vpop.f32.mrb[0].mxu0
  %v532 = vadd.f32 %v86, %v531
  %v533 = vpop.f32.mrb[0].mxu0
  %534 = vmatprep.mubr.f32.mxu0 0.0
  %535 = vmatmul.mubr.f32.gmra.mrb[0].mxu0 %v201
  %v536 = vpop.f32.mrb[0].mxu0
  %v537 = vadd.f32 %v86, %v536
  %v538 = vpop.f32.mrb[0].mxu0
  %539 = vmatprep.mubr.f32.mxu0 0.0
  %540 = vmatmul.mubr.f32.gmra.mrb[0].mxu0 %v204
  %v541 = vpop.f32.mrb[0].mxu0
  %v542 = vadd.f32 %v86, %v541
  %v543 = vpop.f32.mrb[0].mxu0
  %544 = vmatprep.mubr.f32.mxu0 0.0
  %545 = vmatmul.mubr.f32.gmra.mrb[0].mxu0 %v207
  %v546 = vpop.f32.mrb[0].mxu0
  %v547 = vadd.f32 %v86, %v546
  %v548 = vpop.f32.mrb[0].mxu0
  %549 = vmatprep.mubr.f32.mxu0 0.0
  %550 = vmatmul.mubr.f32.gmra.mrb[0].mxu0 %v210
  %v551 = vpop.f32.mrb[0].mxu0
  %v552 = vadd.f32 %v86, %v551
  %v553 = vpop.f32.mrb[0].mxu0
  %554 = vmatprep.mubr.f32.mxu0 0.0
  %555 = vmatmul.mubr.f32.gmra.mrb[0].mxu0 %v213
  %v556 = vpop.f32.mrb[0].mxu0
  %v557 = vadd.f32 %v86, %v556
  %v558 = vpop.f32.mrb[0].mxu0
  %559 = vmatprep.mubr.f32.mxu0 0.0
  %560 = vmatmul.mubr.f32.gmra.mrb[0].mxu0 %v216
  %v561 = vpop.f32.mrb[0].mxu0
  %v562 = vadd.f32 %v86, %v561
  %v563 = vpop.f32.mrb[0].mxu0
  %564 = vmatprep.mubr.f32.mxu0 0.0
  %565 = vmatmul.mubr.f32.gmra.mrb[0].mxu0 %v219
  %v566 = vpop.f32.mrb[0].mxu0
  %v567 = vadd.f32 %v86, %v566
  %v568 = vpop.f32.mrb[0].mxu0
  %569 = vmatprep.mubr.f32.mxu0 0.0
  %570 = vmatmul.mubr.f32.gmra.mrb[0].mxu0 %v222
  %v571 = vpop.f32.mrb[0].mxu0
  %v572 = vadd.f32 %v86, %v571
  %v573 = vpop.f32.mrb[0].mxu0
  %574 = vmatprep.mubr.f32.mxu0 0.0
  %575 = vmatmul.mubr.f32.gmra.mrb[0].mxu0 %v225
  %v576 = vpop.f32.mrb[0].mxu0
  %v577 = vadd.f32 %v86, %v576
  %v578 = vpop.f32.mrb[0].mxu0
  %579 = vmatprep.mubr.f32.mxu0 0.0
  %580 = vmatmul.mubr.f32.gmra.mrb[0].mxu0 %v228
  %v581 = vpop.f32.mrb[0].mxu0
  %v582 = vadd.f32 %v86, %v581
  %v583 = vpop.f32.mrb[0].mxu0
  %584 = vmatprep.mubr.f32.mxu0 0.0
  %585 = vmatmul.mubr.f32.gmra.mrb[0].mxu0 %v231
  %v586 = vpop.f32.mrb[0].mxu0
  %v587 = vadd.f32 %v86, %v586
  %v588 = vpop.f32.mrb[0].mxu0
  %589 = vmatprep.mubr.f32.mxu0 0.0
  %590 = vmatmul.mubr.f32.gmra.mrb[0].mxu0 %v234
  %v591 = vpop.f32.mrb[0].mxu0
  %v592 = vadd.f32 %v86, %v591
  %v593 = vpop.f32.mrb[0].mxu0
  %594 = vmatprep.mubr.f32.mxu0 0.0
  %595 = vmatmul.mubr.f32.gmra.mrb[0].mxu0 %v237
  %v596 = vpop.f32.mrb[0].mxu0
  %v597 = vadd.f32 %v86, %v596
  %v598 = vpop.f32.mrb[0].mxu0
  %599 = vmatprep.mubr.f32.mxu0 0.0
  %600 = vmatmul.mubr.f32.gmra.mrb[0].mxu0 %v240
  %v601 = vpop.f32.mrb[0].mxu0
  %v602 = vadd.f32 %v86, %v601
  %v603 = vpop.f32.mrb[0].mxu0
  %604 = vmatprep.mubr.f32.mxu0 0.0
  %605 = vmatmul.mubr.f32.gmra.mrb[0].mxu0 %v243
  %v606 = vpop.f32.mrb[0].mxu0
  %v607 = vadd.f32 %v86, %v606
  %v608 = vpop.f32.mrb[0].mxu0
  %609 = vmatprep.mubr.f32.mxu0 0.0
  %610 = vmatmul.mubr.f32.gmra.mrb[0].mxu0 %v246
  %v611 = vpop.f32.mrb[0].mxu0
  %v612 = vadd.f32 %v86, %v611
  %v613 = vpop.f32.mrb[0].mxu0
  %614 = vmatprep.mubr.f32.mxu0 0.0
  %615 = vmatmul.mubr.f32.gmra.mrb[0].mxu0 %v249
  %v616 = vpop.f32.mrb[0].mxu0
  %v617 = vadd.f32 %v86, %v616
  %v618 = vpop.f32.mrb[0].mxu0
  %619 = vmatprep.mubr.f32.mxu0 0.0
  %620 = vmatmul.mubr.f32.gmra.mrb[0].mxu0 %v252
  %v621 = vpop.f32.mrb[0].mxu0
  %v622 = vadd.f32 %v86, %v621
  %v623 = vpop.f32.mrb[0].mxu0
  %624 = vmatprep.mubr.f32.mxu0 0.0
  %625 = vmatmul.mubr.f32.gmra.mrb[0].mxu0 %v255
  %v626 = vpop.f32.mrb[0].mxu0
  %v627 = vadd.f32 %v86, %v626
  %v628 = vpop.f32.mrb[0].mxu0
  %629 = vmatprep.mubr.f32.mxu0 0.0
  %630 = vmatmul.mubr.f32.gmra.mrb[0].mxu0 %v258
  %v631 = vpop.f32.mrb[0].mxu0
  %v632 = vadd.f32 %v86, %v631
  %v633 = vpop.f32.mrb[0].mxu0
  %634 = vmatprep.mubr.f32.mxu0 0.0
  %635 = vmatmul.mubr.f32.gmra.mrb[0].mxu0 %v261
  %v636 = vpop.f32.mrb[0].mxu0
  %v637 = vadd.f32 %v86, %v636
  %v638 = vpop.f32.mrb[0].mxu0
  %639 = vmatprep.mubr.f32.mxu0 0.0
  %640 = vmatmul.mubr.f32.gmra.mrb[0].mxu0 %v264
  %v641 = vpop.f32.mrb[0].mxu0
  %v642 = vadd.f32 %v86, %v641
  %v643 = vpop.f32.mrb[0].mxu0
  %644 = vmatprep.mubr.f32.mxu0 0.0
  %645 = vmatmul.mubr.f32.gmra.mrb[0].mxu0 %v267
  %v646 = vpop.f32.mrb[0].mxu0
  %v647 = vadd.f32 %v86, %v646
  %v648 = vpop.f32.mrb[0].mxu0
  %649 = vmatprep.mubr.f32.mxu0 0.0
  %650 = vmatmul.mubr.f32.gmra.mrb[0].mxu0 %v270
  %v651 = vpop.f32.mrb[0].mxu0
  %v652 = vadd.f32 %v86, %v651
  %v653 = vpop.f32.mrb[0].mxu0
  %654 = vmatprep.mubr.f32.mxu0 0.0
  %655 = vmatmul.mubr.f32.gmra.mrb[0].mxu0 %v273
  %v656 = vpop.f32.mrb[0].mxu0
  %v657 = vadd.f32 %v86, %v656
  %v658 = vpop.f32.mrb[0].mxu0
  %659 = vmatprep.mubr.f32.mxu0 0.0
  %660 = vmatmul.mubr.f32.gmra.mrb[0].mxu0 %v276
  %v661 = vpop.f32.mrb[0].mxu0
  %v662 = vadd.f32 %v86, %v661
  %v663 = vpop.f32.mrb[0].mxu0
  %664 = vmatprep.mubr.f32.mxu0 0.0
  %665 = vmatmul.mubr.f32.gmra.mrb[0].mxu0 %v279
  %v666 = vpop.f32.mrb[0].mxu0
  %v667 = vadd.f32 %v86, %v666
  %v668 = vpop.f32.mrb[0].mxu0
  %669 = vdwg.mxu0
  %v670 = vmax.f32 %v352, 0.0
  %v671 = vmax.f32 %v357, 0.0
  %v672 = vmax.f32 %v362, 0.0
  %v673 = vmax.f32 %v367, 0.0
  %v674 = vmax.f32 %v372, 0.0
  %v675 = vmax.f32 %v377, 0.0
  %v676 = vmax.f32 %v382, 0.0
  %v677 = vmax.f32 %v387, 0.0
  %v678 = vmax.f32 %v392, 0.0
  %v679 = vmax.f32 %v397, 0.0
  %v680 = vmax.f32 %v402, 0.0
  %v681 = vmax.f32 %v407, 0.0
  %v682 = vmax.f32 %v412, 0.0
  %v683 = vmax.f32 %v417, 0.0
  %v684 = vmax.f32 %v422, 0.0
  %v685 = vmax.f32 %v427, 0.0
  %v686 = vmax.f32 %v432, 0.0
  %v687 = vmax.f32 %v437, 0.0
  %v688 = vmax.f32 %v442, 0.0
  %v689 = vmax.f32 %v447, 0.0
  %v690 = vmax.f32 %v452, 0.0
  %v691 = vmax.f32 %v457, 0.0
  %v692 = vmax.f32 %v462, 0.0
  %v693 = vmax.f32 %v467, 0.0
  %v694 = vmax.f32 %v472, 0.0
  %v695 = vmax.f32 %v477, 0.0
  %v696 = vmax.f32 %v482, 0.0
  %v697 = vmax.f32 %v487, 0.0
  %v698 = vmax.f32 %v492, 0.0
  %v699 = vmax.f32 %v497, 0.0
  %v700 = vmax.f32 %v502, 0.0
  %v701 = vmax.f32 %v507, 0.0
  %v702 = vmax.f32 %v512, 0.0
  %v703 = vmax.f32 %v517, 0.0
  %v704 = vmax.f32 %v522, 0.0
  %v705 = vmax.f32 %v527, 0.0
  %v706 = vmax.f32 %v532, 0.0
  %v707 = vmax.f32 %v537, 0.0
  %v708 = vmax.f32 %v542, 0.0
  %v709 = vmax.f32 %v547, 0.0
  %v710 = vmax.f32 %v552, 0.0
  %v711 = vmax.f32 %v557, 0.0
  %v712 = vmax.f32 %v562, 0.0
  %v713 = vmax.f32 %v567, 0.0
  %v714 = vmax.f32 %v572, 0.0
  %v715 = vmax.f32 %v577, 0.0
  %v716 = vmax.f32 %v582, 0.0
  %v717 = vmax.f32 %v587, 0.0
  %v718 = vmax.f32 %v592, 0.0
  %v719 = vmax.f32 %v597, 0.0
  %v720 = vmax.f32 %v602, 0.0
  %v721 = vmax.f32 %v607, 0.0
  %v722 = vmax.f32 %v612, 0.0
  %v723 = vmax.f32 %v617, 0.0
  %v724 = vmax.f32 %v622, 0.0
  %v725 = vmax.f32 %v627, 0.0
  %v726 = vmax.f32 %v632, 0.0
  %v727 = vmax.f32 %v637, 0.0
  %v728 = vmax.f32 %v642, 0.0
  %v729 = vmax.f32 %v647, 0.0
  %v730 = vmax.f32 %v652, 0.0
  %v731 = vmax.f32 %v657, 0.0
  %v732 = vmax.f32 %v662, 0.0
  %v733 = vmax.f32 %v667, 0.0
  %v734 = vmax.f32 %v670, %v686
  %v735 = vmax.f32 %v671, %v687
  %v736 = vmax.f32 %v672, %v688
  %v737 = vmax.f32 %v673, %v689
  %v738 = vmax.f32 %v674, %v690
  %v739 = vmax.f32 %v675, %v691
  %v740 = vmax.f32 %v676, %v692
  %v741 = vmax.f32 %v677, %v693
  %v742 = vmax.f32 %v678, %v694
  %v743 = vmax.f32 %v679, %v695
  %v744 = vmax.f32 %v680, %v696
  %v745 = vmax.f32 %v681, %v697
  %v746 = vmax.f32 %v682, %v698
  %v747 = vmax.f32 %v683, %v699
  %v748 = vmax.f32 %v684, %v700
  %v749 = vmax.f32 %v685, %v701
  %v750 = vmax.f32 %v734, %v702
  %v751 = vmax.f32 %v735, %v703
  %v752 = vmax.f32 %v736, %v704
  %v753 = vmax.f32 %v737, %v705
  %v754 = vmax.f32 %v738, %v706
  %v755 = vmax.f32 %v739, %v707
  %v756 = vmax.f32 %v740, %v708
  %v757 = vmax.f32 %v741, %v709
  %v758 = vmax.f32 %v742, %v710
  %v759 = vmax.f32 %v743, %v711
  %v760 = vmax.f32 %v744, %v712
  %v761 = vmax.f32 %v745, %v713
  %v762 = vmax.f32 %v746, %v714
  %v763 = vmax.f32 %v747, %v715
  %v764 = vmax.f32 %v748, %v716
  %v765 = vmax.f32 %v749, %v717
  %v766 = vmax.f32 %v750, %v718
  %v767 = vmax.f32 %v751, %v719
  %v768 = vmax.f32 %v752, %v720
  %v769 = vmax.f32 %v753, %v721
  %v770 = vmax.f32 %v754, %v722
  %v771 = vmax.f32 %v755, %v723
  %v772 = vmax.f32 %v756, %v724
  %v773 = vmax.f32 %v757, %v725
  %v774 = vmax.f32 %v758, %v726
  %v775 = vmax.f32 %v759, %v727
  %v776 = vmax.f32 %v760, %v728
  %v777 = vmax.f32 %v761, %v729
  %v778 = vmax.f32 %v762, %v730
  %v779 = vmax.f32 %v763, %v731
  %v780 = vmax.f32 %v764, %v732
  %v781 = vmax.f32 %v765, %v733
  %vm782 = vcmask 130048
  %783 = vst.msk [vmem:[%s3] sm:$0xff] %vm782, %v766
  %784 = vst.msk [vmem:[%s3 + $0x8] sm:$0xff] %vm782, %v767
  %785 = vst.msk [vmem:[%s3 + $0x10] sm:$0xff] %vm782, %v768
  %786 = vst.msk [vmem:[%s3 + $0x18] sm:$0xff] %vm782, %v769
  %787 = vst.msk [vmem:[%s3 + $0x20] sm:$0xff] %vm782, %v770
  %788 = vst.msk [vmem:[%s3 + $0x28] sm:$0xff] %vm782, %v771
  %789 = vst.msk [vmem:[%s3 + $0x30] sm:$0xff] %vm782, %v772
  %790 = vst.msk [vmem:[%s3 + $0x38] sm:$0xff] %vm782, %v773
  %791 = vst.msk [vmem:[%s3 + $0x40] sm:$0xff] %vm782, %v774
  %792 = vst.msk [vmem:[%s3 + $0x48] sm:$0xff] %vm782, %v775
  %793 = vst.msk [vmem:[%s3 + $0x50] sm:$0xff] %vm782, %v776
  %794 = vst.msk [vmem:[%s3 + $0x58] sm:$0xff] %vm782, %v777
  %795 = vst.msk [vmem:[%s3 + $0x60] sm:$0xff] %vm782, %v778
  %796 = vst.msk [vmem:[%s3 + $0x68] sm:$0xff] %vm782, %v779
  %797 = vst.msk [vmem:[%s3 + $0x70] sm:$0xff] %vm782, %v780
  %798 = vst.msk [vmem:[%s3 + $0x78] sm:$0xff] %vm782, %v781
  // Predicated region
  $region14: #{depbert_forward.4} parent=0 // pred_check
    _
  $region15: #{depbert_forward.4} parent=0 // pred_check_branch
    %800 = sbr.rel (0) target = $region17
  $region16: #{depbert_forward.4} parent=0 // pred_region
    _
  $region17: #{depbert_forward.4} parent=0 // pred_fallthru
    _
  // Predicated region
  $region18: #{depbert_forward.4} parent=0 // pred_check
    _
  $region19: #{depbert_forward.4} parent=0 // pred_check_branch
    %802 = sbr.rel (0) target = $region21
  $region20: #{depbert_forward.4} parent=0 // pred_region
    _
  $region21: #{depbert_forward.4} parent=0 // pred_fallthru
    _

// kernel: depbert_forward.3
$region0: #{depbert_forward.3}
  #allocation0 [shape = 'u32[]', space=smem, size = 0x4, offset = 0x4, fixed_abs, tag = 'smem constant byte address 0x4 - core index']
  #allocation1 [shape = 'u32[144,128]{1,0:T(1,128)}', space=vmem, size = 0x12000, scoped, tag = 'internal scratch']
  #allocation2 [shape = 'f32[16,32]{1,0:T(8,128)}', space=vmem, size = 0x2000, scoped, tag = 'scratch operand']
  #allocation3 [shape = 's32[1]{0}', space=sflag, size = 0x4, scoped, tag = 'scratch operand']
  #allocation4 [shape = 's32[]', space=sflag, size = 0x4, offset = 0, fixed_abs, tag = 'sflag constant byte address 0x0 - dummy sync flag']
  %s0 = inlined_call_operand.vmem [shape: f32[16,32], index: 0, kind: input, shape index: {}]
  %s1 = inlined_call_operand.vmem [shape: f32[2,1,8], index: 1, kind: input, shape index: {}]
  %s2 = inlined_call_operand.vmem [shape: f32[1,32], index: 2, kind: input, shape index: {}]
  %s3 = inlined_call_operand.vmem [shape: f32[1,32], index: 3, kind: input, shape index: {}]
  %s4 = inlined_call_operand.vmem [shape: bf16[2,32,96], index: 4, kind: input, shape index: {}]
  %s5 = inlined_call_operand.vmem [shape: f32[2,1,96], index: 5, kind: input, shape index: {}]
  %s6 = inlined_call_operand.vmem [shape: bf16[2,32,32], index: 6, kind: input, shape index: {}]
  %s7 = inlined_call_operand.vmem [shape: f32[2,1,32], index: 7, kind: input, shape index: {}]
  %s8 = inlined_call_operand.vmem [shape: f32[2,1,32], index: 8, kind: input, shape index: {}]
  %s9 = inlined_call_operand.vmem [shape: f32[2,1,32], index: 9, kind: input, shape index: {}]
  %s10 = inlined_call_operand.vmem [shape: bf16[2,32,64], index: 10, kind: input, shape index: {}]
  %s11 = inlined_call_operand.vmem [shape: f32[2,1,64], index: 11, kind: input, shape index: {}]
  %s12 = inlined_call_operand.vmem [shape: bf16[2,64,32], index: 12, kind: input, shape index: {}]
  %s13 = inlined_call_operand.vmem [shape: f32[2,1,32], index: 13, kind: input, shape index: {}]
  %s14 = inlined_call_operand.vmem [shape: f32[2,1,32], index: 14, kind: input, shape index: {}]
  %s15 = inlined_call_operand.vmem [shape: f32[2,1,32], index: 15, kind: input, shape index: {}]
  %s16 = inlined_call_operand.vmem [shape: f32[32,32], index: 16, kind: input, shape index: {}]
  %s17 = inlined_call_operand.vmem [shape: f32[1,32], index: 17, kind: input, shape index: {}]
  %s18 = inlined_call_operand.vmem [shape: f32[2,32], index: 18, kind: output, shape index: {}]
  %s19 = sld [smem:[#allocation0]]
  $region143: #{depbert_forward.3} parent=0
    _
  %s21 = ssub.s32 1, %s19
  %s22 = scalar_select 0, %s21, %s19
  loop: start=0, step=1, limit=4
  $region2: #{depbert_forward.3} parent=0 // loop_pre_header
    _
  $region3: #{depbert_forward.3} parent=0 // loop_header
    %s24 = sphi 0, %s28
    %p25 = scmp.ge.s32.totalorder %s24, 4
    %s31 = sphi 0, %s43
    %s32 = sphi 0, %s39
    %s33 = sphi 0, %s31
    %s34 = sphi 0, %s32
    %s35 = sphi 0, %s33
    %s36 = sphi 0, %s34
    %s46 = sphi 0, %s48
    %s49 = sphi 0, %s46
    %s50 = sphi 0, %s49
    %s66 = sphi 0, %s50
    %s70 = sphi 0, %s70
    %s72 = sphi 0, %s70
    %s73 = sphi 0, %s72
    %s87 = sphi 0, %s73
    %s91 = sphi 0, %s91
    %s93 = sphi 0, %s91
    %s94 = sphi 0, %s93
    %s108 = sphi 0, %s94
    %s114 = sphi 0, %s116
    %s117 = sphi 0, %s114
    %s118 = sphi 0, %s117
    %s134 = sphi 0, %s118
    %s140 = sphi 0, %s142
    %s143 = sphi 0, %s140
    %s144 = sphi 0, %s143
    %s160 = sphi 0, %s144
    %s166 = sphi 0, %s168
    %s169 = sphi 0, %s166
    %s170 = sphi 0, %s169
    %s186 = sphi 0, %s170
    %s192 = sphi 0, %s194
    %s195 = sphi 0, %s192
    %s196 = sphi 0, %s195
    %s212 = sphi 0, %s196
    %s218 = sphi 0, %s220
    %s221 = sphi 0, %s218
    %s222 = sphi 0, %s221
    %s238 = sphi 0, %s222
    %s244 = sphi 0, %s246
    %s247 = sphi 0, %s244
    %s248 = sphi 0, %s247
    %s264 = sphi 0, %s248
    %s270 = sphi 0, %s272
    %s273 = sphi 0, %s270
    %s274 = sphi 0, %s273
    %s290 = sphi 0, %s274
    %s296 = sphi 0, %s298
    %s299 = sphi 0, %s296
    %s300 = sphi 0, %s299
    %s316 = sphi 0, %s300
    %s322 = sphi 0, %s324
    %s325 = sphi 0, %s322
    %s326 = sphi 0, %s325
    %s342 = sphi 0, %s326
    %s348 = sphi 0, %s350
    %s351 = sphi 0, %s348
    %s352 = sphi 0, %s351
    %s368 = sphi 0, %s352
    %s374 = sphi 0, %s376
    %s377 = sphi 0, %s374
    %s378 = sphi 0, %s377
    %s394 = sphi 0, %s378
    %s400 = sphi 0, %s402
    %s403 = sphi 0, %s400
    %s404 = sphi 0, %s403
    %s420 = sphi 0, %s404
    %s424 = sphi 0, %s424
    %s426 = sphi 0, %s424
    %s427 = sphi 0, %s426
    %s441 = sphi 0, %s427
    %s445 = sphi 0, %s445
    %s447 = sphi 0, %s445
    %s448 = sphi 0, %s447
    %s462 = sphi 0, %s448
    %s468 = sphi 0, %s470
    %s471 = sphi 0, %s468
    %s472 = sphi 0, %s471
    %s488 = sphi 0, %s472
  $region4: #{depbert_forward.3} parent=0 // loop_header_branch
    %27 = sbr.rel (%p25) target = $region8
  $region5: #{depbert_forward.3} parent=0 // loop_body
    %s29 = ssub.s32 %s24, 1
    %s30 = ssub.s32 %s24, 2
    %s37 = sadd.s32 1, %s32
    %p38 = scmp.ge.s32.totalorder %s37, 2
    %s39 = scalar_select %p38, 0, %s37
    %s40 = sadd.s32 1, %s31
    %s41 = scalar_select %p38, %s40, %s31
    %p42 = scmp.ge.s32.totalorder %s41, 1
    %s43 = scalar_select %p42, 0, %s41
    %s44 = ssub.s32 %s31, %s43
    %p45 = scmp.eq.s32.totalorder %s44, 0
    %s47 = sadd.s32 %s46, 1
    %s48 = scalar_select %p45, %s46, %s47
    %p51 = pneg %p45
    %p52 = scmp.eq.s32.totalorder %s24, 1
    %p53 = por %p51, %p52
    %p54 = scmp.ne.s32.totalorder %s46, %s49
    %p55 = scmp.eq.s32.totalorder %s24, 0
    %p56 = por %p54, %p55
    %p57 = scmp.ne.s32.totalorder %s46, %s49
    %p58 = scmp.eq.s32.totalorder %s29, 1
    %p59 = por %p57, %p58
    %p60 = scmp.ne.s32.totalorder %s49, %s50
    %p61 = scmp.eq.s32.totalorder %s29, 0
    %p62 = por %p60, %p61
    %p63 = scmp.ne.s32.totalorder %s49, %s50
    %p64 = scmp.eq.s32.totalorder %s30, 1
    %p65 = por %p63, %p64
    %p67 = scmp.ne.s32.totalorder %s50, %s66
    %p68 = scmp.eq.s32.totalorder %s30, 0
    %p69 = por %p67, %p68
    %s71 = sadd.s32 %s70, 1
    %p74 = scmp.eq.s32.totalorder %s24, 1
    %p75 = scmp.ne.s32.totalorder %s70, %s72
    %p76 = scmp.eq.s32.totalorder %s24, 0
    %p77 = por %p75, %p76
    %p78 = scmp.ne.s32.totalorder %s70, %s72
    %p79 = scmp.eq.s32.totalorder %s29, 1
    %p80 = por %p78, %p79
    %p81 = scmp.ne.s32.totalorder %s72, %s73
    %p82 = scmp.eq.s32.totalorder %s29, 0
    %p83 = por %p81, %p82
    %p84 = scmp.ne.s32.totalorder %s72, %s73
    %p85 = scmp.eq.s32.totalorder %s30, 1
    %p86 = por %p84, %p85
    %p88 = scmp.ne.s32.totalorder %s73, %s87
    %p89 = scmp.eq.s32.totalorder %s30, 0
    %p90 = por %p88, %p89
    %s92 = sadd.s32 %s91, 1
    %p95 = scmp.eq.s32.totalorder %s24, 1
    %p96 = scmp.ne.s32.totalorder %s91, %s93
    %p97 = scmp.eq.s32.totalorder %s24, 0
    %p98 = por %p96, %p97
    %p99 = scmp.ne.s32.totalorder %s91, %s93
    %p100 = scmp.eq.s32.totalorder %s29, 1
    %p101 = por %p99, %p100
    %p102 = scmp.ne.s32.totalorder %s93, %s94
    %p103 = scmp.eq.s32.totalorder %s29, 0
    %p104 = por %p102, %p103
    %p105 = scmp.ne.s32.totalorder %s93, %s94
    %p106 = scmp.eq.s32.totalorder %s30, 1
    %p107 = por %p105, %p106
    %p109 = scmp.ne.s32.totalorder %s94, %s108
    %p110 = scmp.eq.s32.totalorder %s30, 0
    %p111 = por %p109, %p110
    %s112 = ssub.s32 %s32, %s39
    %p113 = scmp.eq.s32.totalorder %s112, 0
    %s115 = sadd.s32 %s114, 1
    %s116 = scalar_select %p113, %s114, %s115
    %p119 = pneg %p113
    %p120 = scmp.eq.s32.totalorder %s24, 1
    %p121 = por %p119, %p120
    %p122 = scmp.ne.s32.totalorder %s114, %s117
    %p123 = scmp.eq.s32.totalorder %s24, 0
    %p124 = por %p122, %p123
    %p125 = scmp.ne.s32.totalorder %s114, %s117
    %p126 = scmp.eq.s32.totalorder %s29, 1
    %p127 = por %p125, %p126
    %p128 = scmp.ne.s32.totalorder %s117, %s118
    %p129 = scmp.eq.s32.totalorder %s29, 0
    %p130 = por %p128, %p129
    %p131 = scmp.ne.s32.totalorder %s117, %s118
    %p132 = scmp.eq.s32.totalorder %s30, 1
    %p133 = por %p131, %p132
    %p135 = scmp.ne.s32.totalorder %s118, %s134
    %p136 = scmp.eq.s32.totalorder %s30, 0
    %p137 = por %p135, %p136
    %s138 = ssub.s32 %s32, %s39
    %p139 = scmp.eq.s32.totalorder %s138, 0
    %s141 = sadd.s32 %s140, 1
    %s142 = scalar_select %p139, %s140, %s141
    %p145 = pneg %p139
    %p146 = scmp.eq.s32.totalorder %s24, 1
    %p147 = por %p145, %p146
    %p148 = scmp.ne.s32.totalorder %s140, %s143
    %p149 = scmp.eq.s32.totalorder %s24, 0
    %p150 = por %p148, %p149
    %p151 = scmp.ne.s32.totalorder %s140, %s143
    %p152 = scmp.eq.s32.totalorder %s29, 1
    %p153 = por %p151, %p152
    %p154 = scmp.ne.s32.totalorder %s143, %s144
    %p155 = scmp.eq.s32.totalorder %s29, 0
    %p156 = por %p154, %p155
    %p157 = scmp.ne.s32.totalorder %s143, %s144
    %p158 = scmp.eq.s32.totalorder %s30, 1
    %p159 = por %p157, %p158
    %p161 = scmp.ne.s32.totalorder %s144, %s160
    %p162 = scmp.eq.s32.totalorder %s30, 0
    %p163 = por %p161, %p162
    %s164 = ssub.s32 %s32, %s39
    %p165 = scmp.eq.s32.totalorder %s164, 0
    %s167 = sadd.s32 %s166, 1
    %s168 = scalar_select %p165, %s166, %s167
    %p171 = pneg %p165
    %p172 = scmp.eq.s32.totalorder %s24, 1
    %p173 = por %p171, %p172
    %p174 = scmp.ne.s32.totalorder %s166, %s169
    %p175 = scmp.eq.s32.totalorder %s24, 0
    %p176 = por %p174, %p175
    %p177 = scmp.ne.s32.totalorder %s166, %s169
    %p178 = scmp.eq.s32.totalorder %s29, 1
    %p179 = por %p177, %p178
    %p180 = scmp.ne.s32.totalorder %s169, %s170
    %p181 = scmp.eq.s32.totalorder %s29, 0
    %p182 = por %p180, %p181
    %p183 = scmp.ne.s32.totalorder %s169, %s170
    %p184 = scmp.eq.s32.totalorder %s30, 1
    %p185 = por %p183, %p184
    %p187 = scmp.ne.s32.totalorder %s170, %s186
    %p188 = scmp.eq.s32.totalorder %s30, 0
    %p189 = por %p187, %p188
    %s190 = ssub.s32 %s32, %s39
    %p191 = scmp.eq.s32.totalorder %s190, 0
    %s193 = sadd.s32 %s192, 1
    %s194 = scalar_select %p191, %s192, %s193
    %p197 = pneg %p191
    %p198 = scmp.eq.s32.totalorder %s24, 1
    %p199 = por %p197, %p198
    %p200 = scmp.ne.s32.totalorder %s192, %s195
    %p201 = scmp.eq.s32.totalorder %s24, 0
    %p202 = por %p200, %p201
    %p203 = scmp.ne.s32.totalorder %s192, %s195
    %p204 = scmp.eq.s32.totalorder %s29, 1
    %p205 = por %p203, %p204
    %p206 = scmp.ne.s32.totalorder %s195, %s196
    %p207 = scmp.eq.s32.totalorder %s29, 0
    %p208 = por %p206, %p207
    %p209 = scmp.ne.s32.totalorder %s195, %s196
    %p210 = scmp.eq.s32.totalorder %s30, 1
    %p211 = por %p209, %p210
    %p213 = scmp.ne.s32.totalorder %s196, %s212
    %p214 = scmp.eq.s32.totalorder %s30, 0
    %p215 = por %p213, %p214
    %s216 = ssub.s32 %s32, %s39
    %p217 = scmp.eq.s32.totalorder %s216, 0
    %s219 = sadd.s32 %s218, 1
    %s220 = scalar_select %p217, %s218, %s219
    %p223 = pneg %p217
    %p224 = scmp.eq.s32.totalorder %s24, 1
    %p225 = por %p223, %p224
    %p226 = scmp.ne.s32.totalorder %s218, %s221
    %p227 = scmp.eq.s32.totalorder %s24, 0
    %p228 = por %p226, %p227
    %p229 = scmp.ne.s32.totalorder %s218, %s221
    %p230 = scmp.eq.s32.totalorder %s29, 1
    %p231 = por %p229, %p230
    %p232 = scmp.ne.s32.totalorder %s221, %s222
    %p233 = scmp.eq.s32.totalorder %s29, 0
    %p234 = por %p232, %p233
    %p235 = scmp.ne.s32.totalorder %s221, %s222
    %p236 = scmp.eq.s32.totalorder %s30, 1
    %p237 = por %p235, %p236
    %p239 = scmp.ne.s32.totalorder %s222, %s238
    %p240 = scmp.eq.s32.totalorder %s30, 0
    %p241 = por %p239, %p240
    %s242 = ssub.s32 %s32, %s39
    %p243 = scmp.eq.s32.totalorder %s242, 0
    %s245 = sadd.s32 %s244, 1
    %s246 = scalar_select %p243, %s244, %s245
    %p249 = pneg %p243
    %p250 = scmp.eq.s32.totalorder %s24, 1
    %p251 = por %p249, %p250
    %p252 = scmp.ne.s32.totalorder %s244, %s247
    %p253 = scmp.eq.s32.totalorder %s24, 0
    %p254 = por %p252, %p253
    %p255 = scmp.ne.s32.totalorder %s244, %s247
    %p256 = scmp.eq.s32.totalorder %s29, 1
    %p257 = por %p255, %p256
    %p258 = scmp.ne.s32.totalorder %s247, %s248
    %p259 = scmp.eq.s32.totalorder %s29, 0
    %p260 = por %p258, %p259
    %p261 = scmp.ne.s32.totalorder %s247, %s248
    %p262 = scmp.eq.s32.totalorder %s30, 1
    %p263 = por %p261, %p262
    %p265 = scmp.ne.s32.totalorder %s248, %s264
    %p266 = scmp.eq.s32.totalorder %s30, 0
    %p267 = por %p265, %p266
    %s268 = ssub.s32 %s32, %s39
    %p269 = scmp.eq.s32.totalorder %s268, 0
    %s271 = sadd.s32 %s270, 1
    %s272 = scalar_select %p269, %s270, %s271
    %p275 = pneg %p269
    %p276 = scmp.eq.s32.totalorder %s24, 1
    %p277 = por %p275, %p276
    %p278 = scmp.ne.s32.totalorder %s270, %s273
    %p279 = scmp.eq.s32.totalorder %s24, 0
    %p280 = por %p278, %p279
    %p281 = scmp.ne.s32.totalorder %s270, %s273
    %p282 = scmp.eq.s32.totalorder %s29, 1
    %p283 = por %p281, %p282
    %p284 = scmp.ne.s32.totalorder %s273, %s274
    %p285 = scmp.eq.s32.totalorder %s29, 0
    %p286 = por %p284, %p285
    %p287 = scmp.ne.s32.totalorder %s273, %s274
    %p288 = scmp.eq.s32.totalorder %s30, 1
    %p289 = por %p287, %p288
    %p291 = scmp.ne.s32.totalorder %s274, %s290
    %p292 = scmp.eq.s32.totalorder %s30, 0
    %p293 = por %p291, %p292
    %s294 = ssub.s32 %s32, %s39
    %p295 = scmp.eq.s32.totalorder %s294, 0
    %s297 = sadd.s32 %s296, 1
    %s298 = scalar_select %p295, %s296, %s297
    %p301 = pneg %p295
    %p302 = scmp.eq.s32.totalorder %s24, 1
    %p303 = por %p301, %p302
    %p304 = scmp.ne.s32.totalorder %s296, %s299
    %p305 = scmp.eq.s32.totalorder %s24, 0
    %p306 = por %p304, %p305
    %p307 = scmp.ne.s32.totalorder %s296, %s299
    %p308 = scmp.eq.s32.totalorder %s29, 1
    %p309 = por %p307, %p308
    %p310 = scmp.ne.s32.totalorder %s299, %s300
    %p311 = scmp.eq.s32.totalorder %s29, 0
    %p312 = por %p310, %p311
    %p313 = scmp.ne.s32.totalorder %s299, %s300
    %p314 = scmp.eq.s32.totalorder %s30, 1
    %p315 = por %p313, %p314
    %p317 = scmp.ne.s32.totalorder %s300, %s316
    %p318 = scmp.eq.s32.totalorder %s30, 0
    %p319 = por %p317, %p318
    %s320 = ssub.s32 %s32, %s39
    %p321 = scmp.eq.s32.totalorder %s320, 0
    %s323 = sadd.s32 %s322, 1
    %s324 = scalar_select %p321, %s322, %s323
    %p327 = pneg %p321
    %p328 = scmp.eq.s32.totalorder %s24, 1
    %p329 = por %p327, %p328
    %p330 = scmp.ne.s32.totalorder %s322, %s325
    %p331 = scmp.eq.s32.totalorder %s24, 0
    %p332 = por %p330, %p331
    %p333 = scmp.ne.s32.totalorder %s322, %s325
    %p334 = scmp.eq.s32.totalorder %s29, 1
    %p335 = por %p333, %p334
    %p336 = scmp.ne.s32.totalorder %s325, %s326
    %p337 = scmp.eq.s32.totalorder %s29, 0
    %p338 = por %p336, %p337
    %p339 = scmp.ne.s32.totalorder %s325, %s326
    %p340 = scmp.eq.s32.totalorder %s30, 1
    %p341 = por %p339, %p340
    %p343 = scmp.ne.s32.totalorder %s326, %s342
    %p344 = scmp.eq.s32.totalorder %s30, 0
    %p345 = por %p343, %p344
    %s346 = ssub.s32 %s32, %s39
    %p347 = scmp.eq.s32.totalorder %s346, 0
    %s349 = sadd.s32 %s348, 1
    %s350 = scalar_select %p347, %s348, %s349
    %p353 = pneg %p347
    %p354 = scmp.eq.s32.totalorder %s24, 1
    %p355 = por %p353, %p354
    %p356 = scmp.ne.s32.totalorder %s348, %s351
    %p357 = scmp.eq.s32.totalorder %s24, 0
    %p358 = por %p356, %p357
    %p359 = scmp.ne.s32.totalorder %s348, %s351
    %p360 = scmp.eq.s32.totalorder %s29, 1
    %p361 = por %p359, %p360
    %p362 = scmp.ne.s32.totalorder %s351, %s352
    %p363 = scmp.eq.s32.totalorder %s29, 0
    %p364 = por %p362, %p363
    %p365 = scmp.ne.s32.totalorder %s351, %s352
    %p366 = scmp.eq.s32.totalorder %s30, 1
    %p367 = por %p365, %p366
    %p369 = scmp.ne.s32.totalorder %s352, %s368
    %p370 = scmp.eq.s32.totalorder %s30, 0
    %p371 = por %p369, %p370
    %s372 = ssub.s32 %s32, %s39
    %p373 = scmp.eq.s32.totalorder %s372, 0
    %s375 = sadd.s32 %s374, 1
    %s376 = scalar_select %p373, %s374, %s375
    %p379 = pneg %p373
    %p380 = scmp.eq.s32.totalorder %s24, 1
    %p381 = por %p379, %p380
    %p382 = scmp.ne.s32.totalorder %s374, %s377
    %p383 = scmp.eq.s32.totalorder %s24, 0
    %p384 = por %p382, %p383
    %p385 = scmp.ne.s32.totalorder %s374, %s377
    %p386 = scmp.eq.s32.totalorder %s29, 1
    %p387 = por %p385, %p386
    %p388 = scmp.ne.s32.totalorder %s377, %s378
    %p389 = scmp.eq.s32.totalorder %s29, 0
    %p390 = por %p388, %p389
    %p391 = scmp.ne.s32.totalorder %s377, %s378
    %p392 = scmp.eq.s32.totalorder %s30, 1
    %p393 = por %p391, %p392
    %p395 = scmp.ne.s32.totalorder %s378, %s394
    %p396 = scmp.eq.s32.totalorder %s30, 0
    %p397 = por %p395, %p396
    %s398 = ssub.s32 %s32, %s39
    %p399 = scmp.eq.s32.totalorder %s398, 0
    %s401 = sadd.s32 %s400, 1
    %s402 = scalar_select %p399, %s400, %s401
    %p405 = pneg %p399
    %p406 = scmp.eq.s32.totalorder %s24, 1
    %p407 = por %p405, %p406
    %p408 = scmp.ne.s32.totalorder %s400, %s403
    %p409 = scmp.eq.s32.totalorder %s24, 0
    %p410 = por %p408, %p409
    %p411 = scmp.ne.s32.totalorder %s400, %s403
    %p412 = scmp.eq.s32.totalorder %s29, 1
    %p413 = por %p411, %p412
    %p414 = scmp.ne.s32.totalorder %s403, %s404
    %p415 = scmp.eq.s32.totalorder %s29, 0
    %p416 = por %p414, %p415
    %p417 = scmp.ne.s32.totalorder %s403, %s404
    %p418 = scmp.eq.s32.totalorder %s30, 1
    %p419 = por %p417, %p418
    %p421 = scmp.ne.s32.totalorder %s404, %s420
    %p422 = scmp.eq.s32.totalorder %s30, 0
    %p423 = por %p421, %p422
    %s425 = sadd.s32 %s424, 1
    %p428 = scmp.eq.s32.totalorder %s24, 1
    %p429 = scmp.ne.s32.totalorder %s424, %s426
    %p430 = scmp.eq.s32.totalorder %s24, 0
    %p431 = por %p429, %p430
    %p432 = scmp.ne.s32.totalorder %s424, %s426
    %p433 = scmp.eq.s32.totalorder %s29, 1
    %p434 = por %p432, %p433
    %p435 = scmp.ne.s32.totalorder %s426, %s427
    %p436 = scmp.eq.s32.totalorder %s29, 0
    %p437 = por %p435, %p436
    %p438 = scmp.ne.s32.totalorder %s426, %s427
    %p439 = scmp.eq.s32.totalorder %s30, 1
    %p440 = por %p438, %p439
    %p442 = scmp.ne.s32.totalorder %s427, %s441
    %p443 = scmp.eq.s32.totalorder %s30, 0
    %p444 = por %p442, %p443
    %s446 = sadd.s32 %s445, 1
    %p449 = scmp.eq.s32.totalorder %s24, 1
    %p450 = scmp.ne.s32.totalorder %s445, %s447
    %p451 = scmp.eq.s32.totalorder %s24, 0
    %p452 = por %p450, %p451
    %p453 = scmp.ne.s32.totalorder %s445, %s447
    %p454 = scmp.eq.s32.totalorder %s29, 1
    %p455 = por %p453, %p454
    %p456 = scmp.ne.s32.totalorder %s447, %s448
    %p457 = scmp.eq.s32.totalorder %s29, 0
    %p458 = por %p456, %p457
    %p459 = scmp.ne.s32.totalorder %s447, %s448
    %p460 = scmp.eq.s32.totalorder %s30, 1
    %p461 = por %p459, %p460
    %p463 = scmp.ne.s32.totalorder %s448, %s462
    %p464 = scmp.eq.s32.totalorder %s30, 0
    %p465 = por %p463, %p464
    %s466 = ssub.s32 %s31, %s43
    %p467 = scmp.eq.s32.totalorder %s466, 0
    %s469 = sadd.s32 %s468, 1
    %s470 = scalar_select %p467, %s468, %s469
    %p473 = pneg %p467
    %p474 = scmp.eq.s32.totalorder %s24, 1
    %p475 = por %p473, %p474
    %p476 = scmp.ne.s32.totalorder %s468, %s471
    %p477 = scmp.eq.s32.totalorder %s24, 0
    %p478 = por %p476, %p477
    %p479 = scmp.ne.s32.totalorder %s468, %s471
    %p480 = scmp.eq.s32.totalorder %s29, 1
    %p481 = por %p479, %p480
    %p482 = scmp.ne.s32.totalorder %s471, %s472
    %p483 = scmp.eq.s32.totalorder %s29, 0
    %p484 = por %p482, %p483
    %p485 = scmp.ne.s32.totalorder %s471, %s472
    %p486 = scmp.eq.s32.totalorder %s30, 1
    %p487 = por %p485, %p486
    %p489 = scmp.ne.s32.totalorder %s472, %s488
    %p490 = scmp.eq.s32.totalorder %s30, 0
    %p491 = por %p489, %p490
    %p492 = scmp.le.s32.totalorder 1, %s24
    %p493 = scmp.lt.s32.totalorder %s24, 3
    %p494 = pnand %p492, %p493
    %p495 = pneg %p494
    // Predicated region
    $region9: #{depbert_forward.3} parent=5 // pred_check
      _
    $region10: #{depbert_forward.3} parent=5 // pred_check_branch
      %497 = sbr.rel (%p494) target = $region12
    $region11: #{depbert_forward.3} parent=5 // pred_region
      %s498 = ssub.s32 %s24, 1
      // Predicated region
      $region13: #{depbert_forward.3} parent=11 // pred_check
        %p499 = pneg %p62
      $region14: #{depbert_forward.3} parent=11 // pred_check_branch
        %501 = sbr.rel (%p499) target = $region16
      $region15: #{depbert_forward.3} parent=11 // pred_region
        %s502 = smul.u32 2, %s33
        %p503 = scmp.lt.s32.totalorder %s502, 1
        %s504 = scalar_select %p503, %s502, 1
        %s505 = scalar_lea.vmem %s1, %s504
        %s506 = smul.u32 2, %s33
      $region16: #{depbert_forward.3} parent=11 // pred_fallthru
        _
      // Predicated region
      $region17: #{depbert_forward.3} parent=11 // pred_check
        %p507 = pneg %p83
      $region18: #{depbert_forward.3} parent=11 // pred_check_branch
        %509 = sbr.rel (%p507) target = $region20
      $region19: #{depbert_forward.3} parent=11 // pred_region
        _
      $region20: #{depbert_forward.3} parent=11 // pred_fallthru
        _
      // Predicated region
      $region21: #{depbert_forward.3} parent=11 // pred_check
        %p510 = pneg %p104
      $region22: #{depbert_forward.3} parent=11 // pred_check_branch
        %512 = sbr.rel (%p510) target = $region24
      $region23: #{depbert_forward.3} parent=11 // pred_region
        _
      $region24: #{depbert_forward.3} parent=11 // pred_fallthru
        _
      // Predicated region
      $region25: #{depbert_forward.3} parent=11 // pred_check
        %p513 = pneg %p437
      $region26: #{depbert_forward.3} parent=11 // pred_check_branch
        %515 = sbr.rel (%p513) target = $region28
      $region27: #{depbert_forward.3} parent=11 // pred_region
        _
      $region28: #{depbert_forward.3} parent=11 // pred_fallthru
        _
      // Predicated region
      $region29: #{depbert_forward.3} parent=11 // pred_check
        %p516 = pneg %p458
      $region30: #{depbert_forward.3} parent=11 // pred_check_branch
        %518 = sbr.rel (%p516) target = $region32
      $region31: #{depbert_forward.3} parent=11 // pred_region
        _
      $region32: #{depbert_forward.3} parent=11 // pred_fallthru
        _
    $region12: #{depbert_forward.3} parent=5 // pred_fallthru
      _
    %p519 = scmp.lt.s32.totalorder %s24, 2
    // Predicated region
    $region33: #{depbert_forward.3} parent=5 // pred_check
      %p520 = pneg %p519
    $region34: #{depbert_forward.3} parent=5 // pred_check_branch
      %522 = sbr.rel (%p520) target = $region36
    $region35: #{depbert_forward.3} parent=5 // pred_region
      // Predicated region
      $region37: #{depbert_forward.3} parent=35 // pred_check
        %p523 = pneg %p124
      $region38: #{depbert_forward.3} parent=35 // pred_check_branch
        %525 = sbr.rel (%p523) target = $region40
      $region39: #{depbert_forward.3} parent=35 // pred_region
        %p526 = scmp.lt.s32.totalorder %s32, 1
        %s527 = scalar_select %p526, %s32, 1
        %s528 = smul.addr %s527, 4
        %s529 = smul.addr %s528, 4
        %s530 = scalar_lea.vmem %s4, %s529
      $region40: #{depbert_forward.3} parent=35 // pred_fallthru
        _
      // Predicated region
      $region41: #{depbert_forward.3} parent=35 // pred_check
        %p531 = pneg %p150
      $region42: #{depbert_forward.3} parent=35 // pred_check_branch
        %533 = sbr.rel (%p531) target = $region44
      $region43: #{depbert_forward.3} parent=35 // pred_region
        %p534 = scmp.lt.s32.totalorder %s32, 1
        %s535 = scalar_select %p534, %s32, 1
        %s536 = scalar_lea.vmem %s5, %s535
      $region44: #{depbert_forward.3} parent=35 // pred_fallthru
        _
      // Predicated region
      $region45: #{depbert_forward.3} parent=35 // pred_check
        %p537 = pneg %p176
      $region46: #{depbert_forward.3} parent=35 // pred_check_branch
        %539 = sbr.rel (%p537) target = $region48
      $region47: #{depbert_forward.3} parent=35 // pred_region
        %p540 = scmp.lt.s32.totalorder %s32, 1
        %s541 = scalar_select %p540, %s32, 1
        %s542 = smul.addr %s541, 4
        %s543 = smul.addr %s542, 4
        %s544 = scalar_lea.vmem %s6, %s543
      $region48: #{depbert_forward.3} parent=35 // pred_fallthru
        _
      // Predicated region
      $region49: #{depbert_forward.3} parent=35 // pred_check
        %p545 = pneg %p202
      $region50: #{depbert_forward.3} parent=35 // pred_check_branch
        %547 = sbr.rel (%p545) target = $region52
      $region51: #{depbert_forward.3} parent=35 // pred_region
        %p548 = scmp.lt.s32.totalorder %s32, 1
        %s549 = scalar_select %p548, %s32, 1
        %s550 = scalar_lea.vmem %s7, %s549
      $region52: #{depbert_forward.3} parent=35 // pred_fallthru
        _
      // Predicated region
      $region53: #{depbert_forward.3} parent=35 // pred_check
        %p551 = pneg %p228
      $region54: #{depbert_forward.3} parent=35 // pred_check_branch
        %553 = sbr.rel (%p551) target = $region56
      $region55: #{depbert_forward.3} parent=35 // pred_region
        %p554 = scmp.lt.s32.totalorder %s32, 1
        %s555 = scalar_select %p554, %s32, 1
        %s556 = scalar_lea.vmem %s8, %s555
      $region56: #{depbert_forward.3} parent=35 // pred_fallthru
        _
      // Predicated region
      $region57: #{depbert_forward.3} parent=35 // pred_check
        %p557 = pneg %p254
      $region58: #{depbert_forward.3} parent=35 // pred_check_branch
        %559 = sbr.rel (%p557) target = $region60
      $region59: #{depbert_forward.3} parent=35 // pred_region
        %p560 = scmp.lt.s32.totalorder %s32, 1
        %s561 = scalar_select %p560, %s32, 1
        %s562 = scalar_lea.vmem %s9, %s561
      $region60: #{depbert_forward.3} parent=35 // pred_fallthru
        _
      // Predicated region
      $region61: #{depbert_forward.3} parent=35 // pred_check
        %p563 = pneg %p280
      $region62: #{depbert_forward.3} parent=35 // pred_check_branch
        %565 = sbr.rel (%p563) target = $region64
      $region63: #{depbert_forward.3} parent=35 // pred_region
        %p566 = scmp.lt.s32.totalorder %s32, 1
        %s567 = scalar_select %p566, %s32, 1
        %s568 = smul.addr %s567, 4
        %s569 = smul.addr %s568, 4
        %s570 = scalar_lea.vmem %s10, %s569
      $region64: #{depbert_forward.3} parent=35 // pred_fallthru
        _
      // Predicated region
      $region65: #{depbert_forward.3} parent=35 // pred_check
        %p571 = pneg %p306
      $region66: #{depbert_forward.3} parent=35 // pred_check_branch
        %573 = sbr.rel (%p571) target = $region68
      $region67: #{depbert_forward.3} parent=35 // pred_region
        %p574 = scmp.lt.s32.totalorder %s32, 1
        %s575 = scalar_select %p574, %s32, 1
        %s576 = scalar_lea.vmem %s11, %s575
      $region68: #{depbert_forward.3} parent=35 // pred_fallthru
        _
      // Predicated region
      $region69: #{depbert_forward.3} parent=35 // pred_check
        %p577 = pneg %p332
      $region70: #{depbert_forward.3} parent=35 // pred_check_branch
        %579 = sbr.rel (%p577) target = $region72
      $region71: #{depbert_forward.3} parent=35 // pred_region
        %p580 = scmp.lt.s32.totalorder %s32, 1
        %s581 = scalar_select %p580, %s32, 1
        %s582 = smul.addr %s581, 8
        %s583 = smul.addr %s582, 4
        %s584 = scalar_lea.vmem %s12, %s583
      $region72: #{depbert_forward.3} parent=35 // pred_fallthru
        _
      // Predicated region
      $region73: #{depbert_forward.3} parent=35 // pred_check
        %p585 = pneg %p358
      $region74: #{depbert_forward.3} parent=35 // pred_check_branch
        %587 = sbr.rel (%p585) target = $region76
      $region75: #{depbert_forward.3} parent=35 // pred_region
        %p588 = scmp.lt.s32.totalorder %s32, 1
        %s589 = scalar_select %p588, %s32, 1
        %s590 = scalar_lea.vmem %s13, %s589
      $region76: #{depbert_forward.3} parent=35 // pred_fallthru
        _
      // Predicated region
      $region77: #{depbert_forward.3} parent=35 // pred_check
        %p591 = pneg %p384
      $region78: #{depbert_forward.3} parent=35 // pred_check_branch
        %593 = sbr.rel (%p591) target = $region80
      $region79: #{depbert_forward.3} parent=35 // pred_region
        %p594 = scmp.lt.s32.totalorder %s32, 1
        %s595 = scalar_select %p594, %s32, 1
        %s596 = scalar_lea.vmem %s14, %s595
      $region80: #{depbert_forward.3} parent=35 // pred_fallthru
        _
      // Predicated region
      $region81: #{depbert_forward.3} parent=35 // pred_check
        %p597 = pneg %p410
      $region82: #{depbert_forward.3} parent=35 // pred_check_branch
        %599 = sbr.rel (%p597) target = $region84
      $region83: #{depbert_forward.3} parent=35 // pred_region
        %p600 = scmp.lt.s32.totalorder %s32, 1
        %s601 = scalar_select %p600, %s32, 1
        %s602 = scalar_lea.vmem %s15, %s601
      $region84: #{depbert_forward.3} parent=35 // pred_fallthru
        _
    $region36: #{depbert_forward.3} parent=5 // pred_fallthru
      _
    %p603 = scmp.le.s32.totalorder 1, %s24
    %p604 = scmp.lt.s32.totalorder %s24, 3
    %p605 = pnand %p603, %p604
    %p606 = pneg %p605
    // Predicated region
    $region85: #{depbert_forward.3} parent=5 // pred_check
      _
    $region86: #{depbert_forward.3} parent=5 // pred_check_branch
      %608 = sbr.rel (%p605) target = $region88
    $region87: #{depbert_forward.3} parent=5 // pred_region
      %s609 = ssub.s32 %s24, 1
      %s610 = smul.u32 2, %s33
      %p611 = scmp.lt.s32.totalorder %s610, 1
      %s612 = scalar_select %p611, %s610, 1
      %s613 = scalar_lea.vmem %s1, %s612
      %p614 = pneg %p62
      %p615 = pneg %p59
      %p616 = pneg %p83
      %p617 = pneg %p80
      %p618 = pneg %p104
      %p619 = pneg %p101
      %p620 = scmp.lt.s32.totalorder %s34, 1
      %s621 = scalar_select %p620, %s34, 1
      %s622 = smul.addr %s621, 4
      %s623 = smul.addr %s622, 4
      %s624 = scalar_lea.vmem %s4, %s623
      %p625 = pneg %p130
      %p626 = pneg %p127
      %p627 = scmp.lt.s32.totalorder %s34, 1
      %s628 = scalar_select %p627, %s34, 1
      %s629 = scalar_lea.vmem %s5, %s628
      %p630 = pneg %p156
      %p631 = pneg %p153
      %p632 = scmp.lt.s32.totalorder %s34, 1
      %s633 = scalar_select %p632, %s34, 1
      %s634 = smul.addr %s633, 4
      %s635 = smul.addr %s634, 4
      %s636 = scalar_lea.vmem %s6, %s635
      %p637 = pneg %p182
      %p638 = pneg %p179
      %p639 = scmp.lt.s32.totalorder %s34, 1
      %s640 = scalar_select %p639, %s34, 1
      %s641 = scalar_lea.vmem %s7, %s640
      %p642 = pneg %p208
      %p643 = pneg %p205
      %p644 = scmp.lt.s32.totalorder %s34, 1
      %s645 = scalar_select %p644, %s34, 1
      %s646 = scalar_lea.vmem %s8, %s645
      %p647 = pneg %p234
      %p648 = pneg %p231
      %p649 = scmp.lt.s32.totalorder %s34, 1
      %s650 = scalar_select %p649, %s34, 1
      %s651 = scalar_lea.vmem %s9, %s650
      %p652 = pneg %p260
      %p653 = pneg %p257
      %p654 = scmp.lt.s32.totalorder %s34, 1
      %s655 = scalar_select %p654, %s34, 1
      %s656 = smul.addr %s655, 4
      %s657 = smul.addr %s656, 4
      %s658 = scalar_lea.vmem %s10, %s657
      %p659 = pneg %p286
      %p660 = pneg %p283
      %p661 = scmp.lt.s32.totalorder %s34, 1
      %s662 = scalar_select %p661, %s34, 1
      %s663 = scalar_lea.vmem %s11, %s662
      %p664 = pneg %p312
      %p665 = pneg %p309
      %p666 = scmp.lt.s32.totalorder %s34, 1
      %s667 = scalar_select %p666, %s34, 1
      %s668 = smul.addr %s667, 8
      %s669 = smul.addr %s668, 4
      %s670 = scalar_lea.vmem %s12, %s669
      %p671 = pneg %p338
      %p672 = pneg %p335
      %p673 = scmp.lt.s32.totalorder %s34, 1
      %s674 = scalar_select %p673, %s34, 1
      %s675 = scalar_lea.vmem %s13, %s674
      %p676 = pneg %p364
      %p677 = pneg %p361
      %p678 = scmp.lt.s32.totalorder %s34, 1
      %s679 = scalar_select %p678, %s34, 1
      %s680 = scalar_lea.vmem %s14, %s679
      %p681 = pneg %p390
      %p682 = pneg %p387
      %p683 = scmp.lt.s32.totalorder %s34, 1
      %s684 = scalar_select %p683, %s34, 1
      %s685 = scalar_lea.vmem %s15, %s684
      %p686 = pneg %p416
      %p687 = pneg %p413
      %p688 = pneg %p437
      %p689 = pneg %p434
      %p690 = pneg %p458
      %p691 = pneg %p455
      %p692 = pneg %p484
      %p693 = pneg %p481
      %p694 = scmp.lt.s32.totalorder %s33, 0
      %s695 = scalar_select %p694, %s33, 0
      %s696 = smul.addr %s695, 2
      %s697 = scalar_lea.vmem %s18, %s696
      %s698 = smul.u32 2, %s33
      %p699 = scmp.lt.s32.totalorder %s698, 1
      %s700 = scalar_select %p699, %s698, 1
      %s701 = scalar_lea.vmem %s1, %s700
      %s702 = smul.u32 2, %s33
      %p703 = scmp.lt.s32.totalorder %s34, 1
      %s704 = scalar_select %p703, %s34, 1
      %s705 = smul.addr %s704, 4
      %s706 = smul.addr %s705, 4
      %s707 = scalar_lea.vmem %s4, %s706
      %p708 = scmp.lt.s32.totalorder %s34, 1
      %s709 = scalar_select %p708, %s34, 1
      %s710 = scalar_lea.vmem %s5, %s709
      %p711 = scmp.lt.s32.totalorder %s34, 1
      %s712 = scalar_select %p711, %s34, 1
      %s713 = smul.addr %s712, 4
      %s714 = smul.addr %s713, 4
      %s715 = scalar_lea.vmem %s6, %s714
      %p716 = scmp.lt.s32.totalorder %s34, 1
      %s717 = scalar_select %p716, %s34, 1
      %s718 = scalar_lea.vmem %s7, %s717
      %p719 = scmp.lt.s32.totalorder %s34, 1
      %s720 = scalar_select %p719, %s34, 1
      %s721 = scalar_lea.vmem %s8, %s720
      %p722 = scmp.lt.s32.totalorder %s34, 1
      %s723 = scalar_select %p722, %s34, 1
      %s724 = scalar_lea.vmem %s9, %s723
      %p725 = scmp.lt.s32.totalorder %s34, 1
      %s726 = scalar_select %p725, %s34, 1
      %s727 = smul.addr %s726, 4
      %s728 = smul.addr %s727, 4
      %s729 = scalar_lea.vmem %s10, %s728
      %p730 = scmp.lt.s32.totalorder %s34, 1
      %s731 = scalar_select %p730, %s34, 1
      %s732 = scalar_lea.vmem %s11, %s731
      %p733 = scmp.lt.s32.totalorder %s34, 1
      %s734 = scalar_select %p733, %s34, 1
      %s735 = smul.addr %s734, 8
      %s736 = smul.addr %s735, 4
      %s737 = scalar_lea.vmem %s12, %s736
      %p738 = scmp.lt.s32.totalorder %s34, 1
      %s739 = scalar_select %p738, %s34, 1
      %s740 = scalar_lea.vmem %s13, %s739
      %p741 = scmp.lt.s32.totalorder %s34, 1
      %s742 = scalar_select %p741, %s34, 1
      %s743 = scalar_lea.vmem %s14, %s742
      %p744 = scmp.lt.s32.totalorder %s34, 1
      %s745 = scalar_select %p744, %s34, 1
      %s746 = scalar_lea.vmem %s15, %s745
      %p747 = scmp.lt.s32.totalorder %s33, 0
      %s748 = scalar_select %p747, %s33, 0
      %s749 = smul.addr %s748, 2
      %s750 = scalar_lea.vmem %s18, %s749
      %p752 = scmp.eq.s32.totalorder %s34, 0
      // Predicated region
      $region89: #{depbert_forward.3} parent=87 // pred_check
        %p753 = pneg %p752
      $region90: #{depbert_forward.3} parent=87 // pred_check_branch
        %755 = sbr.rel (%p753) target = $region92
      $region91: #{depbert_forward.3} parent=87 // pred_region
        %s756 = smul.u32 %s33, 16
        %s757 = scalar_lea.vmem %s0, %s756
        %p759 = scmp.lt.u32.totalorder 16, 8
        %p760 = pneg %p759
        // Predicated region
        $region93: #{depbert_forward.3} parent=91 // pred_check
          _
        $region94: #{depbert_forward.3} parent=91 // pred_check_branch
          %762 = sbr.rel (%p759) target = $region96
        $region95: #{depbert_forward.3} parent=91 // pred_region
          %s777 = sand.u32 16, 7
          %p778 = scmp.eq.s32.totalorder %s777, 0
          // Predicated region
          $region108: #{depbert_forward.3} parent=95 // pred_check
            %p779 = pneg %p778
          $region109: #{depbert_forward.3} parent=95 // pred_check_branch
            %781 = sbr.rel (%p779) target = $region111
          $region110: #{depbert_forward.3} parent=95 // pred_region
            loop: start=0, step=1, limit=1
            $region112: #{depbert_forward.3} parent=110 // loop_pre_header
              _
            $region113: #{depbert_forward.3} parent=110 // loop_header
              %s783 = sphi 0, %s787
              %p784 = scmp.ge.s32.totalorder %s783, 1
              %s788 = sphi %s757, %s757
              %s789 = sphi [#allocation2], [#allocation2]
            $region114: #{depbert_forward.3} parent=110 // loop_header_branch
              %786 = sbr.rel (%p784) target = $region118
            $region115: #{depbert_forward.3} parent=110 // loop_body
              %v790 = vld [vmem:[%s788] sm:$0xff]
              %791 = vst [vmem:[%s789] sm:$0xff] %v790
              %v792 = vld [vmem:[%s788 + $0x8] sm:$0xff]
              %793 = vst [vmem:[%s789 + $0x8] sm:$0xff] %v792
            $region116: #{depbert_forward.3} parent=110 // loop_footer
              %s787 = sadd.s32 1, %s783
            $region117: #{depbert_forward.3} parent=110 // loop_footer_branch
              %782 = sbr.rel target = $region113
            $region118: #{depbert_forward.3} parent=110 // loop_exit
              _
          $region111: #{depbert_forward.3} parent=95 // pred_fallthru
            _
          %p794 = pneg %p778
          // Predicated region
          $region119: #{depbert_forward.3} parent=95 // pred_check
            _
          $region120: #{depbert_forward.3} parent=95 // pred_check_branch
            %796 = sbr.rel (%p778) target = $region122
          $region121: #{depbert_forward.3} parent=95 // pred_region
            %s797 = sand.u32 16, 7
          $region122: #{depbert_forward.3} parent=95 // pred_fallthru
            _
        $region96: #{depbert_forward.3} parent=91 // pred_fallthru
          _
        // Predicated region
        $region97: #{depbert_forward.3} parent=91 // pred_check
          %p763 = pneg %p759
        $region98: #{depbert_forward.3} parent=91 // pred_check_branch
          %765 = sbr.rel (%p763) target = $region100
        $region99: #{depbert_forward.3} parent=91 // pred_region
          %s766 = sshllo.u32 0, 16
          loop: start=0, step=1, limit=1
          $region101: #{depbert_forward.3} parent=99 // loop_pre_header
            _
          $region102: #{depbert_forward.3} parent=99 // loop_header
            %s768 = sphi 0, %s772
            %p769 = scmp.ge.s32.totalorder %s768, 1
            %s773 = sphi %s757, %s757
            %s774 = sphi [#allocation2], [#allocation2]
          $region103: #{depbert_forward.3} parent=99 // loop_header_branch
            %771 = sbr.rel (%p769) target = $region107
          $region104: #{depbert_forward.3} parent=99 // loop_body
            %v775 = vld [vmem:[%s773] sm:%s766]
            %776 = vst [vmem:[%s774] sm:%s766] %v775
          $region105: #{depbert_forward.3} parent=99 // loop_footer
            %s772 = sadd.s32 1, %s768
          $region106: #{depbert_forward.3} parent=99 // loop_footer_branch
            %767 = sbr.rel target = $region102
          $region107: #{depbert_forward.3} parent=99 // loop_exit
            _
        $region100: #{depbert_forward.3} parent=91 // pred_fallthru
          _
        // Predicated region
        $region123: #{depbert_forward.3} parent=91 // pred_check
          _
        $region124: #{depbert_forward.3} parent=91 // pred_check_branch
          %800 = sbr.rel (0) target = $region126
        $region125: #{depbert_forward.3} parent=91 // pred_region
          %801 = vsyncadd [#allocation3], 256
        $region126: #{depbert_forward.3} parent=91 // pred_fallthru
          _
        %s802 = smul.u32 16, 1
        %s803 = sshll.u32 %s802, 4
        %804 = dma.done [#allocation3], %s803
        %v805 = vld [vmem:[#allocation2] sm:$0xff]
        %v806 = vld [vmem:[#allocation2 + $0x8] sm:$0xff]
        %v807 = vld [vmem:[%s2] sm:$0x1]
        %v808 = vld [vmem:[%s3] sm:$0x1]
        %vm809 = vcmask 261120
        %v810 = vsel %vm809, %v805, 0.0
        %811 = vadd.xlane.f32.xlu0 %v810
        %v812 = vpop.xlane.xlu0 %811
        %v813 = vsel %vm809, %v806, 0.0
        %814 = vadd.xlane.f32.xlu0 %v813
        %v815 = vpop.xlane.xlu0 %814
        %v816 = vrcp.pop 32.0
        %v817 = vmul.f32 %v812, %v816
        %v818 = vmul.f32 %v815, %v816
        %v819 = vsub.f32 %v805, %v817
        %v820 = vsub.f32 %v806, %v818
        %v821 = vmul.f32 %v819, %v819
        %v822 = vmul.f32 %v820, %v820
        %v823 = vsel %vm809, %v821, 0.0
        %824 = vadd.xlane.f32.xlu0 %v823
        %v825 = vpop.xlane.xlu0 %824
        %v826 = vsel %vm809, %v822, 0.0
        %827 = vadd.xlane.f32.xlu0 %v826
        %v828 = vpop.xlane.xlu0 %827
        %v829 = vmul.f32 %v825, %v816
        %v830 = vmul.f32 %v828, %v816
        %v831 = vadd.f32 %v829, 1e-12
        %v832 = vadd.f32 %v830, 1e-12
        %v833 = vrsqrt.pop %v831
        %v834 = vrsqrt.pop %v832
        %v835 = vmul.f32 %v819, %v833
        %v836 = vmul.f32 %v820, %v834
        %v838 = vlaneseq
        %v839 = vshrl.u32 %v838, 7
        %v840 = vsub.s32 0, %v839
        %v841 = vrot.slane %v807, %v840
        %v843 = vmul.f32 %v835, %v841
        %v844 = vmul.f32 %v836, %v841
        %v846 = vlaneseq
        %v847 = vshrl.u32 %v846, 7
        %v848 = vsub.s32 0, %v847
        %v849 = vrot.slane %v808, %v848
        %v851 = vadd.f32 %v843, %v849
        %v852 = vadd.f32 %v844, %v849
        %853 = vst.msk [vmem:[#allocation2] sm:$0xff] %vm809, %v851
        %854 = vst.msk [vmem:[#allocation2 + $0x8] sm:$0xff] %vm809, %v852
      $region92: #{depbert_forward.3} parent=87 // pred_fallthru
        _
      %v855 = vld [vmem:[#allocation2] sm:$0xff]
      %v856 = vld [vmem:[#allocation2 + $0x8] sm:$0xff]
      %v857 = vld [vmem:[%s701] sm:$0x1]
      %v858 = vld [vmem:[%s701 + $0x1] sm:$0x1]
      %v859 = vpack.c.bf16 %v856, %v855
      %v860 = vld [vmem:[%s707] sm:$0xf]
      %v861 = vld [vmem:[%s707 + $0x4] sm:$0xf]
      %v862 = vld [vmem:[%s707 + $0x8] sm:$0xf]
      %v863 = vld [vmem:[%s707 + $0xc] sm:$0xf]
      %v864 = vld [vmem:[%s710] sm:$0x1]
      %v866 = vlaneseq
      %v867 = vshrl.u32 %v866, 7
      %v868 = vsub.s32 0, %v867
      %v869 = vrot.slane %v864, %v868
      %v875 = vunpack.c.l.b16 %v860
      %v876 = vunpack.c.l.b16 %v861
      %v877 = vunpack.c.l.b16 %v862
      %v878 = vunpack.c.l.b16 %v863
      %v879 = vpack.c.b16 %v876, %v875
      %v880 = vpack.c.b16 %v878, %v877
      %vm883 = vcmask 261120
      %v885 = vsel %vm883, %v859, 0
      %887 = vmatprep.subr.bf16.mxu0 0
      %888 = vmatpush1.bf16.msra.mxu0 %v879
      %889 = vmatprep.subr.bf16.mxu0 0
      %890 = vmatpush1.bf16.msra.mxu0 %v880
      %891 = vmatprep.subr.bf16.mxu0 0
      %892 = vmatpush1.bf16.msra.mxu0 0
      %893 = vmatprep.subr.bf16.mxu0 0
      %894 = vmatpush1.bf16.msra.mxu0 0
      %895 = vmatprep.subr.bf16.mxu0 0
      %896 = vmatpush1.bf16.msra.mxu0 0
      %897 = vmatprep.subr.bf16.mxu0 0
      %898 = vmatpush1.bf16.msra.mxu0 0
      %899 = vmatprep.subr.bf16.mxu0 0
      %900 = vmatpush1.bf16.msra.mxu0 0
      %901 = vmatprep.subr.bf16.mxu0 0
      %902 = vmatpush1.bf16.msra.mxu0 0
      %903 = vmatprep.subr.bf16.mxu0 0
      %904 = vmatpush1.bf16.msra.mxu0 0
      %905 = vmatprep.subr.bf16.mxu0 0
      %906 = vmatpush1.bf16.msra.mxu0 0
      %907 = vmatprep.subr.bf16.mxu0 0
      %908 = vmatpush1.bf16.msra.mxu0 0
      %909 = vmatprep.subr.bf16.mxu0 0
      %910 = vmatpush1.bf16.msra.mxu0 0
      %911 = vmatprep.subr.bf16.mxu0 0
      %912 = vmatpush1.bf16.msra.mxu0 0
      %913 = vmatprep.subr.bf16.mxu0 0
      %914 = vmatpush1.bf16.msra.mxu0 0
      %915 = vmatprep.subr.bf16.mxu0 0
      %916 = vmatpush1.bf16.msra.mxu0 0
      %917 = vmatprep.subr.bf16.mxu0 0
      %918 = vmatpush1.bf16.msra.mxu0 0
      %919 = vmatprep.mubr.bf16.mxu0 0
      %920 = vmatmul.mubr.bf16.gmra.mrb[0].mxu0 %v885
      %v921 = vpop.f32.mrb[0].mxu0
      %v922 = vadd.f32 %v869, %v921
      %v923 = vpop.f32.mrb[0].mxu0
      %v924 = vpop.f32.mrb[0].mxu0
      %v925 = vadd.f32 %v869, %v924
      %v926 = vpop.f32.mrb[0].mxu0
      %927 = vdwg.mxu0
      %v928 = vpack.c.bf16 %v922, %v922
      %v929 = vpack.c.bf16 %v925, %v925
      %v932 = vlaneseq
      %v933 = vshrl.u32 %v932, 7
      %v934 = vsub.s32 0, %v933
      %v935 = vrot.slane %v857, %v934
      %v936 = vlaneseq
      %v937 = vshrl.u32 %v936, 7
      %v938 = vsub.s32 0, %v937
      %v939 = vrot.slane %v858, %v938
      %943 = vrot.lane.b32.xlu0 %v928, 96
      %v944 = vpop.permute.xlu0 %943
      %vm945 = vcmask 130048
      %v947 = vsel %vm945, %v928, 0
      %v950 = vsel %vm945, %v944, 0
      %952 = vmatprep.subr.bf16.mxu0 0
      %953 = vmatpush1.bf16.xpose.msra.mxu0 %v950
      %954 = vmatprep.subr.bf16.mxu0 0
      %955 = vmatpush1.bf16.xpose.msra.mxu0 0
      %956 = vmatprep.subr.bf16.mxu0 0
      %957 = vmatpush1.bf16.xpose.msra.mxu0 0
      %958 = vmatprep.subr.bf16.mxu0 0
      %959 = vmatpush1.bf16.xpose.msra.mxu0 0
      %960 = vmatprep.subr.bf16.mxu0 0
      %961 = vmatpush1.bf16.xpose.msra.mxu0 0
      %962 = vmatprep.subr.bf16.mxu0 0
      %963 = vmatpush1.bf16.xpose.msra.mxu0 0
      %964 = vmatprep.subr.bf16.mxu0 0
      %965 = vmatpush1.bf16.xpose.msra.mxu0 0
      %966 = vmatprep.subr.bf16.mxu0 0
      %967 = vmatpush1.bf16.xpose.msra.mxu0 0
      %968 = vmatprep.subr.bf16.mxu0 0
      %969 = vmatpush1.bf16.xpose.msra.mxu0 0
      %970 = vmatprep.subr.bf16.mxu0 0
      %971 = vmatpush1.bf16.xpose.msra.mxu0 0
      %972 = vmatprep.subr.bf16.mxu0 0
      %973 = vmatpush1.bf16.xpose.msra.mxu0 0
      %974 = vmatprep.subr.bf16.mxu0 0
      %975 = vmatpush1.bf16.xpose.msra.mxu0 0
      %976 = vmatprep.subr.bf16.mxu0 0
      %977 = vmatpush1.bf16.xpose.msra.mxu0 0
      %978 = vmatprep.subr.bf16.mxu0 0
      %979 = vmatpush1.bf16.xpose.msra.mxu0 0
      %980 = vmatprep.subr.bf16.mxu0 0
      %981 = vmatpush1.bf16.xpose.msra.mxu0 0
      %982 = vmatprep.subr.bf16.mxu0 0
      %983 = vmatpush1.bf16.xpose.msra.mxu0 0
      %984 = vmatprep.mubr.bf16.mxu0 0
      %985 = vmatmul.mubr.bf16.gmra.mrb[0].mxu0 %v947
      %v986 = vpop.f32.mrb[0].mxu0
      %v987 = vadd.f32 %v935, %v986
      %v988 = vpop.f32.mrb[0].mxu0
      %v989 = vpop.f32.mrb[0].mxu0
      %v990 = vpop.f32.mrb[0].mxu0
      %991 = vdwg.mxu0
      %993 = vrot.lane.b32.xlu0 %v929, 96
      %v994 = vpop.permute.xlu0 %993
      %v996 = vsel %vm945, %v929, 0
      %v999 = vsel %vm945, %v994, 0
      %1001 = vmatprep.subr.bf16.mxu0 0
      %1002 = vmatpush1.bf16.xpose.msra.mxu0 %v999
      %1003 = vmatprep.subr.bf16.mxu0 0
      %1004 = vmatpush1.bf16.xpose.msra.mxu0 0
      %1005 = vmatprep.subr.bf16.mxu0 0
      %1006 = vmatpush1.bf16.xpose.msra.mxu0 0
      %1007 = vmatprep.subr.bf16.mxu0 0
      %1008 = vmatpush1.bf16.xpose.msra.mxu0 0
      %1009 = vmatprep.subr.bf16.mxu0 0
      %1010 = vmatpush1.bf16.xpose.msra.mxu0 0
      %1011 = vmatprep.subr.bf16.mxu0 0
      %1012 = vmatpush1.bf16.xpose.msra.mxu0 0
      %1013 = vmatprep.subr.bf16.mxu0 0
      %1014 = vmatpush1.bf16.xpose.msra.mxu0 0
      %1015 = vmatprep.subr.bf16.mxu0 0
      %1016 = vmatpush1.bf16.xpose.msra.mxu0 0
      %1017 = vmatprep.subr.bf16.mxu0 0
      %1018 = vmatpush1.bf16.xpose.msra.mxu0 0
      %1019 = vmatprep.subr.bf16.mxu0 0
      %1020 = vmatpush1.bf16.xpose.msra.mxu0 0
      %1021 = vmatprep.subr.bf16.mxu0 0
      %1022 = vmatpush1.bf16.xpose.msra.mxu0 0
      %1023 = vmatprep.subr.bf16.mxu0 0
      %1024 = vmatpush1.bf16.xpose.msra.mxu0 0
      %1025 = vmatprep.subr.bf16.mxu0 0
      %1026 = vmatpush1.bf16.xpose.msra.mxu0 0
      %1027 = vmatprep.subr.bf16.mxu0 0
      %1028 = vmatpush1.bf16.xpose.msra.mxu0 0
      %1029 = vmatprep.subr.bf16.mxu0 0
      %1030 = vmatpush1.bf16.xpose.msra.mxu0 0
      %1031 = vmatprep.subr.bf16.mxu0 0
      %1032 = vmatpush1.bf16.xpose.msra.mxu0 0
      %1033 = vmatprep.mubr.bf16.mxu0 0
      %1034 = vmatmul.mubr.bf16.gmra.mrb[0].mxu0 %v996
      %v1035 = vpop.f32.mrb[0].mxu0
      %v1036 = vadd.f32 %v939, %v1035
      %v1037 = vpop.f32.mrb[0].mxu0
      %v1038 = vpop.f32.mrb[0].mxu0
      %v1039 = vpop.f32.mrb[0].mxu0
      %1040 = vdwg.mxu0
      %vm1041 = vcmask 64512
      %v1042 = vsel %vm1041, %v987, -inf
      %1043 = vmax.xlane.f32.xlu0 %v1042
      %v1044 = vpop.xlane.xlu0 %1043
      %v1045 = vsel %vm1041, %v1036, -inf
      %1046 = vmax.xlane.f32.xlu0 %v1045
      %v1047 = vpop.xlane.xlu0 %1046
      %v1048 = vsub.f32 %v987, %v1044
      %v1049 = vsub.f32 %v1036, %v1047
      %v1050 = vmul.f32 %v1048, 1.442695
      %v1051 = vpow.pop %v1050
      %v1052 = vmul.f32 %v1049, 1.442695
      %v1053 = vpow.pop %v1052
      %v1054 = vsel %vm1041, %v1051, 0.0
      %1055 = vadd.xlane.f32.xlu0 %v1054
      %v1056 = vpop.xlane.xlu0 %1055
      %v1057 = vsel %vm1041, %v1053, 0.0
      %1058 = vadd.xlane.f32.xlu0 %v1057
      %v1059 = vpop.xlane.xlu0 %1058
      %v1060 = vrcp.pop %v1056
      %v1061 = vrcp.pop %v1059
      %v1062 = vmul.f32 %v1051, %v1060
      %v1063 = vmul.f32 %v1053, %v1061
      %v1064 = vpack.c.bf16 %v1062, %v1062
      %v1065 = vpack.c.bf16 %v1063, %v1063
      %1066 = vrot.lane.b32.xlu0 %v928, 64
      %v1067 = vpop.permute.xlu0 %1066
      %v1069 = vsel %vm1041, %v1064, 0
      %vm1071 = vcmask 1043456
      %v1073 = vsel %vm1071, %v1067, 0
      %1075 = vmatprep.subr.bf16.mxu0 0
      %1076 = vmatpush1.bf16.msra.mxu0 %v1073
      %1077 = vmatprep.subr.bf16.mxu0 0
      %1078 = vmatpush1.bf16.msra.mxu0 0
      %1079 = vmatprep.subr.bf16.mxu0 0
      %1080 = vmatpush1.bf16.msra.mxu0 0
      %1081 = vmatprep.subr.bf16.mxu0 0
      %1082 = vmatpush1.bf16.msra.mxu0 0
      %1083 = vmatprep.subr.bf16.mxu0 0
      %1084 = vmatpush1.bf16.msra.mxu0 0
      %1085 = vmatprep.subr.bf16.mxu0 0
      %1086 = vmatpush1.bf16.msra.mxu0 0
      %1087 = vmatprep.subr.bf16.mxu0 0
      %1088 = vmatpush1.bf16.msra.mxu0 0
      %1089 = vmatprep.subr.bf16.mxu0 0
      %1090 = vmatpush1.bf16.msra.mxu0 0
      %1091 = vmatprep.subr.bf16.mxu0 0
      %1092 = vmatpush1.bf16.msra.mxu0 0
      %1093 = vmatprep.subr.bf16.mxu0 0
      %1094 = vmatpush1.bf16.msra.mxu0 0
      %1095 = vmatprep.subr.bf16.mxu0 0
      %1096 = vmatpush1.bf16.msra.mxu0 0
      %1097 = vmatprep.subr.bf16.mxu0 0
      %1098 = vmatpush1.bf16.msra.mxu0 0
      %1099 = vmatprep.subr.bf16.mxu0 0
      %1100 = vmatpush1.bf16.msra.mxu0 0
      %1101 = vmatprep.subr.bf16.mxu0 0
      %1102 = vmatpush1.bf16.msra.mxu0 0
      %1103 = vmatprep.subr.bf16.mxu0 0
      %1104 = vmatpush1.bf16.msra.mxu0 0
      %1105 = vmatprep.subr.bf16.mxu0 0
      %1106 = vmatpush1.bf16.msra.mxu0 0
      %1107 = vmatprep.mubr.bf16.mxu0 0
      %1108 = vmatmul.mubr.bf16.gmra.mrb[0].mxu0 %v1069
      %v1109 = vpop.f32.mrb[0].mxu0
      %v1110 = vadd.f32 0.0, %v1109
      %v1111 = vpop.f32.mrb[0].mxu0
      %v1112 = vpop.f32.mrb[0].mxu0
      %v1113 = vpop.f32.mrb[0].mxu0
      %1114 = vdwg.mxu0
      %1115 = vrot.lane.b32.xlu0 %v929, 64
      %v1116 = vpop.permute.xlu0 %1115
      %v1118 = vsel %vm1041, %v1065, 0
      %v1121 = vsel %vm1071, %v1116, 0
      %1123 = vmatprep.subr.bf16.mxu0 0
      %1124 = vmatpush1.bf16.msra.mxu0 %v1121
      %1125 = vmatprep.subr.bf16.mxu0 0
      %1126 = vmatpush1.bf16.msra.mxu0 0
      %1127 = vmatprep.subr.bf16.mxu0 0
      %1128 = vmatpush1.bf16.msra.mxu0 0
      %1129 = vmatprep.subr.bf16.mxu0 0
      %1130 = vmatpush1.bf16.msra.mxu0 0
      %1131 = vmatprep.subr.bf16.mxu0 0
      %1132 = vmatpush1.bf16.msra.mxu0 0
      %1133 = vmatprep.subr.bf16.mxu0 0
      %1134 = vmatpush1.bf16.msra.mxu0 0
      %1135 = vmatprep.subr.bf16.mxu0 0
      %1136 = vmatpush1.bf16.msra.mxu0 0
      %1137 = vmatprep.subr.bf16.mxu0 0
      %1138 = vmatpush1.bf16.msra.mxu0 0
      %1139 = vmatprep.subr.bf16.mxu0 0
      %1140 = vmatpush1.bf16.msra.mxu0 0
      %1141 = vmatprep.subr.bf16.mxu0 0
      %1142 = vmatpush1.bf16.msra.mxu0 0
      %1143 = vmatprep.subr.bf16.mxu0 0
      %1144 = vmatpush1.bf16.msra.mxu0 0
      %1145 = vmatprep.subr.bf16.mxu0 0
      %1146 = vmatpush1.bf16.msra.mxu0 0
      %1147 = vmatprep.subr.bf16.mxu0 0
      %1148 = vmatpush1.bf16.msra.mxu0 0
      %1149 = vmatprep.subr.bf16.mxu0 0
      %1150 = vmatpush1.bf16.msra.mxu0 0
      %1151 = vmatprep.subr.bf16.mxu0 0
      %1152 = vmatpush1.bf16.msra.mxu0 0
      %1153 = vmatprep.subr.bf16.mxu0 0
      %1154 = vmatpush1.bf16.msra.mxu0 0
      %1155 = vmatprep.mubr.bf16.mxu0 0
      %1156 = vmatmul.mubr.bf16.gmra.mrb[0].mxu0 %v1118
      %v1157 = vpop.f32.mrb[0].mxu0
      %v1158 = vadd.f32 0.0, %v1157
      %v1159 = vpop.f32.mrb[0].mxu0
      %v1160 = vpop.f32.mrb[0].mxu0
      %v1161 = vpop.f32.mrb[0].mxu0
      %1162 = vdwg.mxu0
      %1163 = vrot.lane.b32.xlu0 %v928, 112
      %v1164 = vpop.permute.xlu0 %1163
      %1165 = vrot.lane.b32.xlu0 %v928, 80
      %v1166 = vpop.permute.xlu0 %1165
      %v1168 = vsel %vm945, %v1164, 0
      %v1171 = vsel %vm945, %v1166, 0
      %1173 = vmatprep.subr.bf16.mxu0 0
      %1174 = vmatpush1.bf16.xpose.msra.mxu0 %v1171
      %1175 = vmatprep.subr.bf16.mxu0 0
      %1176 = vmatpush1.bf16.xpose.msra.mxu0 0
      %1177 = vmatprep.subr.bf16.mxu0 0
      %1178 = vmatpush1.bf16.xpose.msra.mxu0 0
      %1179 = vmatprep.subr.bf16.mxu0 0
      %1180 = vmatpush1.bf16.xpose.msra.mxu0 0
      %1181 = vmatprep.subr.bf16.mxu0 0
      %1182 = vmatpush1.bf16.xpose.msra.mxu0 0
      %1183 = vmatprep.subr.bf16.mxu0 0
      %1184 = vmatpush1.bf16.xpose.msra.mxu0 0
      %1185 = vmatprep.subr.bf16.mxu0 0
      %1186 = vmatpush1.bf16.xpose.msra.mxu0 0
      %1187 = vmatprep.subr.bf16.mxu0 0
      %1188 = vmatpush1.bf16.xpose.msra.mxu0 0
      %1189 = vmatprep.subr.bf16.mxu0 0
      %1190 = vmatpush1.bf16.xpose.msra.mxu0 0
      %1191 = vmatprep.subr.bf16.mxu0 0
      %1192 = vmatpush1.bf16.xpose.msra.mxu0 0
      %1193 = vmatprep.subr.bf16.mxu0 0
      %1194 = vmatpush1.bf16.xpose.msra.mxu0 0
      %1195 = vmatprep.subr.bf16.mxu0 0
      %1196 = vmatpush1.bf16.xpose.msra.mxu0 0
      %1197 = vmatprep.subr.bf16.mxu0 0
      %1198 = vmatpush1.bf16.xpose.msra.mxu0 0
      %1199 = vmatprep.subr.bf16.mxu0 0
      %1200 = vmatpush1.bf16.xpose.msra.mxu0 0
      %1201 = vmatprep.subr.bf16.mxu0 0
      %1202 = vmatpush1.bf16.xpose.msra.mxu0 0
      %1203 = vmatprep.subr.bf16.mxu0 0
      %1204 = vmatpush1.bf16.xpose.msra.mxu0 0
      %1205 = vmatprep.mubr.bf16.mxu0 0
      %1206 = vmatmul.mubr.bf16.gmra.mrb[0].mxu0 %v1168
      %v1207 = vpop.f32.mrb[0].mxu0
      %v1208 = vadd.f32 %v935, %v1207
      %v1209 = vpop.f32.mrb[0].mxu0
      %v1210 = vpop.f32.mrb[0].mxu0
      %v1211 = vpop.f32.mrb[0].mxu0
      %1212 = vdwg.mxu0
      %1213 = vrot.lane.b32.xlu0 %v929, 112
      %v1214 = vpop.permute.xlu0 %1213
      %1215 = vrot.lane.b32.xlu0 %v929, 80
      %v1216 = vpop.permute.xlu0 %1215
      %v1218 = vsel %vm945, %v1214, 0
      %v1221 = vsel %vm945, %v1216, 0
      %1223 = vmatprep.subr.bf16.mxu0 0
      %1224 = vmatpush1.bf16.xpose.msra.mxu0 %v1221
      %1225 = vmatprep.subr.bf16.mxu0 0
      %1226 = vmatpush1.bf16.xpose.msra.mxu0 0
      %1227 = vmatprep.subr.bf16.mxu0 0
      %1228 = vmatpush1.bf16.xpose.msra.mxu0 0
      %1229 = vmatprep.subr.bf16.mxu0 0
      %1230 = vmatpush1.bf16.xpose.msra.mxu0 0
      %1231 = vmatprep.subr.bf16.mxu0 0
      %1232 = vmatpush1.bf16.xpose.msra.mxu0 0
      %1233 = vmatprep.subr.bf16.mxu0 0
      %1234 = vmatpush1.bf16.xpose.msra.mxu0 0
      %1235 = vmatprep.subr.bf16.mxu0 0
      %1236 = vmatpush1.bf16.xpose.msra.mxu0 0
      %1237 = vmatprep.subr.bf16.mxu0 0
      %1238 = vmatpush1.bf16.xpose.msra.mxu0 0
      %1239 = vmatprep.subr.bf16.mxu0 0
      %1240 = vmatpush1.bf16.xpose.msra.mxu0 0
      %1241 = vmatprep.subr.bf16.mxu0 0
      %1242 = vmatpush1.bf16.xpose.msra.mxu0 0
      %1243 = vmatprep.subr.bf16.mxu0 0
      %1244 = vmatpush1.bf16.xpose.msra.mxu0 0
      %1245 = vmatprep.subr.bf16.mxu0 0
      %1246 = vmatpush1.bf16.xpose.msra.mxu0 0
      %1247 = vmatprep.subr.bf16.mxu0 0
      %1248 = vmatpush1.bf16.xpose.msra.mxu0 0
      %1249 = vmatprep.subr.bf16.mxu0 0
      %1250 = vmatpush1.bf16.xpose.msra.mxu0 0
      %1251 = vmatprep.subr.bf16.mxu0 0
      %1252 = vmatpush1.bf16.xpose.msra.mxu0 0
      %1253 = vmatprep.subr.bf16.mxu0 0
      %1254 = vmatpush1.bf16.xpose.msra.mxu0 0
      %1255 = vmatprep.mubr.bf16.mxu0 0
      %1256 = vmatmul.mubr.bf16.gmra.mrb[0].mxu0 %v1218
      %v1257 = vpop.f32.mrb[0].mxu0
      %v1258 = vadd.f32 %v939, %v1257
      %v1259 = vpop.f32.mrb[0].mxu0
      %v1260 = vpop.f32.mrb[0].mxu0
      %v1261 = vpop.f32.mrb[0].mxu0
      %1262 = vdwg.mxu0
      %v1263 = vsel %vm1041, %v1208, -inf
      %1264 = vmax.xlane.f32.xlu0 %v1263
      %v1265 = vpop.xlane.xlu0 %1264
      %v1266 = vsel %vm1041, %v1258, -inf
      %1267 = vmax.xlane.f32.xlu0 %v1266
      %v1268 = vpop.xlane.xlu0 %1267
      %v1269 = vsub.f32 %v1208, %v1265
      %v1270 = vsub.f32 %v1258, %v1268
      %v1271 = vmul.f32 %v1269, 1.442695
      %v1272 = vpow.pop %v1271
      %v1273 = vmul.f32 %v1270, 1.442695
      %v1274 = vpow.pop %v1273
      %v1275 = vsel %vm1041, %v1272, 0.0
      %1276 = vadd.xlane.f32.xlu0 %v1275
      %v1277 = vpop.xlane.xlu0 %1276
      %v1278 = vsel %vm1041, %v1274, 0.0
      %1279 = vadd.xlane.f32.xlu0 %v1278
      %v1280 = vpop.xlane.xlu0 %1279
      %v1281 = vrcp.pop %v1277
      %v1282 = vrcp.pop %v1280
      %v1283 = vmul.f32 %v1272, %v1281
      %v1284 = vmul.f32 %v1274, %v1282
      %v1285 = vpack.c.bf16 %v1283, %v1283
      %v1286 = vpack.c.bf16 %v1284, %v1284
      %1287 = vrot.lane.b32.xlu0 %v928, 48
      %v1288 = vpop.permute.xlu0 %1287
      %v1290 = vsel %vm1041, %v1285, 0
      %v1293 = vsel %vm1071, %v1288, 0
      %1295 = vmatprep.subr.bf16.mxu0 0
      %1296 = vmatpush1.bf16.msra.mxu0 %v1293
      %1297 = vmatprep.subr.bf16.mxu0 0
      %1298 = vmatpush1.bf16.msra.mxu0 0
      %1299 = vmatprep.subr.bf16.mxu0 0
      %1300 = vmatpush1.bf16.msra.mxu0 0
      %1301 = vmatprep.subr.bf16.mxu0 0
      %1302 = vmatpush1.bf16.msra.mxu0 0
      %1303 = vmatprep.subr.bf16.mxu0 0
      %1304 = vmatpush1.bf16.msra.mxu0 0
      %1305 = vmatprep.subr.bf16.mxu0 0
      %1306 = vmatpush1.bf16.msra.mxu0 0
      %1307 = vmatprep.subr.bf16.mxu0 0
      %1308 = vmatpush1.bf16.msra.mxu0 0
      %1309 = vmatprep.subr.bf16.mxu0 0
      %1310 = vmatpush1.bf16.msra.mxu0 0
      %1311 = vmatprep.subr.bf16.mxu0 0
      %1312 = vmatpush1.bf16.msra.mxu0 0
      %1313 = vmatprep.subr.bf16.mxu0 0
      %1314 = vmatpush1.bf16.msra.mxu0 0
      %1315 = vmatprep.subr.bf16.mxu0 0
      %1316 = vmatpush1.bf16.msra.mxu0 0
      %1317 = vmatprep.subr.bf16.mxu0 0
      %1318 = vmatpush1.bf16.msra.mxu0 0
      %1319 = vmatprep.subr.bf16.mxu0 0
      %1320 = vmatpush1.bf16.msra.mxu0 0
      %1321 = vmatprep.subr.bf16.mxu0 0
      %1322 = vmatpush1.bf16.msra.mxu0 0
      %1323 = vmatprep.subr.bf16.mxu0 0
      %1324 = vmatpush1.bf16.msra.mxu0 0
      %1325 = vmatprep.subr.bf16.mxu0 0
      %1326 = vmatpush1.bf16.msra.mxu0 0
      %1327 = vmatprep.mubr.bf16.mxu0 0
      %1328 = vmatmul.mubr.bf16.gmra.mrb[0].mxu0 %v1290
      %v1329 = vpop.f32.mrb[0].mxu0
      %v1330 = vadd.f32 0.0, %v1329
      %v1331 = vpop.f32.mrb[0].mxu0
      %v1332 = vpop.f32.mrb[0].mxu0
      %v1333 = vpop.f32.mrb[0].mxu0
      %1334 = vdwg.mxu0
      %1335 = vrot.lane.b32.xlu0 %v929, 48
      %v1336 = vpop.permute.xlu0 %1335
      %v1338 = vsel %vm1041, %v1286, 0
      %v1341 = vsel %vm1071, %v1336, 0
      %1343 = vmatprep.subr.bf16.mxu0 0
      %1344 = vmatpush1.bf16.msra.mxu0 %v1341
      %1345 = vmatprep.subr.bf16.mxu0 0
      %1346 = vmatpush1.bf16.msra.mxu0 0
      %1347 = vmatprep.subr.bf16.mxu0 0
      %1348 = vmatpush1.bf16.msra.mxu0 0
      %1349 = vmatprep.subr.bf16.mxu0 0
      %1350 = vmatpush1.bf16.msra.mxu0 0
      %1351 = vmatprep.subr.bf16.mxu0 0
      %1352 = vmatpush1.bf16.msra.mxu0 0
      %1353 = vmatprep.subr.bf16.mxu0 0
      %1354 = vmatpush1.bf16.msra.mxu0 0
      %1355 = vmatprep.subr.bf16.mxu0 0
      %1356 = vmatpush1.bf16.msra.mxu0 0
      %1357 = vmatprep.subr.bf16.mxu0 0
      %1358 = vmatpush1.bf16.msra.mxu0 0
      %1359 = vmatprep.subr.bf16.mxu0 0
      %1360 = vmatpush1.bf16.msra.mxu0 0
      %1361 = vmatprep.subr.bf16.mxu0 0
      %1362 = vmatpush1.bf16.msra.mxu0 0
      %1363 = vmatprep.subr.bf16.mxu0 0
      %1364 = vmatpush1.bf16.msra.mxu0 0
      %1365 = vmatprep.subr.bf16.mxu0 0
      %1366 = vmatpush1.bf16.msra.mxu0 0
      %1367 = vmatprep.subr.bf16.mxu0 0
      %1368 = vmatpush1.bf16.msra.mxu0 0
      %1369 = vmatprep.subr.bf16.mxu0 0
      %1370 = vmatpush1.bf16.msra.mxu0 0
      %1371 = vmatprep.subr.bf16.mxu0 0
      %1372 = vmatpush1.bf16.msra.mxu0 0
      %1373 = vmatprep.subr.bf16.mxu0 0
      %1374 = vmatpush1.bf16.msra.mxu0 0
      %1375 = vmatprep.mubr.bf16.mxu0 0
      %1376 = vmatmul.mubr.bf16.gmra.mrb[0].mxu0 %v1338
      %v1377 = vpop.f32.mrb[0].mxu0
      %v1378 = vadd.f32 0.0, %v1377
      %v1379 = vpop.f32.mrb[0].mxu0
      %v1380 = vpop.f32.mrb[0].mxu0
      %v1381 = vpop.f32.mrb[0].mxu0
      %1382 = vdwg.mxu0
      %1385 = vrot.lane.b32.xlu0 %v1330, 16
      %v1386 = vpop.permute.xlu0 %1385
      %1387 = vrot.lane.b32.xlu0 %v1378, 16
      %v1388 = vpop.permute.xlu0 %1387
      %v1391 = vsel %vm945, %v1110, %v1386
      %v1392 = vsel %vm945, %v1158, %v1388
      %v1393 = vpack.c.bf16 %v1392, %v1391
      %v1394 = vld [vmem:[%s715] sm:$0xf]
      %v1395 = vld [vmem:[%s715 + $0x4] sm:$0xf]
      %v1396 = vld [vmem:[%s715 + $0x8] sm:$0xf]
      %v1397 = vld [vmem:[%s715 + $0xc] sm:$0xf]
      %v1398 = vld [vmem:[%s718] sm:$0x1]
      %v1400 = vlaneseq
      %v1401 = vshrl.u32 %v1400, 7
      %v1402 = vsub.s32 0, %v1401
      %v1403 = vrot.slane %v1398, %v1402
      %v1409 = vunpack.c.l.b16 %v1394
      %v1410 = vunpack.c.l.b16 %v1395
      %v1411 = vunpack.c.l.b16 %v1396
      %v1412 = vunpack.c.l.b16 %v1397
      %v1413 = vpack.c.b16 %v1410, %v1409
      %v1414 = vpack.c.b16 %v1412, %v1411
      %v1418 = vsel %vm883, %v1393, 0
      %1420 = vmatprep.subr.bf16.mxu0 0
      %1421 = vmatpush1.bf16.msra.mxu0 %v1413
      %1422 = vmatprep.subr.bf16.mxu0 0
      %1423 = vmatpush1.bf16.msra.mxu0 %v1414
      %1424 = vmatprep.subr.bf16.mxu0 0
      %1425 = vmatpush1.bf16.msra.mxu0 0
      %1426 = vmatprep.subr.bf16.mxu0 0
      %1427 = vmatpush1.bf16.msra.mxu0 0
      %1428 = vmatprep.subr.bf16.mxu0 0
      %1429 = vmatpush1.bf16.msra.mxu0 0
      %1430 = vmatprep.subr.bf16.mxu0 0
      %1431 = vmatpush1.bf16.msra.mxu0 0
      %1432 = vmatprep.subr.bf16.mxu0 0
      %1433 = vmatpush1.bf16.msra.mxu0 0
      %1434 = vmatprep.subr.bf16.mxu0 0
      %1435 = vmatpush1.bf16.msra.mxu0 0
      %1436 = vmatprep.subr.bf16.mxu0 0
      %1437 = vmatpush1.bf16.msra.mxu0 0
      %1438 = vmatprep.subr.bf16.mxu0 0
      %1439 = vmatpush1.bf16.msra.mxu0 0
      %1440 = vmatprep.subr.bf16.mxu0 0
      %1441 = vmatpush1.bf16.msra.mxu0 0
      %1442 = vmatprep.subr.bf16.mxu0 0
      %1443 = vmatpush1.bf16.msra.mxu0 0
      %1444 = vmatprep.subr.bf16.mxu0 0
      %1445 = vmatpush1.bf16.msra.mxu0 0
      %1446 = vmatprep.subr.bf16.mxu0 0
      %1447 = vmatpush1.bf16.msra.mxu0 0
      %1448 = vmatprep.subr.bf16.mxu0 0
      %1449 = vmatpush1.bf16.msra.mxu0 0
      %1450 = vmatprep.subr.bf16.mxu0 0
      %1451 = vmatpush1.bf16.msra.mxu0 0
      %1452 = vmatprep.mubr.bf16.mxu0 0
      %1453 = vmatmul.mubr.bf16.gmra.mrb[0].mxu0 %v1418
      %v1454 = vpop.f32.mrb[0].mxu0
      %v1455 = vadd.f32 %v1403, %v1454
      %v1456 = vpop.f32.mrb[0].mxu0
      %v1457 = vpop.f32.mrb[0].mxu0
      %v1458 = vadd.f32 %v1403, %v1457
      %v1459 = vpop.f32.mrb[0].mxu0
      %1460 = vdwg.mxu0
      %v1461 = vadd.f32 %v1455, %v855
      %v1462 = vadd.f32 %v1458, %v856
      %v1463 = vld [vmem:[%s721] sm:$0x1]
      %v1464 = vld [vmem:[%s724] sm:$0x1]
      %v1465 = vsel %vm883, %v1461, 0.0
      %1466 = vadd.xlane.f32.xlu0 %v1465
      %v1467 = vpop.xlane.xlu0 %1466
      %v1468 = vsel %vm883, %v1462, 0.0
      %1469 = vadd.xlane.f32.xlu0 %v1468
      %v1470 = vpop.xlane.xlu0 %1469
      %v1471 = vrcp.pop 32.0
      %v1472 = vmul.f32 %v1467, %v1471
      %v1473 = vmul.f32 %v1470, %v1471
      %v1474 = vsub.f32 %v1461, %v1472
      %v1475 = vsub.f32 %v1462, %v1473
      %v1476 = vmul.f32 %v1474, %v1474
      %v1477 = vmul.f32 %v1475, %v1475
      %v1478 = vsel %vm883, %v1476, 0.0
      %1479 = vadd.xlane.f32.xlu0 %v1478
      %v1480 = vpop.xlane.xlu0 %1479
      %v1481 = vsel %vm883, %v1477, 0.0
      %1482 = vadd.xlane.f32.xlu0 %v1481
      %v1483 = vpop.xlane.xlu0 %1482
      %v1484 = vmul.f32 %v1480, %v1471
      %v1485 = vmul.f32 %v1483, %v1471
      %v1486 = vadd.f32 %v1484, 1e-12
      %v1487 = vadd.f32 %v1485, 1e-12
      %v1488 = vrsqrt.pop %v1486
      %v1489 = vrsqrt.pop %v1487
      %v1490 = vmul.f32 %v1474, %v1488
      %v1491 = vmul.f32 %v1475, %v1489
      %v1493 = vlaneseq
      %v1494 = vshrl.u32 %v1493, 7
      %v1495 = vsub.s32 0, %v1494
      %v1496 = vrot.slane %v1463, %v1495
      %v1498 = vmul.f32 %v1490, %v1496
      %v1499 = vmul.f32 %v1491, %v1496
      %v1501 = vlaneseq
      %v1502 = vshrl.u32 %v1501, 7
      %v1503 = vsub.s32 0, %v1502
      %v1504 = vrot.slane %v1464, %v1503
      %v1506 = vadd.f32 %v1498, %v1504
      %v1507 = vadd.f32 %v1499, %v1504
      %v1508 = vpack.c.bf16 %v1507, %v1506
      %v1509 = vld [vmem:[%s729] sm:$0xf]
      %v1510 = vld [vmem:[%s729 + $0x4] sm:$0xf]
      %v1511 = vld [vmem:[%s729 + $0x8] sm:$0xf]
      %v1512 = vld [vmem:[%s729 + $0xc] sm:$0xf]
      %v1513 = vld [vmem:[%s732] sm:$0x1]
      %v1515 = vlaneseq
      %v1516 = vshrl.u32 %v1515, 7
      %v1517 = vsub.s32 0, %v1516
      %v1518 = vrot.slane %v1513, %v1517
      %v1524 = vunpack.c.l.b16 %v1509
      %v1525 = vunpack.c.l.b16 %v1510
      %v1526 = vunpack.c.l.b16 %v1511
      %v1527 = vunpack.c.l.b16 %v1512
      %v1528 = vpack.c.b16 %v1525, %v1524
      %v1529 = vpack.c.b16 %v1527, %v1526
      %v1533 = vsel %vm883, %v1508, 0
      %1535 = vmatprep.subr.bf16.mxu0 0
      %1536 = vmatpush1.bf16.msra.mxu0 %v1528
      %1537 = vmatprep.subr.bf16.mxu0 0
      %1538 = vmatpush1.bf16.msra.mxu0 %v1529
      %1539 = vmatprep.subr.bf16.mxu0 0
      %1540 = vmatpush1.bf16.msra.mxu0 0
      %1541 = vmatprep.subr.bf16.mxu0 0
      %1542 = vmatpush1.bf16.msra.mxu0 0
      %1543 = vmatprep.subr.bf16.mxu0 0
      %1544 = vmatpush1.bf16.msra.mxu0 0
      %1545 = vmatprep.subr.bf16.mxu0 0
      %1546 = vmatpush1.bf16.msra.mxu0 0
      %1547 = vmatprep.subr.bf16.mxu0 0
      %1548 = vmatpush1.bf16.msra.mxu0 0
      %1549 = vmatprep.subr.bf16.mxu0 0
      %1550 = vmatpush1.bf16.msra.mxu0 0
      %1551 = vmatprep.subr.bf16.mxu0 0
      %1552 = vmatpush1.bf16.msra.mxu0 0
      %1553 = vmatprep.subr.bf16.mxu0 0
      %1554 = vmatpush1.bf16.msra.mxu0 0
      %1555 = vmatprep.subr.bf16.mxu0 0
      %1556 = vmatpush1.bf16.msra.mxu0 0
      %1557 = vmatprep.subr.bf16.mxu0 0
      %1558 = vmatpush1.bf16.msra.mxu0 0
      %1559 = vmatprep.subr.bf16.mxu0 0
      %1560 = vmatpush1.bf16.msra.mxu0 0
      %1561 = vmatprep.subr.bf16.mxu0 0
      %1562 = vmatpush1.bf16.msra.mxu0 0
      %1563 = vmatprep.subr.bf16.mxu0 0
      %1564 = vmatpush1.bf16.msra.mxu0 0
      %1565 = vmatprep.subr.bf16.mxu0 0
      %1566 = vmatpush1.bf16.msra.mxu0 0
      %1567 = vmatprep.mubr.bf16.mxu0 0
      %1568 = vmatmul.mubr.bf16.gmra.mrb[0].mxu0 %v1533
      %v1569 = vpop.f32.mrb[0].mxu0
      %v1570 = vadd.f32 %v1518, %v1569
      %v1571 = vpop.f32.mrb[0].mxu0
      %v1572 = vpop.f32.mrb[0].mxu0
      %v1573 = vadd.f32 %v1518, %v1572
      %v1574 = vpop.f32.mrb[0].mxu0
      %1575 = vdwg.mxu0
      %v1576 = vmul.f32 %v1570, 0.5
      %v1577 = vmul.f32 %v1573, 0.5
      %v1578 = vmul.f32 %v1570, 0.044715
      %v1579 = vmul.f32 %v1573, 0.044715
      %v1580 = vmul.f32 %v1578, %v1570
      %v1581 = vmul.f32 %v1579, %v1573
      %v1582 = vmul.f32 %v1580, %v1570
      %v1583 = vmul.f32 %v1581, %v1573
      %v1584 = vadd.f32 %v1570, %v1582
      %v1585 = vadd.f32 %v1573, %v1583
      %v1586 = vmul.f32 %v1584, 0.7978846
      %v1587 = vmul.f32 %v1585, 0.7978846
      %v1588 = vtanh.pop %v1586
      %v1589 = vtanh.pop %v1587
      %v1590 = vadd.f32 %v1588, 1.0
      %v1591 = vadd.f32 %v1589, 1.0
      %v1592 = vmul.f32 %v1576, %v1590
      %v1593 = vmul.f32 %v1577, %v1591
      %v1594 = vpack.c.bf16 %v1593, %v1592
      %v1595 = vld [vmem:[%s737] sm:$0xf]
      %v1596 = vld [vmem:[%s737 + $0x4] sm:$0xf]
      %v1597 = vld [vmem:[%s737 + $0x8] sm:$0xf]
      %v1598 = vld [vmem:[%s737 + $0xc] sm:$0xf]
      %v1599 = vld [vmem:[%s737 + $0x10] sm:$0xf]
      %v1600 = vld [vmem:[%s737 + $0x14] sm:$0xf]
      %v1601 = vld [vmem:[%s737 + $0x18] sm:$0xf]
      %v1602 = vld [vmem:[%s737 + $0x1c] sm:$0xf]
      %v1603 = vld [vmem:[%s740] sm:$0x1]
      %v1605 = vlaneseq
      %v1606 = vshrl.u32 %v1605, 7
      %v1607 = vsub.s32 0, %v1606
      %v1608 = vrot.slane %v1603, %v1607
      %v1618 = vunpack.c.l.b16 %v1595
      %v1619 = vunpack.c.l.b16 %v1596
      %v1620 = vunpack.c.l.b16 %v1597
      %v1621 = vunpack.c.l.b16 %v1598
      %v1622 = vunpack.c.l.b16 %v1599
      %v1623 = vunpack.c.l.b16 %v1600
      %v1624 = vunpack.c.l.b16 %v1601
      %v1625 = vunpack.c.l.b16 %v1602
      %v1626 = vpack.c.b16 %v1619, %v1618
      %v1627 = vpack.c.b16 %v1621, %v1620
      %v1628 = vpack.c.b16 %v1623, %v1622
      %v1629 = vpack.c.b16 %v1625, %v1624
      %vm1634 = vcmask 523264
      %v1636 = vsel %vm1634, %v1594, 0
      %1638 = vmatprep.subr.bf16.mxu0 0
      %1639 = vmatpush1.bf16.msra.mxu0 %v1626
      %1640 = vmatprep.subr.bf16.mxu0 0
      %1641 = vmatpush1.bf16.msra.mxu0 %v1627
      %1642 = vmatprep.subr.bf16.mxu0 0
      %1643 = vmatpush1.bf16.msra.mxu0 %v1628
      %1644 = vmatprep.subr.bf16.mxu0 0
      %1645 = vmatpush1.bf16.msra.mxu0 %v1629
      %1646 = vmatprep.subr.bf16.mxu0 0
      %1647 = vmatpush1.bf16.msra.mxu0 0
      %1648 = vmatprep.subr.bf16.mxu0 0
      %1649 = vmatpush1.bf16.msra.mxu0 0
      %1650 = vmatprep.subr.bf16.mxu0 0
      %1651 = vmatpush1.bf16.msra.mxu0 0
      %1652 = vmatprep.subr.bf16.mxu0 0
      %1653 = vmatpush1.bf16.msra.mxu0 0
      %1654 = vmatprep.subr.bf16.mxu0 0
      %1655 = vmatpush1.bf16.msra.mxu0 0
      %1656 = vmatprep.subr.bf16.mxu0 0
      %1657 = vmatpush1.bf16.msra.mxu0 0
      %1658 = vmatprep.subr.bf16.mxu0 0
      %1659 = vmatpush1.bf16.msra.mxu0 0
      %1660 = vmatprep.subr.bf16.mxu0 0
      %1661 = vmatpush1.bf16.msra.mxu0 0
      %1662 = vmatprep.subr.bf16.mxu0 0
      %1663 = vmatpush1.bf16.msra.mxu0 0
      %1664 = vmatprep.subr.bf16.mxu0 0
      %1665 = vmatpush1.bf16.msra.mxu0 0
      %1666 = vmatprep.subr.bf16.mxu0 0
      %1667 = vmatpush1.bf16.msra.mxu0 0
      %1668 = vmatprep.subr.bf16.mxu0 0
      %1669 = vmatpush1.bf16.msra.mxu0 0
      %1670 = vmatprep.mubr.bf16.mxu0 0
      %1671 = vmatmul.mubr.bf16.gmra.mrb[0].mxu0 %v1636
      %v1672 = vpop.f32.mrb[0].mxu0
      %v1673 = vadd.f32 %v1608, %v1672
      %v1674 = vpop.f32.mrb[0].mxu0
      %v1675 = vpop.f32.mrb[0].mxu0
      %v1676 = vadd.f32 %v1608, %v1675
      %v1677 = vpop.f32.mrb[0].mxu0
      %1678 = vdwg.mxu0
      %v1679 = vadd.f32 %v1673, %v1506
      %v1680 = vadd.f32 %v1676, %v1507
      %v1681 = vld [vmem:[%s743] sm:$0x1]
      %v1682 = vld [vmem:[%s746] sm:$0x1]
      %v1683 = vsel %vm883, %v1679, 0.0
      %1684 = vadd.xlane.f32.xlu0 %v1683
      %v1685 = vpop.xlane.xlu0 %1684
      %v1686 = vsel %vm883, %v1680, 0.0
      %1687 = vadd.xlane.f32.xlu0 %v1686
      %v1688 = vpop.xlane.xlu0 %1687
      %v1689 = vmul.f32 %v1685, %v1471
      %v1690 = vmul.f32 %v1688, %v1471
      %v1691 = vsub.f32 %v1679, %v1689
      %v1692 = vsub.f32 %v1680, %v1690
      %v1693 = vmul.f32 %v1691, %v1691
      %v1694 = vmul.f32 %v1692, %v1692
      %v1695 = vsel %vm883, %v1693, 0.0
      %1696 = vadd.xlane.f32.xlu0 %v1695
      %v1697 = vpop.xlane.xlu0 %1696
      %v1698 = vsel %vm883, %v1694, 0.0
      %1699 = vadd.xlane.f32.xlu0 %v1698
      %v1700 = vpop.xlane.xlu0 %1699
      %v1701 = vmul.f32 %v1697, %v1471
      %v1702 = vmul.f32 %v1700, %v1471
      %v1703 = vadd.f32 %v1701, 1e-12
      %v1704 = vadd.f32 %v1702, 1e-12
      %v1705 = vrsqrt.pop %v1703
      %v1706 = vrsqrt.pop %v1704
      %v1707 = vmul.f32 %v1691, %v1705
      %v1708 = vmul.f32 %v1692, %v1706
      %v1710 = vlaneseq
      %v1711 = vshrl.u32 %v1710, 7
      %v1712 = vsub.s32 0, %v1711
      %v1713 = vrot.slane %v1681, %v1712
      %v1715 = vmul.f32 %v1707, %v1713
      %v1716 = vmul.f32 %v1708, %v1713
      %v1718 = vlaneseq
      %v1719 = vshrl.u32 %v1718, 7
      %v1720 = vsub.s32 0, %v1719
      %v1721 = vrot.slane %v1682, %v1720
      %v1723 = vadd.f32 %v1715, %v1721
      %v1724 = vadd.f32 %v1716, %v1721
      %1725 = vst.msk [vmem:[#allocation2] sm:$0xff] %vm883, %v1723
      %1726 = vst.msk [vmem:[#allocation2 + $0x8] sm:$0xff] %vm883, %v1724
      %p1727 = scmp.eq.s32.totalorder %s34, 1
      // Predicated region
      $region127: #{depbert_forward.3} parent=87 // pred_check
        %p1728 = pneg %p1727
      $region128: #{depbert_forward.3} parent=87 // pred_check_branch
        %1730 = sbr.rel (%p1728) target = $region130
      $region129: #{depbert_forward.3} parent=87 // pred_region
        %v1731 = vld [vmem:[%s16] sm:$0xff]
        %v1732 = vld [vmem:[%s16 + $0x8] sm:$0xff]
        %v1733 = vld [vmem:[%s16 + $0x10] sm:$0xff]
        %v1734 = vld [vmem:[%s16 + $0x18] sm:$0xff]
        %v1735 = vld [vmem:[%s17] sm:$0x1]
        %v1737 = vlaneseq
        %v1738 = vshrl.u32 %v1737, 7
        %v1739 = vsub.s32 0, %v1738
        %v1740 = vrot.slane %v1735, %v1739
        %v1744 = vrot.slane %v1724, 7
        %vm1745 = vcmask 1041409
        %v1746 = vsel %vm1745, %v1744, %v1723
        %v1747 = vsel %vm883, %v1746, 0
        %1749 = vmatprep.subr.mxu0 0.0
        %1750 = vmatpush1.msra.mxu0 %v1731
        %1751 = vmatprep.subr.mxu0 0.0
        %1752 = vmatpush1.msra.mxu0 %v1732
        %1753 = vmatprep.subr.mxu0 0.0
        %1754 = vmatpush1.msra.mxu0 %v1733
        %1755 = vmatprep.subr.mxu0 0.0
        %1756 = vmatpush1.msra.mxu0 %v1734
        %1757 = vmatprep.subr.mxu0 0.0
        %1758 = vmatpush1.msra.mxu0 0.0
        %1759 = vmatprep.subr.mxu0 0.0
        %1760 = vmatpush1.msra.mxu0 0.0
        %1761 = vmatprep.subr.mxu0 0.0
        %1762 = vmatpush1.msra.mxu0 0.0
        %1763 = vmatprep.subr.mxu0 0.0
        %1764 = vmatpush1.msra.mxu0 0.0
        %1765 = vmatprep.subr.mxu0 0.0
        %1766 = vmatpush1.msra.mxu0 0.0
        %1767 = vmatprep.subr.mxu0 0.0
        %1768 = vmatpush1.msra.mxu0 0.0
        %1769 = vmatprep.subr.mxu0 0.0
        %1770 = vmatpush1.msra.mxu0 0.0
        %1771 = vmatprep.subr.mxu0 0.0
        %1772 = vmatpush1.msra.mxu0 0.0
        %1773 = vmatprep.subr.mxu0 0.0
        %1774 = vmatpush1.msra.mxu0 0.0
        %1775 = vmatprep.subr.mxu0 0.0
        %1776 = vmatpush1.msra.mxu0 0.0
        %1777 = vmatprep.subr.mxu0 0.0
        %1778 = vmatpush1.msra.mxu0 0.0
        %1779 = vmatprep.subr.mxu0 0.0
        %1780 = vmatpush1.msra.mxu0 0.0
        %1781 = vmatprep.subr.mxu0 0.0
        %1782 = vmatpush1.msra.mxu0 0.0
        %1783 = vmatprep.subr.mxu0 0.0
        %1784 = vmatpush1.msra.mxu0 0.0
        %1785 = vmatprep.subr.mxu0 0.0
        %1786 = vmatpush1.msra.mxu0 0.0
        %1787 = vmatprep.subr.mxu0 0.0
        %1788 = vmatpush1.msra.mxu0 0.0
        %1789 = vmatprep.subr.mxu0 0.0
        %1790 = vmatpush1.msra.mxu0 0.0
        %1791 = vmatprep.subr.mxu0 0.0
        %1792 = vmatpush1.msra.mxu0 0.0
        %1793 = vmatprep.subr.mxu0 0.0
        %1794 = vmatpush1.msra.mxu0 0.0
        %1795 = vmatprep.subr.mxu0 0.0
        %1796 = vmatpush1.msra.mxu0 0.0
        %1797 = vmatprep.subr.mxu0 0.0
        %1798 = vmatpush1.msra.mxu0 0.0
        %1799 = vmatprep.subr.mxu0 0.0
        %1800 = vmatpush1.msra.mxu0 0.0
        %1801 = vmatprep.subr.mxu0 0.0
        %1802 = vmatpush1.msra.mxu0 0.0
        %1803 = vmatprep.subr.mxu0 0.0
        %1804 = vmatpush1.msra.mxu0 0.0
        %1805 = vmatprep.subr.mxu0 0.0
        %1806 = vmatpush1.msra.mxu0 0.0
        %1807 = vmatprep.subr.mxu0 0.0
        %1808 = vmatpush1.msra.mxu0 0.0
        %1809 = vmatprep.subr.mxu0 0.0
        %1810 = vmatpush1.msra.mxu0 0.0
        %1811 = vmatprep.subr.mxu0 0.0
        %1812 = vmatpush1.msra.mxu0 0.0
        %1813 = vmatprep.mubr.f32.mxu0 0.0
        %1814 = vmatmul.mubr.f32.gmra.mrb[0].mxu0 %v1747
        %v1815 = vpop.f32.mrb[0].mxu0
        %v1816 = vadd.f32 %v1740, %v1815
        %v1817 = vpop.f32.mrb[0].mxu0
        %1818 = vdwg.mxu0
        %v1819 = vtanh.pop %v1816
        %vm1820 = vcmask 254976
        %1821 = vst.msk [vmem:[%s750] sm:$0x3] %vm1820, %v1819
      $region130: #{depbert_forward.3} parent=87 // pred_fallthru
        _
      %p1822 = scmp.lt.s32.totalorder %s33, 0
      %s1823 = scalar_select %p1822, %s33, 0
      %s1824 = smul.addr %s1823, 2
      %s1825 = scalar_lea.vmem %s18, %s1824
      // Predicated region
      $region131: #{depbert_forward.3} parent=87 // pred_check
        %p1826 = pneg %p481
      $region132: #{depbert_forward.3} parent=87 // pred_check_branch
        %1828 = sbr.rel (%p1826) target = $region134
      $region133: #{depbert_forward.3} parent=87 // pred_region
        _
      $region134: #{depbert_forward.3} parent=87 // pred_fallthru
        _
      // Predicated region
      $region135: #{depbert_forward.3} parent=87 // pred_check
        %p1829 = pneg %p481
      $region136: #{depbert_forward.3} parent=87 // pred_check_branch
        %1831 = sbr.rel (%p1829) target = $region138
      $region137: #{depbert_forward.3} parent=87 // pred_region
        %p1832 = scmp.lt.s32.totalorder %s33, 0
        %s1833 = scalar_select %p1832, %s33, 0
        %s1834 = smul.addr %s1833, 2
        %s1835 = scalar_lea.vmem %s18, %s1834
      $region138: #{depbert_forward.3} parent=87 // pred_fallthru
        _
    $region88: #{depbert_forward.3} parent=5 // pred_fallthru
      _
    %p1836 = scmp.le.s32.totalorder 2, %s24
    // Predicated region
    $region139: #{depbert_forward.3} parent=5 // pred_check
      %p1837 = pneg %p1836
    $region140: #{depbert_forward.3} parent=5 // pred_check_branch
      %1839 = sbr.rel (%p1837) target = $region142
    $region141: #{depbert_forward.3} parent=5 // pred_region
      %s1840 = ssub.s32 %s24, 2
    $region142: #{depbert_forward.3} parent=5 // pred_fallthru
      _
  $region6: #{depbert_forward.3} parent=0 // loop_footer
    %s28 = sadd.s32 1, %s24
  $region7: #{depbert_forward.3} parent=0 // loop_footer_branch
    %23 = sbr.rel target = $region3
  $region8: #{depbert_forward.3} parent=0 // loop_exit
    _
  %1841 = vsyncmov [#allocation3]
  %s1842 = vpop.sfrf %1841
  %p1843 = scmp.eq.s32.totalorder %s1842, 0
  %p1844 = pneg %p1843
  %1846 = shalt.err (%p1844)

</llo_original>
